<compile_context>
chip_gen: v7x
topology: tpu7x:2x2x1
jax: 0.10.0
libtpu: 0.0.40
codegen_flags: <defaults>
</compile_context>

<pallas_src>
import numpy as np
import jax
import jax.numpy as jnp
from jax.experimental import pallas as pl
from jax.experimental.pallas import tpu as pltpu

FILTER_LENGTH = 512
N_OVERLAP = 4
HOP = FILTER_LENGTH // N_OVERLAP        # 128  (int(filter_length / n_overlap))
WIN_LENGTH = FILTER_LENGTH
CUTOFF = FILTER_LENGTH // 2 + 1         # 257
C_PAD = 384                             # 257 -> 3*128 lanes; 2*C_PAD = 768 = 3*256


def _hann_periodic(n):
    # == scipy.signal.get_window('hann', n, fftbins=True)
    k = np.arange(n)
    return 0.5 - 0.5 * np.cos(2.0 * np.pi * k / n)


def _raw_bases():
    """Replicates STFT.__init__: windowed Fourier basis + pinv inverse basis."""
    N = FILTER_LENGTH
    scale = N / HOP
    fourier_basis = np.fft.fft(np.eye(N))
    fb = np.vstack([np.real(fourier_basis[:CUTOFF, :]),
                    np.imag(fourier_basis[:CUTOFF, :])])          # (2C, N)
    inverse_basis = np.linalg.pinv(scale * fb).T                  # (2C, N)
    win = _hann_periodic(WIN_LENGTH)                              # win_length == filter_length
    forward_basis = (fb * win[None, :]).astype(np.float32)
    inverse_basis = (inverse_basis * win[None, :]).astype(np.float32)
    return forward_basis, inverse_basis, win.astype(np.float32)


def make_fused_bases(dtype=np.float32):
    """Fused + zero-padded bases: W_fwd (N, 2*C_PAD), W_inv (2*C_PAD, N).

    Columns/rows [0:C] hold the real half, [C_PAD:C_PAD+C] the imag half;
    the padding is exact zeros so padded bins contribute exactly 0.
    """
    fwd, inv, win = _raw_bases()
    N = FILTER_LENGTH
    w_fwd = np.zeros((N, 2 * C_PAD), np.float32)
    w_fwd[:, :CUTOFF] = fwd[:CUTOFF, :].T
    w_fwd[:, C_PAD:C_PAD + CUTOFF] = fwd[CUTOFF:, :].T
    w_inv = np.zeros((2 * C_PAD, N), np.float32)
    w_inv[:CUTOFF, :] = inv[:CUTOFF, :]
    w_inv[C_PAD:C_PAD + CUTOFF, :] = inv[CUTOFF:, :]
    return w_fwd.astype(dtype), w_inv.astype(dtype), win


def make_scale_vec(n_frames, win):
    """window_sumsquare correction folded with the filter_length/hop scaling."""
    N = FILTER_LENGTH
    n_total = N + HOP * (n_frames - 1)
    win_sq = (win.astype(np.float64) ** 2).astype(np.float32)
    wsum = np.zeros(n_total, dtype=np.float32)
    for i in range(n_frames):
        s = i * HOP
        wsum[s:min(n_total, s + N)] += win_sq[:max(0, min(N, n_total - s))]
    tiny = np.finfo(np.float32).tiny
    s_const = float(N) / HOP
    scale = np.where(wsum > tiny, s_const / wsum, s_const).astype(np.float32)
    n_out = n_frames + N_OVERLAP - 1
    return scale.reshape(n_out, HOP)


def denoiser_kernel(chunks_ref, fwd_ref, inv_ref, bias_ref, scale_ref,
                    out_ref, acc_ref):
    n_chunks = chunks_ref.shape[1]
    n_frames = n_chunks - (N_OVERLAP - 1)
    hop = chunks_ref.shape[2]
    c_pad = bias_ref.shape[1]

    x = chunks_ref[0]                                   # (n_chunks, HOP)

    # Forward STFT conv1d: frames @ fused basis, rebuilt from non-overlapping
    # chunks as a sum of 4 row-shifted partial matmuls (MXU, f32 accumulation).
    ri = jnp.dot(x[0:n_frames, :], fwd_ref[0:hop, :],
                 preferred_element_type=jnp.float32)    # (nf, 2*C_PAD)
    for j in range(1, N_OVERLAP):
        ri = ri + jnp.dot(x[j:j + n_frames, :],
                          fwd_ref[j * hop:(j + 1) * hop, :],
                          preferred_element_type=jnp.float32)

    real = ri[:, :c_pad]
    imag = ri[:, c_pad:]

    # Denoise: clamp(mag - bias*strength, 0) * e^{i*phase}, expressed as a
    # single attenuation ratio (no sqrt / divides; rsqrt lands on the EUP).
    # bias_ref is already strength-scaled and zero-padded.
    s = real * real + imag * imag
    pos = s > 0.0
    inv_mag = jax.lax.rsqrt(jnp.where(pos, s, 1.0))
    ratio = jnp.where(pos,
                      jnp.maximum(1.0 - bias_ref[...] * inv_mag, 0.0),
                      0.0)
    new_ri = jnp.concatenate([real * ratio, imag * ratio],
                             axis=1).astype(inv_ref.dtype)   # (nf, 2*C_PAD)

    # Inverse conv_transpose1d: one fused matmul against (2*C_PAD, N) basis.
    contrib = jnp.dot(new_ri, inv_ref[...],
                      preferred_element_type=jnp.float32)    # (nf, N)

    # Overlap-add (stride = hop, N = N_OVERLAP*hop) into VMEM scratch using
    # static row offsets -- no full-array dynamic_update_slice copies.
    acc_ref[...] = jnp.zeros_like(acc_ref)
    for j in range(N_OVERLAP):
        acc_ref[pl.ds(j, n_frames), :] += contrib[:, j * hop:(j + 1) * hop]

    # window_sumsquare correction + (filter_length / hop) scaling.
    out_ref[0] = acc_ref[...] * scale_ref[...]


def denoise(audio, bias_spec, strength=0.1, bases_dtype=jnp.float32):
    """bases_dtype=jnp.bfloat16 recommended on v6e/v7x production shapes
    (halves basis VMEM/DMA, full MXU rate); f32 default keeps the demo
    bit-close to the PyTorch reference."""
    B, T = audio.shape
    N = FILTER_LENGTH
    pad = N // 2
    assert T % HOP == 0 and T > pad

    w_fwd, w_inv, win = make_fused_bases(np.dtype(bases_dtype))

    # glue: reflect padding + reshape to non-overlapping HOP chunks (no 4x
    # duplicated frame gather; the kernel reconstructs frames via row shifts).
    padded = jnp.pad(audio.astype(jnp.float32), ((0, 0), (pad, pad)),
                     mode="reflect")                     # (B, T + N)
    n_frames = T // HOP + 1
    n_out = n_frames + N_OVERLAP - 1                     # == (T + N) // HOP
    chunks = padded.reshape(B, n_out, HOP).astype(bases_dtype)

    scale_vec = jnp.asarray(make_scale_vec(n_frames, win))          # (n_out, HOP)
    # Fold strength into the bias and zero-pad to C_PAD lanes.
    bias_scaled = jnp.zeros((1, C_PAD), jnp.float32)
    bias_scaled = bias_scaled.at[:, :CUTOFF].set(
        bias_spec.reshape(1, CUTOFF).astype(jnp.float32) * strength)

    # TODO(synk): at production shapes (filter_length=1024, long clips) add a
    # frame-tile grid axis ("arbitrary") with an (N_OVERLAP-1)-row OLA carry so
    # frames/contrib stay tiled under v7x's 64 MiB VMEM.
    out = pl.pallas_call(
        denoiser_kernel,
        out_shape=jax.ShapeDtypeStruct((B, n_out, HOP), jnp.float32),
        grid_spec=pltpu.PrefetchScalarGridSpec(
            num_scalar_prefetch=0,
            grid=(B,),
            in_specs=[
                pl.BlockSpec((1, n_out, HOP), lambda b: (b, 0, 0)),   # chunks
                pl.BlockSpec((N, 2 * C_PAD), lambda b: (0, 0),
                             pipeline_mode=pl.Buffered(1)),           # fused fwd basis
                pl.BlockSpec((2 * C_PAD, N), lambda b: (0, 0),
                             pipeline_mode=pl.Buffered(1)),           # fused inv basis
                pl.BlockSpec((1, C_PAD), lambda b: (0, 0),
                             pipeline_mode=pl.Buffered(1)),           # bias * strength
                pl.BlockSpec((n_out, HOP), lambda b: (0, 0),
                             pipeline_mode=pl.Buffered(1)),           # window-sum scale
            ],
            out_specs=pl.BlockSpec((1, n_out, HOP), lambda b: (b, 0, 0)),
            scratch_shapes=[pltpu.VMEM((n_out, HOP), jnp.float32)],   # OLA accumulator
        ),
        compiler_params=pltpu.CompilerParams(
            dimension_semantics=("parallel",),
            vmem_limit_bytes=48 * 1024 * 1024,   # safe on v5e/v6e (128 MiB) and v7x (64 MiB)
        ),
    )(chunks, jnp.asarray(w_fwd), jnp.asarray(w_inv), bias_scaled, scale_vec)

    # glue: reassemble time axis and trim filter_length/2 at both ends -> (B, 1, T)
    audio_denoised = out.reshape(B, 1, n_out * HOP)[:, :, pad:-pad]
    return audio_denoised


def denoise_reference(audio, bias_spec, strength=0.1):
    """Pure-JAX f32 reference replicating STFT.transform / Denoiser / STFT.inverse."""
    B, T = audio.shape
    N = FILTER_LENGTH
    pad = N // 2
    fwd, inv, win = _raw_bases()
    padded = jnp.pad(audio.astype(jnp.float32), ((0, 0), (pad, pad)), mode="reflect")
    n_frames = T // HOP + 1
    idx = jnp.arange(n_frames)[:, None] * HOP + jnp.arange(N)[None, :]
    frames = padded[:, idx]
    real = jnp.einsum("bfn,cn->bfc", frames, jnp.asarray(fwd[:CUTOFF]))
    imag = jnp.einsum("bfn,cn->bfc", frames, jnp.asarray(fwd[CUTOFF:]))
    mag = jnp.sqrt(real * real + imag * imag)
    phase = jnp.arctan2(imag, real)
    mag_dn = jnp.maximum(mag - bias_spec[None, :, :] * strength, 0.0)
    new_r = mag_dn * jnp.cos(phase)
    new_i = mag_dn * jnp.sin(phase)
    contrib = (jnp.einsum("bfc,cn->bfn", new_r, jnp.asarray(inv[:CUTOFF]))
               + jnp.einsum("bfc,cn->bfn", new_i, jnp.asarray(inv[CUTOFF:])))
    n_total = N + HOP * (n_frames - 1)
    out = jnp.zeros((B, n_total), jnp.float32)
    for t in range(n_frames):
        out = out.at[:, t * HOP:t * HOP + N].add(contrib[:, t, :])
    scale_flat = jnp.asarray(make_scale_vec(n_frames, win)).reshape(-1)
    out = out * scale_flat[None, :]
    return out[:, pad:-pad][:, None, :]


if __name__ == "__main__":
    key = jax.random.PRNGKey(0)
    k_audio, k_bias = jax.random.split(key)
    B, T = 2, 1024
    audio = jax.random.normal(k_audio, (B, T), jnp.float32)
    # TODO(synk): in the real module bias_spec = STFT(waveglow.infer(zeros, sigma=0))[:, :, :1];
    # waveglow cannot be run here, so a deterministic synthetic nonnegative spectrum is used.
    bias_spec = jnp.abs(jax.random.normal(k_bias, (1, CUTOFF), jnp.float32))

    out = denoise(audio, bias_spec, strength=0.1)
    out = jax.block_until_ready(out)

    assert out.shape == (B, 1, T), out.shape
    assert bool(jnp.all(jnp.isfinite(out)))
    ref = denoise_reference(audio, bias_spec, strength=0.1)
    max_err = float(jnp.max(jnp.abs(out - ref)))
    assert max_err < 1e-2, f"mismatch vs reference: {max_err}"
    print("KERNEL_OK")
</pallas_src>

<mosaic_0001>
module attributes {stable_mosaic.version = 11 : i64} {
  func.func @denoiser_kernel(%arg0: i32, %arg1: memref<1x12x128xf32, #tpu.memory_space<vmem>>, %arg2: memref<512x768xf32, #tpu.memory_space<vmem>>, %arg3: memref<768x512xf32, #tpu.memory_space<vmem>>, %arg4: memref<1x384xf32, #tpu.memory_space<vmem>>, %arg5: memref<12x128xf32, #tpu.memory_space<vmem>>, %arg6: memref<1x12x128xf32, #tpu.memory_space<vmem>>, %arg7: memref<12x128xf32, #tpu.memory_space<vmem>>) attributes {dimension_semantics = [#tpu.dimension_semantics<parallel>], iteration_bounds = array<i64: 2>, scalar_prefetch = 0 : i64, scratch_operands = 1 : i64, tpu.core_type = #tpu.core_type<tc>, window_params = [{transform_indices = @transform_0, window_bounds = array<i64: 1, 12, 128>}, {pipeline_mode = #tpu.pipeline_mode<synchronous>, transform_indices = @transform_1, window_bounds = array<i64: 512, 768>}, {pipeline_mode = #tpu.pipeline_mode<synchronous>, transform_indices = @transform_2, window_bounds = array<i64: 768, 512>}, {pipeline_mode = #tpu.pipeline_mode<synchronous>, transform_indices = @transform_3, window_bounds = array<i64: 1, 384>}, {pipeline_mode = #tpu.pipeline_mode<synchronous>, transform_indices = @transform_4, window_bounds = array<i64: 12, 128>}, {transform_indices = @transform_5, window_bounds = array<i64: 1, 12, 128>}]} {
    %c0 = arith.constant 0 : index
    %c0_0 = arith.constant 0 : index
    %c0_1 = arith.constant 0 : index
    %0 = vector.load %arg1[%c0, %c0_0, %c0_1] : memref<1x12x128xf32, #tpu.memory_space<vmem>>, vector<1x12x128xf32>
    %1 = vector.shape_cast %0 : vector<1x12x128xf32> to vector<12x128xf32>
    %2 = vector.extract_strided_slice %1 {offsets = [0, 0], sizes = [9, 128], strides = [1, 1]} : vector<12x128xf32> to vector<9x128xf32>
    %c0_2 = arith.constant 0 : index
    %c0_3 = arith.constant 0 : index
    %3 = vector.load %arg2[%c0_2, %c0_3] : memref<512x768xf32, #tpu.memory_space<vmem>>, vector<128x768xf32>
    %cst = arith.constant dense<0.000000e+00> : vector<9x768xf32>
    %4 = tpu.matmul %2, %3, %cst {dimension_numbers = #tpu.dot_dimension_numbers<[1], [0], [0], [1], [0, 0, 1, 1], [], []>} : vector<9x128xf32>, vector<128x768xf32>, vector<9x768xf32> -> vector<9x768xf32>
    %5 = vector.extract_strided_slice %1 {offsets = [1, 0], sizes = [9, 128], strides = [1, 1]} : vector<12x128xf32> to vector<9x128xf32>
    %c128 = arith.constant 128 : index
    %c0_4 = arith.constant 0 : index
    %6 = vector.load %arg2[%c128, %c0_4] : memref<512x768xf32, #tpu.memory_space<vmem>>, vector<128x768xf32>
    %cst_5 = arith.constant dense<0.000000e+00> : vector<9x768xf32>
    %7 = tpu.matmul %5, %6, %cst_5 {dimension_numbers = #tpu.dot_dimension_numbers<[1], [0], [0], [1], [0, 0, 1, 1], [], []>} : vector<9x128xf32>, vector<128x768xf32>, vector<9x768xf32> -> vector<9x768xf32>
    %8 = arith.addf %4, %7 : vector<9x768xf32>
    %9 = vector.extract_strided_slice %1 {offsets = [2, 0], sizes = [9, 128], strides = [1, 1]} : vector<12x128xf32> to vector<9x128xf32>
    %c256 = arith.constant 256 : index
    %c0_6 = arith.constant 0 : index
    %10 = vector.load %arg2[%c256, %c0_6] : memref<512x768xf32, #tpu.memory_space<vmem>>, vector<128x768xf32>
    %cst_7 = arith.constant dense<0.000000e+00> : vector<9x768xf32>
    %11 = tpu.matmul %9, %10, %cst_7 {dimension_numbers = #tpu.dot_dimension_numbers<[1], [0], [0], [1], [0, 0, 1, 1], [], []>} : vector<9x128xf32>, vector<128x768xf32>, vector<9x768xf32> -> vector<9x768xf32>
    %12 = arith.addf %8, %11 : vector<9x768xf32>
    %13 = vector.extract_strided_slice %1 {offsets = [3, 0], sizes = [9, 128], strides = [1, 1]} : vector<12x128xf32> to vector<9x128xf32>
    %c384 = arith.constant 384 : index
    %c0_8 = arith.constant 0 : index
    %14 = vector.load %arg2[%c384, %c0_8] : memref<512x768xf32, #tpu.memory_space<vmem>>, vector<128x768xf32>
    %cst_9 = arith.constant dense<0.000000e+00> : vector<9x768xf32>
    %15 = tpu.matmul %13, %14, %cst_9 {dimension_numbers = #tpu.dot_dimension_numbers<[1], [0], [0], [1], [0, 0, 1, 1], [], []>} : vector<9x128xf32>, vector<128x768xf32>, vector<9x768xf32> -> vector<9x768xf32>
    %16 = arith.addf %12, %15 : vector<9x768xf32>
    %17 = vector.extract_strided_slice %16 {offsets = [0, 0], sizes = [9, 384], strides = [1, 1]} : vector<9x768xf32> to vector<9x384xf32>
    %18 = vector.extract_strided_slice %16 {offsets = [0, 384], sizes = [9, 384], strides = [1, 1]} : vector<9x768xf32> to vector<9x384xf32>
    %19 = arith.mulf %17, %17 : vector<9x384xf32>
    %20 = arith.mulf %18, %18 : vector<9x384xf32>
    %21 = arith.addf %19, %20 : vector<9x384xf32>
    %cst_10 = arith.constant 0.000000e+00 : f32
    %22 = vector.broadcast %cst_10 : f32 to vector<9x384xf32>
    %23 = arith.cmpf ogt, %21, %22 : vector<9x384xf32>
    %cst_11 = arith.constant 1.000000e+00 : f32
    %24 = vector.broadcast %cst_11 : f32 to vector<9x384xf32>
    %25 = arith.select %23, %21, %24 : vector<9x384xi1>, vector<9x384xf32>
    %26 = math.rsqrt %25 : vector<9x384xf32>
    %c0_12 = arith.constant 0 : index
    %c0_13 = arith.constant 0 : index
    %27 = vector.load %arg4[%c0_12, %c0_13] : memref<1x384xf32, #tpu.memory_space<vmem>>, vector<1x384xf32>
    %28 = vector.broadcast %27 : vector<1x384xf32> to vector<9x384xf32>
    %29 = arith.mulf %28, %26 : vector<9x384xf32>
    %cst_14 = arith.constant 1.000000e+00 : f32
    %30 = vector.broadcast %cst_14 : f32 to vector<9x384xf32>
    %31 = arith.subf %30, %29 : vector<9x384xf32>
    %cst_15 = arith.constant 0.000000e+00 : f32
    %32 = vector.broadcast %cst_15 : f32 to vector<9x384xf32>
    %33 = arith.maximumf %31, %32 : vector<9x384xf32>
    %cst_16 = arith.constant 0.000000e+00 : f32
    %34 = vector.broadcast %cst_16 : f32 to vector<9x384xf32>
    %35 = arith.select %23, %33, %34 : vector<9x384xi1>, vector<9x384xf32>
    %36 = arith.mulf %17, %35 : vector<9x384xf32>
    %37 = arith.mulf %18, %35 : vector<9x384xf32>
    %38 = tpu.concatenate %36, %37 in 1 : vector<9x384xf32>, vector<9x384xf32> -> vector<9x768xf32>
    %c0_17 = arith.constant 0 : index
    %c0_18 = arith.constant 0 : index
    %39 = vector.load %arg3[%c0_17, %c0_18] : memref<768x512xf32, #tpu.memory_space<vmem>>, vector<768x512xf32>
    %cst_19 = arith.constant dense<0.000000e+00> : vector<9x512xf32>
    %40 = tpu.matmul %38, %39, %cst_19 {dimension_numbers = #tpu.dot_dimension_numbers<[1], [0], [0], [1], [0, 0, 1, 1], [], []>} : vector<9x768xf32>, vector<768x512xf32>, vector<9x512xf32> -> vector<9x512xf32>
    %cst_20 = arith.constant 0.000000e+00 : f32
    %41 = vector.broadcast %cst_20 : f32 to vector<12x128xf32>
    %c0_21 = arith.constant 0 : index
    %c0_22 = arith.constant 0 : index
    %42 = vector.load %arg7[%c0_21, %c0_22] : memref<12x128xf32, #tpu.memory_space<vmem>>, vector<12x128xf32>
    tpu.vector_store %arg7[%c0_21, %c0_22], %41 {strides = array<i32>} : memref<12x128xf32, #tpu.memory_space<vmem>>, vector<12x128xf32>,
    %c0_23 = arith.constant 0 : index
    %c0_24 = arith.constant 0 : index
    %43 = vector.load %arg7[%c0_23, %c0_24] : memref<12x128xf32, #tpu.memory_space<vmem>>, vector<9x128xf32>
    %44 = vector.extract_strided_slice %40 {offsets = [0, 0], sizes = [9, 128], strides = [1, 1]} : vector<9x512xf32> to vector<9x128xf32>
    %45 = arith.addf %43, %44 : vector<9x128xf32>
    %c0_25 = arith.constant 0 : index
    %c0_26 = arith.constant 0 : index
    %46 = vector.load %arg7[%c0_25, %c0_26] : memref<12x128xf32, #tpu.memory_space<vmem>>, vector<9x128xf32>
    tpu.vector_store %arg7[%c0_25, %c0_26], %45 {strides = array<i32>} : memref<12x128xf32, #tpu.memory_space<vmem>>, vector<9x128xf32>,
    %c1 = arith.constant 1 : index
    %c0_27 = arith.constant 0 : index
    %47 = vector.load %arg7[%c1, %c0_27] : memref<12x128xf32, #tpu.memory_space<vmem>>, vector<9x128xf32>
    %48 = vector.extract_strided_slice %40 {offsets = [0, 128], sizes = [9, 128], strides = [1, 1]} : vector<9x512xf32> to vector<9x128xf32>
    %49 = arith.addf %47, %48 : vector<9x128xf32>
    %c1_28 = arith.constant 1 : index
    %c0_29 = arith.constant 0 : index
    %50 = vector.load %arg7[%c1_28, %c0_29] : memref<12x128xf32, #tpu.memory_space<vmem>>, vector<9x128xf32>
    tpu.vector_store %arg7[%c1_28, %c0_29], %49 {strides = array<i32>} : memref<12x128xf32, #tpu.memory_space<vmem>>, vector<9x128xf32>,
    %c2 = arith.constant 2 : index
    %c0_30 = arith.constant 0 : index
    %51 = vector.load %arg7[%c2, %c0_30] : memref<12x128xf32, #tpu.memory_space<vmem>>, vector<9x128xf32>
    %52 = vector.extract_strided_slice %40 {offsets = [0, 256], sizes = [9, 128], strides = [1, 1]} : vector<9x512xf32> to vector<9x128xf32>
    %53 = arith.addf %51, %52 : vector<9x128xf32>
    %c2_31 = arith.constant 2 : index
    %c0_32 = arith.constant 0 : index
    %54 = vector.load %arg7[%c2_31, %c0_32] : memref<12x128xf32, #tpu.memory_space<vmem>>, vector<9x128xf32>
    tpu.vector_store %arg7[%c2_31, %c0_32], %53 {strides = array<i32>} : memref<12x128xf32, #tpu.memory_space<vmem>>, vector<9x128xf32>,
    %c3 = arith.constant 3 : index
    %c0_33 = arith.constant 0 : index
    %55 = vector.load %arg7[%c3, %c0_33] : memref<12x128xf32, #tpu.memory_space<vmem>>, vector<9x128xf32>
    %56 = vector.extract_strided_slice %40 {offsets = [0, 384], sizes = [9, 128], strides = [1, 1]} : vector<9x512xf32> to vector<9x128xf32>
    %57 = arith.addf %55, %56 : vector<9x128xf32>
    %c3_34 = arith.constant 3 : index
    %c0_35 = arith.constant 0 : index
    %58 = vector.load %arg7[%c3_34, %c0_35] : memref<12x128xf32, #tpu.memory_space<vmem>>, vector<9x128xf32>
    tpu.vector_store %arg7[%c3_34, %c0_35], %57 {strides = array<i32>} : memref<12x128xf32, #tpu.memory_space<vmem>>, vector<9x128xf32>,
    %c0_36 = arith.constant 0 : index
    %c0_37 = arith.constant 0 : index
    %59 = vector.load %arg7[%c0_36, %c0_37] : memref<12x128xf32, #tpu.memory_space<vmem>>, vector<12x128xf32>
    %c0_38 = arith.constant 0 : index
    %c0_39 = arith.constant 0 : index
    %60 = vector.load %arg5[%c0_38, %c0_39] : memref<12x128xf32, #tpu.memory_space<vmem>>, vector<12x128xf32>
    %61 = arith.mulf %59, %60 : vector<12x128xf32>
    %c0_40 = arith.constant 0 : index
    %c0_41 = arith.constant 0 : index
    %c0_42 = arith.constant 0 : index
    %62 = vector.load %arg6[%c0_40, %c0_41, %c0_42] : memref<1x12x128xf32, #tpu.memory_space<vmem>>, vector<1x12x128xf32>
    %63 = vector.shape_cast %62 : vector<1x12x128xf32> to vector<12x128xf32>
    %64 = vector.shape_cast %61 : vector<12x128xf32> to vector<1x12x128xf32>
    tpu.vector_store %arg6[%c0_40, %c0_41, %c0_42], %64 {strides = array<i32>} : memref<1x12x128xf32, #tpu.memory_space<vmem>>, vector<1x12x128xf32>,
    return
  }
  func.func @transform_0(%arg0: i32) -> (i32, i32, i32) {
    %c0_i32 = arith.constant 0 : i32
    %c0_i32_0 = arith.constant 0 : i32
    %c0_i32_1 = arith.constant 0 : i32
    return %arg0, %c0_i32, %c0_i32_0 : i32, i32, i32
  }
  func.func @transform_1(%arg0: i32) -> (i32, i32) {
    %c0_i32 = arith.constant 0 : i32
    %c0_i32_0 = arith.constant 0 : i32
    %c0_i32_1 = arith.constant 0 : i32
    return %c0_i32, %c0_i32_0 : i32, i32
  }
  func.func @transform_2(%arg0: i32) -> (i32, i32) {
    %c0_i32 = arith.constant 0 : i32
    %c0_i32_0 = arith.constant 0 : i32
    %c0_i32_1 = arith.constant 0 : i32
    return %c0_i32, %c0_i32_0 : i32, i32
  }
  func.func @transform_3(%arg0: i32) -> (i32, i32) {
    %c0_i32 = arith.constant 0 : i32
    %c0_i32_0 = arith.constant 0 : i32
    %c0_i32_1 = arith.constant 0 : i32
    return %c0_i32, %c0_i32_0 : i32, i32
  }
  func.func @transform_4(%arg0: i32) -> (i32, i32) {
    %c0_i32 = arith.constant 0 : i32
    %c0_i32_0 = arith.constant 0 : i32
    %c0_i32_1 = arith.constant 0 : i32
    return %c0_i32, %c0_i32_0 : i32, i32
  }
  func.func @transform_5(%arg0: i32) -> (i32, i32, i32) {
    %c0_i32 = arith.constant 0 : i32
    %c0_i32_0 = arith.constant 0 : i32
    %c0_i32_1 = arith.constant 0 : i32
    return %arg0, %c0_i32, %c0_i32_0 : i32, i32, i32
  }
}

</mosaic_0001>

<llo_original>
// kernel: tpu_custom_call.1
$region0: #{tpu_custom_call.1}
  #allocation0 [shape = 'u32[]', space=smem, size = 0x4, offset = 0x4, fixed_abs, tag = 'smem constant byte address 0x4 - core index']
  #allocation1 [shape = 'u32[144,128]{1,0:T(1,128)}', space=vmem, size = 0x12000, scoped, tag = 'internal scratch']
  #allocation2 [shape = 'f32[12,128]{1,0:T(8,128)}', space=vmem, size = 0x2000, scoped, tag = 'scratch operand']
  %s0 = inlined_call_operand.vmem [shape: f32[2,12,128], index: 0, kind: input, shape index: {}]
  %s1 = inlined_call_operand.hbm [shape: f32[512,768], index: 1, kind: input, shape index: {}]
  %s2 = inlined_call_operand.hbm [shape: f32[768,512], index: 2, kind: input, shape index: {}]
  %s3 = inlined_call_operand.hbm [shape: f32[1,384], index: 3, kind: input, shape index: {}]
  %s4 = inlined_call_operand.hbm [shape: f32[12,128], index: 4, kind: input, shape index: {}]
  %s5 = inlined_call_operand.vmem [shape: f32[2,12,128], index: 5, kind: output, shape index: {}]
  %s6 = sld [smem:[#allocation0]]
  $region69: #{tpu_custom_call.1} parent=0
    _
  %s8 = ssub.s32 1, %s6
  %s9 = scalar_select 0, %s8, %s6
  $region1: #{tpu_custom_call.1} parent=0
    #allocation3 [shape = 'u8[1572864]{0}', space=vmem, size = 0x180000, scoped, tag = 'input window, operand 1, single buffered']
    #allocation4 [shape = 's32[2]{0}', space=sflag, size = 0x8, scoped, tag = 'scoped memory for tpu_custom_call.1']
    #allocation5 [shape = 'u8[1572864]{0}', space=vmem, size = 0x180000, scoped, tag = 'input window, operand 2, single buffered']
    #allocation6 [shape = 's32[1]{0}', space=sflag, size = 0x4, scoped, tag = 'scoped memory for tpu_custom_call.1']
    #allocation7 [shape = 'u8[1536]{0}', space=vmem, size = 0x800, scoped, tag = 'input window, operand 3, single buffered']
    #allocation8 [shape = 'u8[8192]{0}', space=vmem, size = 0x2000, scoped, tag = 'input window, operand 4, single buffered']
    #allocation9 [shape = 's32[1]{0}', space=sflag, size = 0x4, scoped, tag = 'scoped memory for tpu_custom_call.1']
    %10 = vsyncpa [#allocation4], 0
    %11 = vsyncpa [#allocation6], 0
    %12 = vsyncpa [#allocation9], 0
    loop: start=0, step=1, limit=4
    $region2: #{tpu_custom_call.1} parent=1 // loop_pre_header
      _
    $region3: #{tpu_custom_call.1} parent=1 // loop_header
      %s14 = sphi 0, %s18
      %p15 = scmp.ge.s32.totalorder %s14, 4
      %s24 = sphi 0, %s26
      %s27 = sphi 0, %s24
      %s28 = sphi 0, %s27
      %s44 = sphi 0, %s28
      %s48 = sphi 0, %s48
      %s50 = sphi 0, %s48
      %s51 = sphi 0, %s50
      %s65 = sphi 0, %s51
      %s69 = sphi 0, %s69
      %s71 = sphi 0, %s69
      %s72 = sphi 0, %s71
      %s86 = sphi 0, %s72
      %s90 = sphi 0, %s90
      %s92 = sphi 0, %s90
      %s93 = sphi 0, %s92
      %s107 = sphi 0, %s93
      %s111 = sphi 0, %s111
      %s113 = sphi 0, %s111
      %s114 = sphi 0, %s113
      %s128 = sphi 0, %s114
      %s134 = sphi 0, %s136
      %s137 = sphi 0, %s134
      %s138 = sphi 0, %s137
      %s154 = sphi 0, %s138
    $region4: #{tpu_custom_call.1} parent=1 // loop_header_branch
      %17 = sbr.rel (%p15) target = $region8
    $region5: #{tpu_custom_call.1} parent=1 // loop_body
      %s19 = ssub.s32 %s14, 1
      %s20 = ssub.s32 %s14, 2
      %s21 = sadd.s32 %s14, 1
      %s22 = ssub.s32 %s14, %s21
      %p23 = scmp.eq.s32.totalorder %s22, 0
      %s25 = sadd.s32 %s24, 1
      %s26 = scalar_select %p23, %s24, %s25
      %p29 = pneg %p23
      %p30 = scmp.eq.s32.totalorder %s14, 1
      %p31 = por %p29, %p30
      %p32 = scmp.ne.s32.totalorder %s24, %s27
      %p33 = scmp.eq.s32.totalorder %s14, 0
      %p34 = por %p32, %p33
      %p35 = scmp.ne.s32.totalorder %s24, %s27
      %p36 = scmp.eq.s32.totalorder %s19, 1
      %p37 = por %p35, %p36
      %p38 = scmp.ne.s32.totalorder %s27, %s28
      %p39 = scmp.eq.s32.totalorder %s19, 0
      %p40 = por %p38, %p39
      %p41 = scmp.ne.s32.totalorder %s27, %s28
      %p42 = scmp.eq.s32.totalorder %s20, 1
      %p43 = por %p41, %p42
      %p45 = scmp.ne.s32.totalorder %s28, %s44
      %p46 = scmp.eq.s32.totalorder %s20, 0
      %p47 = por %p45, %p46
      %s49 = sadd.s32 %s48, 1
      %p52 = scmp.eq.s32.totalorder %s14, 1
      %p53 = scmp.ne.s32.totalorder %s48, %s50
      %p54 = scmp.eq.s32.totalorder %s14, 0
      %p55 = por %p53, %p54
      %p56 = scmp.ne.s32.totalorder %s48, %s50
      %p57 = scmp.eq.s32.totalorder %s19, 1
      %p58 = por %p56, %p57
      %p59 = scmp.ne.s32.totalorder %s50, %s51
      %p60 = scmp.eq.s32.totalorder %s19, 0
      %p61 = por %p59, %p60
      %p62 = scmp.ne.s32.totalorder %s50, %s51
      %p63 = scmp.eq.s32.totalorder %s20, 1
      %p64 = por %p62, %p63
      %p66 = scmp.ne.s32.totalorder %s51, %s65
      %p67 = scmp.eq.s32.totalorder %s20, 0
      %p68 = por %p66, %p67
      %s70 = sadd.s32 %s69, 1
      %p73 = scmp.eq.s32.totalorder %s14, 1
      %p74 = scmp.ne.s32.totalorder %s69, %s71
      %p75 = scmp.eq.s32.totalorder %s14, 0
      %p76 = por %p74, %p75
      %p77 = scmp.ne.s32.totalorder %s69, %s71
      %p78 = scmp.eq.s32.totalorder %s19, 1
      %p79 = por %p77, %p78
      %p80 = scmp.ne.s32.totalorder %s71, %s72
      %p81 = scmp.eq.s32.totalorder %s19, 0
      %p82 = por %p80, %p81
      %p83 = scmp.ne.s32.totalorder %s71, %s72
      %p84 = scmp.eq.s32.totalorder %s20, 1
      %p85 = por %p83, %p84
      %p87 = scmp.ne.s32.totalorder %s72, %s86
      %p88 = scmp.eq.s32.totalorder %s20, 0
      %p89 = por %p87, %p88
      %s91 = sadd.s32 %s90, 1
      %p94 = scmp.eq.s32.totalorder %s14, 1
      %p95 = scmp.ne.s32.totalorder %s90, %s92
      %p96 = scmp.eq.s32.totalorder %s14, 0
      %p97 = por %p95, %p96
      %p98 = scmp.ne.s32.totalorder %s90, %s92
      %p99 = scmp.eq.s32.totalorder %s19, 1
      %p100 = por %p98, %p99
      %p101 = scmp.ne.s32.totalorder %s92, %s93
      %p102 = scmp.eq.s32.totalorder %s19, 0
      %p103 = por %p101, %p102
      %p104 = scmp.ne.s32.totalorder %s92, %s93
      %p105 = scmp.eq.s32.totalorder %s20, 1
      %p106 = por %p104, %p105
      %p108 = scmp.ne.s32.totalorder %s93, %s107
      %p109 = scmp.eq.s32.totalorder %s20, 0
      %p110 = por %p108, %p109
      %s112 = sadd.s32 %s111, 1
      %p115 = scmp.eq.s32.totalorder %s14, 1
      %p116 = scmp.ne.s32.totalorder %s111, %s113
      %p117 = scmp.eq.s32.totalorder %s14, 0
      %p118 = por %p116, %p117
      %p119 = scmp.ne.s32.totalorder %s111, %s113
      %p120 = scmp.eq.s32.totalorder %s19, 1
      %p121 = por %p119, %p120
      %p122 = scmp.ne.s32.totalorder %s113, %s114
      %p123 = scmp.eq.s32.totalorder %s19, 0
      %p124 = por %p122, %p123
      %p125 = scmp.ne.s32.totalorder %s113, %s114
      %p126 = scmp.eq.s32.totalorder %s20, 1
      %p127 = por %p125, %p126
      %p129 = scmp.ne.s32.totalorder %s114, %s128
      %p130 = scmp.eq.s32.totalorder %s20, 0
      %p131 = por %p129, %p130
      %s132 = ssub.s32 %s14, %s21
      %p133 = scmp.eq.s32.totalorder %s132, 0
      %s135 = sadd.s32 %s134, 1
      %s136 = scalar_select %p133, %s134, %s135
      %p139 = pneg %p133
      %p140 = scmp.eq.s32.totalorder %s14, 1
      %p141 = por %p139, %p140
      %p142 = scmp.ne.s32.totalorder %s134, %s137
      %p143 = scmp.eq.s32.totalorder %s14, 0
      %p144 = por %p142, %p143
      %p145 = scmp.ne.s32.totalorder %s134, %s137
      %p146 = scmp.eq.s32.totalorder %s19, 1
      %p147 = por %p145, %p146
      %p148 = scmp.ne.s32.totalorder %s137, %s138
      %p149 = scmp.eq.s32.totalorder %s19, 0
      %p150 = por %p148, %p149
      %p151 = scmp.ne.s32.totalorder %s137, %s138
      %p152 = scmp.eq.s32.totalorder %s20, 1
      %p153 = por %p151, %p152
      %p155 = scmp.ne.s32.totalorder %s138, %s154
      %p156 = scmp.eq.s32.totalorder %s20, 0
      %p157 = por %p155, %p156
      %p158 = scmp.le.s32.totalorder 1, %s14
      %p159 = scmp.lt.s32.totalorder %s14, 3
      %p160 = pnand %p158, %p159
      %p161 = pneg %p160
      // Predicated region
      $region9: #{tpu_custom_call.1} parent=5 // pred_check
        _
      $region10: #{tpu_custom_call.1} parent=5 // pred_check_branch
        %163 = sbr.rel (%p160) target = $region12
      $region11: #{tpu_custom_call.1} parent=5 // pred_region
        %s164 = ssub.s32 %s14, 1
        // Predicated region
        $region13: #{tpu_custom_call.1} parent=11 // pred_check
          %p165 = pneg %p61
        $region14: #{tpu_custom_call.1} parent=11 // pred_check_branch
          %167 = sbr.rel (%p165) target = $region16
        $region15: #{tpu_custom_call.1} parent=11 // pred_region
          %s169 = ssub.s32 49152, 49152
          %170 = vsyncadd [#allocation4], %s169
          %s171 = sshll.u32 [#allocation3], 4
          %s172 = int_to_ptr.vmem [resolvable:$true] %s171
          %177 = dma.hbm_to_vmem [thread:$0]  %s1, 49152, %s172, [#allocation4], 768, 768, 48
        $region16: #{tpu_custom_call.1} parent=11 // pred_fallthru
          _
        // Predicated region
        $region17: #{tpu_custom_call.1} parent=11 // pred_check
          %p178 = pneg %p82
        $region18: #{tpu_custom_call.1} parent=11 // pred_check_branch
          %180 = sbr.rel (%p178) target = $region20
        $region19: #{tpu_custom_call.1} parent=11 // pred_region
          %s182 = ssub.s32 49152, 49152
          %183 = vsyncadd [#allocation6], %s182
          %s184 = sshll.u32 [#allocation5], 4
          %s185 = int_to_ptr.vmem [resolvable:$true] %s184
          %190 = dma.hbm_to_vmem [thread:$0]  %s2, 49152, %s185, [#allocation6], 512, 512, 32
        $region20: #{tpu_custom_call.1} parent=11 // pred_fallthru
          _
        // Predicated region
        $region21: #{tpu_custom_call.1} parent=11 // pred_check
          %p191 = pneg %p103
        $region22: #{tpu_custom_call.1} parent=11 // pred_check_branch
          %193 = sbr.rel (%p191) target = $region24
        $region23: #{tpu_custom_call.1} parent=11 // pred_region
          %s195 = ssub.s32 48, 48
          %196 = vsyncadd [#allocation6], %s195
          %s198 = sshll.u32 [#allocation7], 4
          %s199 = int_to_ptr.vmem [resolvable:$true] %s198
          %201 = dma.hbm_to_vmem [thread:$0]  %s3, 48, %s199, [#allocation6]
        $region24: #{tpu_custom_call.1} parent=11 // pred_fallthru
          _
        // Predicated region
        $region25: #{tpu_custom_call.1} parent=11 // pred_check
          %p202 = pneg %p124
        $region26: #{tpu_custom_call.1} parent=11 // pred_check_branch
          %204 = sbr.rel (%p202) target = $region28
        $region27: #{tpu_custom_call.1} parent=11 // pred_region
          %s206 = ssub.s32 256, 256
          %207 = vsyncadd [#allocation9], %s206
          %s208 = sshll.u32 [#allocation8], 4
          %s209 = int_to_ptr.vmem [resolvable:$true] %s208
          %214 = dma.hbm_to_vmem [thread:$0]  %s4, 256, %s209, [#allocation9], 128, 128, 8
        $region28: #{tpu_custom_call.1} parent=11 // pred_fallthru
          _
      $region12: #{tpu_custom_call.1} parent=5 // pred_fallthru
        _
      %p215 = scmp.lt.s32.totalorder %s14, 2
      // Predicated region
      $region29: #{tpu_custom_call.1} parent=5 // pred_check
        %p216 = pneg %p215
      $region30: #{tpu_custom_call.1} parent=5 // pred_check_branch
        %218 = sbr.rel (%p216) target = $region32
      $region31: #{tpu_custom_call.1} parent=5 // pred_region
        // Predicated region
        $region33: #{tpu_custom_call.1} parent=31 // pred_check
          %p219 = pneg %p34
        $region34: #{tpu_custom_call.1} parent=31 // pred_check_branch
          %221 = sbr.rel (%p219) target = $region36
        $region35: #{tpu_custom_call.1} parent=31 // pred_region
          %p222 = scmp.lt.s32.totalorder %s14, 1
          %s223 = scalar_select %p222, %s14, 1
          %s224 = smul.addr %s223, 2
          %s225 = smul.addr %s224, 8
          %s226 = scalar_lea.vmem %s0, %s225
        $region36: #{tpu_custom_call.1} parent=31 // pred_fallthru
          _
      $region32: #{tpu_custom_call.1} parent=5 // pred_fallthru
        _
      %p227 = scmp.le.s32.totalorder 1, %s14
      %p228 = scmp.lt.s32.totalorder %s14, 3
      %p229 = pnand %p227, %p228
      %p230 = pneg %p229
      // Predicated region
      $region37: #{tpu_custom_call.1} parent=5 // pred_check
        _
      $region38: #{tpu_custom_call.1} parent=5 // pred_check_branch
        %232 = sbr.rel (%p229) target = $region40
      $region39: #{tpu_custom_call.1} parent=5 // pred_region
        %s233 = ssub.s32 %s14, 1
        // Predicated region
        $region41: #{tpu_custom_call.1} parent=39 // pred_check
          %p234 = pneg %p61
        $region42: #{tpu_custom_call.1} parent=39 // pred_check_branch
          %236 = sbr.rel (%p234) target = $region44
        $region43: #{tpu_custom_call.1} parent=39 // pred_region
          %237 = dma.done [#allocation4], 49152
        $region44: #{tpu_custom_call.1} parent=39 // pred_fallthru
          _
        // Predicated region
        $region45: #{tpu_custom_call.1} parent=39 // pred_check
          %p238 = pneg %p82
        $region46: #{tpu_custom_call.1} parent=39 // pred_check_branch
          %240 = sbr.rel (%p238) target = $region48
        $region47: #{tpu_custom_call.1} parent=39 // pred_region
          %241 = dma.done [#allocation6], 49152
        $region48: #{tpu_custom_call.1} parent=39 // pred_fallthru
          _
        // Predicated region
        $region49: #{tpu_custom_call.1} parent=39 // pred_check
          %p242 = pneg %p103
        $region50: #{tpu_custom_call.1} parent=39 // pred_check_branch
          %244 = sbr.rel (%p242) target = $region52
        $region51: #{tpu_custom_call.1} parent=39 // pred_region
          %245 = dma.done [#allocation6], 48
        $region52: #{tpu_custom_call.1} parent=39 // pred_fallthru
          _
        // Predicated region
        $region53: #{tpu_custom_call.1} parent=39 // pred_check
          %p246 = pneg %p124
        $region54: #{tpu_custom_call.1} parent=39 // pred_check_branch
          %248 = sbr.rel (%p246) target = $region56
        $region55: #{tpu_custom_call.1} parent=39 // pred_region
          %249 = dma.done [#allocation9], 256
        $region56: #{tpu_custom_call.1} parent=39 // pred_fallthru
          _
        %p250 = scmp.lt.s32.totalorder %s19, 1
        %s251 = scalar_select %p250, %s19, 1
        %s252 = smul.addr %s251, 2
        %s253 = smul.addr %s252, 8
        %s254 = scalar_lea.vmem %s0, %s253
        %p255 = pneg %p40
        %p256 = pneg %p37
        %p257 = pneg %p61
        %p258 = pneg %p58
        %p259 = pneg %p82
        %p260 = pneg %p79
        %p261 = pneg %p103
        %p262 = pneg %p100
        %p263 = pneg %p124
        %p264 = pneg %p121
        %p265 = pneg %p150
        %p266 = pneg %p147
        %p267 = scmp.lt.s32.totalorder %s19, 1
        %s268 = scalar_select %p267, %s19, 1
        %s269 = smul.addr %s268, 2
        %s270 = smul.addr %s269, 8
        %s271 = scalar_lea.vmem %s5, %s270
        %p272 = scmp.lt.s32.totalorder %s19, 1
        %s273 = scalar_select %p272, %s19, 1
        %s274 = smul.addr %s273, 2
        %s275 = smul.addr %s274, 8
        %s276 = scalar_lea.vmem %s0, %s275
        %p277 = scmp.lt.s32.totalorder %s19, 1
        %s278 = scalar_select %p277, %s19, 1
        %s279 = smul.addr %s278, 2
        %s280 = smul.addr %s279, 8
        %s281 = scalar_lea.vmem %s5, %s280
        %v282 = vld [vmem:[%s276] sm:$0xff]
        %v283 = vld [vmem:[%s276 + $0x8] sm:$0xf]
        %v284 = vld [vmem:[#allocation3] sm:$0xff]
        %v285 = vld [vmem:[#allocation3 + $0x8] sm:$0xff]
        %v286 = vld [vmem:[#allocation3 + $0x10] sm:$0xff]
        %v287 = vld [vmem:[#allocation3 + $0x18] sm:$0xff]
        %v288 = vld [vmem:[#allocation3 + $0x20] sm:$0xff]
        %v289 = vld [vmem:[#allocation3 + $0x28] sm:$0xff]
        %v290 = vld [vmem:[#allocation3 + $0x30] sm:$0xff]
        %v291 = vld [vmem:[#allocation3 + $0x38] sm:$0xff]
        %v292 = vld [vmem:[#allocation3 + $0x40] sm:$0xff]
        %v293 = vld [vmem:[#allocation3 + $0x48] sm:$0xff]
        %v294 = vld [vmem:[#allocation3 + $0x50] sm:$0xff]
        %v295 = vld [vmem:[#allocation3 + $0x58] sm:$0xff]
        %v296 = vld [vmem:[#allocation3 + $0x60] sm:$0xff]
        %v297 = vld [vmem:[#allocation3 + $0x68] sm:$0xff]
        %v298 = vld [vmem:[#allocation3 + $0x70] sm:$0xff]
        %v299 = vld [vmem:[#allocation3 + $0x78] sm:$0xff]
        %v300 = vld [vmem:[#allocation3 + $0x80] sm:$0xff]
        %v301 = vld [vmem:[#allocation3 + $0x88] sm:$0xff]
        %v302 = vld [vmem:[#allocation3 + $0x90] sm:$0xff]
        %v303 = vld [vmem:[#allocation3 + $0x98] sm:$0xff]
        %v304 = vld [vmem:[#allocation3 + $0xa0] sm:$0xff]
        %v305 = vld [vmem:[#allocation3 + $0xa8] sm:$0xff]
        %v306 = vld [vmem:[#allocation3 + $0xb0] sm:$0xff]
        %v307 = vld [vmem:[#allocation3 + $0xb8] sm:$0xff]
        %v308 = vld [vmem:[#allocation3 + $0xc0] sm:$0xff]
        %v309 = vld [vmem:[#allocation3 + $0xc8] sm:$0xff]
        %v310 = vld [vmem:[#allocation3 + $0xd0] sm:$0xff]
        %v311 = vld [vmem:[#allocation3 + $0xd8] sm:$0xff]
        %v312 = vld [vmem:[#allocation3 + $0xe0] sm:$0xff]
        %v313 = vld [vmem:[#allocation3 + $0xe8] sm:$0xff]
        %v314 = vld [vmem:[#allocation3 + $0xf0] sm:$0xff]
        %v315 = vld [vmem:[#allocation3 + $0xf8] sm:$0xff]
        %v316 = vld [vmem:[#allocation3 + $0x100] sm:$0xff]
        %v317 = vld [vmem:[#allocation3 + $0x108] sm:$0xff]
        %v318 = vld [vmem:[#allocation3 + $0x110] sm:$0xff]
        %v319 = vld [vmem:[#allocation3 + $0x118] sm:$0xff]
        %v320 = vld [vmem:[#allocation3 + $0x120] sm:$0xff]
        %v321 = vld [vmem:[#allocation3 + $0x128] sm:$0xff]
        %v322 = vld [vmem:[#allocation3 + $0x130] sm:$0xff]
        %v323 = vld [vmem:[#allocation3 + $0x138] sm:$0xff]
        %v324 = vld [vmem:[#allocation3 + $0x140] sm:$0xff]
        %v325 = vld [vmem:[#allocation3 + $0x148] sm:$0xff]
        %v326 = vld [vmem:[#allocation3 + $0x150] sm:$0xff]
        %v327 = vld [vmem:[#allocation3 + $0x158] sm:$0xff]
        %v328 = vld [vmem:[#allocation3 + $0x160] sm:$0xff]
        %v329 = vld [vmem:[#allocation3 + $0x168] sm:$0xff]
        %v330 = vld [vmem:[#allocation3 + $0x170] sm:$0xff]
        %v331 = vld [vmem:[#allocation3 + $0x178] sm:$0xff]
        %v332 = vld [vmem:[#allocation3 + $0x180] sm:$0xff]
        %v333 = vld [vmem:[#allocation3 + $0x188] sm:$0xff]
        %v334 = vld [vmem:[#allocation3 + $0x190] sm:$0xff]
        %v335 = vld [vmem:[#allocation3 + $0x198] sm:$0xff]
        %v336 = vld [vmem:[#allocation3 + $0x1a0] sm:$0xff]
        %v337 = vld [vmem:[#allocation3 + $0x1a8] sm:$0xff]
        %v338 = vld [vmem:[#allocation3 + $0x1b0] sm:$0xff]
        %v339 = vld [vmem:[#allocation3 + $0x1b8] sm:$0xff]
        %v340 = vld [vmem:[#allocation3 + $0x1c0] sm:$0xff]
        %v341 = vld [vmem:[#allocation3 + $0x1c8] sm:$0xff]
        %v342 = vld [vmem:[#allocation3 + $0x1d0] sm:$0xff]
        %v343 = vld [vmem:[#allocation3 + $0x1d8] sm:$0xff]
        %v344 = vld [vmem:[#allocation3 + $0x1e0] sm:$0xff]
        %v345 = vld [vmem:[#allocation3 + $0x1e8] sm:$0xff]
        %v346 = vld [vmem:[#allocation3 + $0x1f0] sm:$0xff]
        %v347 = vld [vmem:[#allocation3 + $0x1f8] sm:$0xff]
        %v348 = vld [vmem:[#allocation3 + $0x200] sm:$0xff]
        %v349 = vld [vmem:[#allocation3 + $0x208] sm:$0xff]
        %v350 = vld [vmem:[#allocation3 + $0x210] sm:$0xff]
        %v351 = vld [vmem:[#allocation3 + $0x218] sm:$0xff]
        %v352 = vld [vmem:[#allocation3 + $0x220] sm:$0xff]
        %v353 = vld [vmem:[#allocation3 + $0x228] sm:$0xff]
        %v354 = vld [vmem:[#allocation3 + $0x230] sm:$0xff]
        %v355 = vld [vmem:[#allocation3 + $0x238] sm:$0xff]
        %v356 = vld [vmem:[#allocation3 + $0x240] sm:$0xff]
        %v357 = vld [vmem:[#allocation3 + $0x248] sm:$0xff]
        %v358 = vld [vmem:[#allocation3 + $0x250] sm:$0xff]
        %v359 = vld [vmem:[#allocation3 + $0x258] sm:$0xff]
        %v360 = vld [vmem:[#allocation3 + $0x260] sm:$0xff]
        %v361 = vld [vmem:[#allocation3 + $0x268] sm:$0xff]
        %v362 = vld [vmem:[#allocation3 + $0x270] sm:$0xff]
        %v363 = vld [vmem:[#allocation3 + $0x278] sm:$0xff]
        %v364 = vld [vmem:[#allocation3 + $0x280] sm:$0xff]
        %v365 = vld [vmem:[#allocation3 + $0x288] sm:$0xff]
        %v366 = vld [vmem:[#allocation3 + $0x290] sm:$0xff]
        %v367 = vld [vmem:[#allocation3 + $0x298] sm:$0xff]
        %v368 = vld [vmem:[#allocation3 + $0x2a0] sm:$0xff]
        %v369 = vld [vmem:[#allocation3 + $0x2a8] sm:$0xff]
        %v370 = vld [vmem:[#allocation3 + $0x2b0] sm:$0xff]
        %v371 = vld [vmem:[#allocation3 + $0x2b8] sm:$0xff]
        %v372 = vld [vmem:[#allocation3 + $0x2c0] sm:$0xff]
        %v373 = vld [vmem:[#allocation3 + $0x2c8] sm:$0xff]
        %v374 = vld [vmem:[#allocation3 + $0x2d0] sm:$0xff]
        %v375 = vld [vmem:[#allocation3 + $0x2d8] sm:$0xff]
        %v376 = vld [vmem:[#allocation3 + $0x2e0] sm:$0xff]
        %v377 = vld [vmem:[#allocation3 + $0x2e8] sm:$0xff]
        %v378 = vld [vmem:[#allocation3 + $0x2f0] sm:$0xff]
        %v379 = vld [vmem:[#allocation3 + $0x2f8] sm:$0xff]
        %v380 = vld [vmem:[#allocation3 + $0x300] sm:$0xff]
        %v381 = vld [vmem:[#allocation3 + $0x308] sm:$0xff]
        %v382 = vld [vmem:[#allocation3 + $0x310] sm:$0xff]
        %v383 = vld [vmem:[#allocation3 + $0x318] sm:$0xff]
        %v384 = vld [vmem:[#allocation3 + $0x320] sm:$0xff]
        %v385 = vld [vmem:[#allocation3 + $0x328] sm:$0xff]
        %v386 = vld [vmem:[#allocation3 + $0x330] sm:$0xff]
        %v387 = vld [vmem:[#allocation3 + $0x338] sm:$0xff]
        %v388 = vld [vmem:[#allocation3 + $0x340] sm:$0xff]
        %v389 = vld [vmem:[#allocation3 + $0x348] sm:$0xff]
        %v390 = vld [vmem:[#allocation3 + $0x350] sm:$0xff]
        %v391 = vld [vmem:[#allocation3 + $0x358] sm:$0xff]
        %v392 = vld [vmem:[#allocation3 + $0x360] sm:$0xff]
        %v393 = vld [vmem:[#allocation3 + $0x368] sm:$0xff]
        %v394 = vld [vmem:[#allocation3 + $0x370] sm:$0xff]
        %v395 = vld [vmem:[#allocation3 + $0x378] sm:$0xff]
        %v396 = vld [vmem:[#allocation3 + $0x380] sm:$0xff]
        %v397 = vld [vmem:[#allocation3 + $0x388] sm:$0xff]
        %v398 = vld [vmem:[#allocation3 + $0x390] sm:$0xff]
        %v399 = vld [vmem:[#allocation3 + $0x398] sm:$0xff]
        %v400 = vld [vmem:[#allocation3 + $0x3a0] sm:$0xff]
        %v401 = vld [vmem:[#allocation3 + $0x3a8] sm:$0xff]
        %v402 = vld [vmem:[#allocation3 + $0x3b0] sm:$0xff]
        %v403 = vld [vmem:[#allocation3 + $0x3b8] sm:$0xff]
        %v404 = vld [vmem:[#allocation3 + $0x3c0] sm:$0xff]
        %v405 = vld [vmem:[#allocation3 + $0x3c8] sm:$0xff]
        %v406 = vld [vmem:[#allocation3 + $0x3d0] sm:$0xff]
        %v407 = vld [vmem:[#allocation3 + $0x3d8] sm:$0xff]
        %v408 = vld [vmem:[#allocation3 + $0x3e0] sm:$0xff]
        %v409 = vld [vmem:[#allocation3 + $0x3e8] sm:$0xff]
        %v410 = vld [vmem:[#allocation3 + $0x3f0] sm:$0xff]
        %v411 = vld [vmem:[#allocation3 + $0x3f8] sm:$0xff]
        %v412 = vld [vmem:[#allocation3 + $0x400] sm:$0xff]
        %v413 = vld [vmem:[#allocation3 + $0x408] sm:$0xff]
        %v414 = vld [vmem:[#allocation3 + $0x410] sm:$0xff]
        %v415 = vld [vmem:[#allocation3 + $0x418] sm:$0xff]
        %v416 = vld [vmem:[#allocation3 + $0x420] sm:$0xff]
        %v417 = vld [vmem:[#allocation3 + $0x428] sm:$0xff]
        %v418 = vld [vmem:[#allocation3 + $0x430] sm:$0xff]
        %v419 = vld [vmem:[#allocation3 + $0x438] sm:$0xff]
        %v420 = vld [vmem:[#allocation3 + $0x440] sm:$0xff]
        %v421 = vld [vmem:[#allocation3 + $0x448] sm:$0xff]
        %v422 = vld [vmem:[#allocation3 + $0x450] sm:$0xff]
        %v423 = vld [vmem:[#allocation3 + $0x458] sm:$0xff]
        %v424 = vld [vmem:[#allocation3 + $0x460] sm:$0xff]
        %v425 = vld [vmem:[#allocation3 + $0x468] sm:$0xff]
        %v426 = vld [vmem:[#allocation3 + $0x470] sm:$0xff]
        %v427 = vld [vmem:[#allocation3 + $0x478] sm:$0xff]
        %v428 = vld [vmem:[#allocation3 + $0x480] sm:$0xff]
        %v429 = vld [vmem:[#allocation3 + $0x488] sm:$0xff]
        %v430 = vld [vmem:[#allocation3 + $0x490] sm:$0xff]
        %v431 = vld [vmem:[#allocation3 + $0x498] sm:$0xff]
        %v432 = vld [vmem:[#allocation3 + $0x4a0] sm:$0xff]
        %v433 = vld [vmem:[#allocation3 + $0x4a8] sm:$0xff]
        %v434 = vld [vmem:[#allocation3 + $0x4b0] sm:$0xff]
        %v435 = vld [vmem:[#allocation3 + $0x4b8] sm:$0xff]
        %v436 = vld [vmem:[#allocation3 + $0x4c0] sm:$0xff]
        %v437 = vld [vmem:[#allocation3 + $0x4c8] sm:$0xff]
        %v438 = vld [vmem:[#allocation3 + $0x4d0] sm:$0xff]
        %v439 = vld [vmem:[#allocation3 + $0x4d8] sm:$0xff]
        %v440 = vld [vmem:[#allocation3 + $0x4e0] sm:$0xff]
        %v441 = vld [vmem:[#allocation3 + $0x4e8] sm:$0xff]
        %v442 = vld [vmem:[#allocation3 + $0x4f0] sm:$0xff]
        %v443 = vld [vmem:[#allocation3 + $0x4f8] sm:$0xff]
        %v444 = vld [vmem:[#allocation3 + $0x500] sm:$0xff]
        %v445 = vld [vmem:[#allocation3 + $0x508] sm:$0xff]
        %v446 = vld [vmem:[#allocation3 + $0x510] sm:$0xff]
        %v447 = vld [vmem:[#allocation3 + $0x518] sm:$0xff]
        %v448 = vld [vmem:[#allocation3 + $0x520] sm:$0xff]
        %v449 = vld [vmem:[#allocation3 + $0x528] sm:$0xff]
        %v450 = vld [vmem:[#allocation3 + $0x530] sm:$0xff]
        %v451 = vld [vmem:[#allocation3 + $0x538] sm:$0xff]
        %v452 = vld [vmem:[#allocation3 + $0x540] sm:$0xff]
        %v453 = vld [vmem:[#allocation3 + $0x548] sm:$0xff]
        %v454 = vld [vmem:[#allocation3 + $0x550] sm:$0xff]
        %v455 = vld [vmem:[#allocation3 + $0x558] sm:$0xff]
        %v456 = vld [vmem:[#allocation3 + $0x560] sm:$0xff]
        %v457 = vld [vmem:[#allocation3 + $0x568] sm:$0xff]
        %v458 = vld [vmem:[#allocation3 + $0x570] sm:$0xff]
        %v459 = vld [vmem:[#allocation3 + $0x578] sm:$0xff]
        %v460 = vld [vmem:[#allocation3 + $0x580] sm:$0xff]
        %v461 = vld [vmem:[#allocation3 + $0x588] sm:$0xff]
        %v462 = vld [vmem:[#allocation3 + $0x590] sm:$0xff]
        %v463 = vld [vmem:[#allocation3 + $0x598] sm:$0xff]
        %v464 = vld [vmem:[#allocation3 + $0x5a0] sm:$0xff]
        %v465 = vld [vmem:[#allocation3 + $0x5a8] sm:$0xff]
        %v466 = vld [vmem:[#allocation3 + $0x5b0] sm:$0xff]
        %v467 = vld [vmem:[#allocation3 + $0x5b8] sm:$0xff]
        %v468 = vld [vmem:[#allocation3 + $0x5c0] sm:$0xff]
        %v469 = vld [vmem:[#allocation3 + $0x5c8] sm:$0xff]
        %v470 = vld [vmem:[#allocation3 + $0x5d0] sm:$0xff]
        %v471 = vld [vmem:[#allocation3 + $0x5d8] sm:$0xff]
        %v472 = vld [vmem:[#allocation3 + $0x5e0] sm:$0xff]
        %v473 = vld [vmem:[#allocation3 + $0x5e8] sm:$0xff]
        %v474 = vld [vmem:[#allocation3 + $0x5f0] sm:$0xff]
        %v475 = vld [vmem:[#allocation3 + $0x5f8] sm:$0xff]
        %vm478 = vcmask 1046528
        %v479 = vrot.slane %v282, 1
        %v480 = vrot.slane %v283, 1
        %v481 = vsel %vm478, %v479, %v480
        %484 = vmatprep.subr.mxu0 %v381
        %485 = vmatpush1.msra.mxu0 %v380
        %486 = vmatprep.subr.mxu0 %v387
        %487 = vmatpush1.msra.mxu0 %v386
        %488 = vmatprep.subr.mxu0 %v393
        %489 = vmatpush1.msra.mxu0 %v392
        %490 = vmatprep.subr.mxu0 %v399
        %491 = vmatpush1.msra.mxu0 %v398
        %492 = vmatprep.subr.mxu0 %v405
        %493 = vmatpush1.msra.mxu0 %v404
        %494 = vmatprep.subr.mxu0 %v411
        %495 = vmatpush1.msra.mxu0 %v410
        %496 = vmatprep.subr.mxu0 %v417
        %497 = vmatpush1.msra.mxu0 %v416
        %498 = vmatprep.subr.mxu0 %v423
        %499 = vmatpush1.msra.mxu0 %v422
        %500 = vmatprep.subr.mxu0 %v429
        %501 = vmatpush1.msra.mxu0 %v428
        %502 = vmatprep.subr.mxu0 %v435
        %503 = vmatpush1.msra.mxu0 %v434
        %504 = vmatprep.subr.mxu0 %v441
        %505 = vmatpush1.msra.mxu0 %v440
        %506 = vmatprep.subr.mxu0 %v447
        %507 = vmatpush1.msra.mxu0 %v446
        %508 = vmatprep.subr.mxu0 %v453
        %509 = vmatpush1.msra.mxu0 %v452
        %510 = vmatprep.subr.mxu0 %v459
        %511 = vmatpush1.msra.mxu0 %v458
        %512 = vmatprep.subr.mxu0 %v465
        %513 = vmatpush1.msra.mxu0 %v464
        %514 = vmatprep.subr.mxu0 %v471
        %515 = vmatpush1.msra.mxu0 %v470
        %516 = vmatprep.subr.mxu0 0.0
        %517 = vmatpush1.msra.mxu0 0.0
        %518 = vmatprep.subr.mxu0 0.0
        %519 = vmatpush1.msra.mxu0 0.0
        %520 = vmatprep.subr.mxu0 0.0
        %521 = vmatpush1.msra.mxu0 0.0
        %522 = vmatprep.subr.mxu0 0.0
        %523 = vmatpush1.msra.mxu0 0.0
        %524 = vmatprep.subr.mxu0 0.0
        %525 = vmatpush1.msra.mxu0 0.0
        %526 = vmatprep.subr.mxu0 0.0
        %527 = vmatpush1.msra.mxu0 0.0
        %528 = vmatprep.subr.mxu0 0.0
        %529 = vmatpush1.msra.mxu0 0.0
        %530 = vmatprep.subr.mxu0 0.0
        %531 = vmatpush1.msra.mxu0 0.0
        %532 = vmatprep.subr.mxu0 0.0
        %533 = vmatpush1.msra.mxu0 0.0
        %534 = vmatprep.subr.mxu0 0.0
        %535 = vmatpush1.msra.mxu0 0.0
        %536 = vmatprep.subr.mxu0 0.0
        %537 = vmatpush1.msra.mxu0 0.0
        %538 = vmatprep.subr.mxu0 0.0
        %539 = vmatpush1.msra.mxu0 0.0
        %540 = vmatprep.subr.mxu0 0.0
        %541 = vmatpush1.msra.mxu0 0.0
        %542 = vmatprep.subr.mxu0 0.0
        %543 = vmatpush1.msra.mxu0 0.0
        %544 = vmatprep.subr.mxu0 0.0
        %545 = vmatpush1.msra.mxu0 0.0
        %546 = vmatprep.subr.mxu0 0.0
        %547 = vmatpush1.msra.mxu0 0.0
        %548 = vmatprep.mubr.f32.mxu0 0.0
        %549 = vmatmul.mubr.f32.gmra.mrb[0].mxu0 %v481
        %v550 = vpop.f32.mrb[0].mxu0
        %v551 = vadd.f32 0.0, %v550
        %v552 = vpop.f32.mrb[0].mxu0
        %v553 = vadd.f32 0.0, %v552
        %554 = vmatprep.mubr.f32.mxu0 0.0
        %555 = vmatmul.mubr.f32.gmra.mrb[0].mxu0 %v480
        %v556 = vpop.f32.mrb[0].mxu0
        %v557 = vadd.f32 0.0, %v556
        %v558 = vpop.f32.mrb[0].mxu0
        %v559 = vadd.f32 0.0, %v558
        %560 = vdwg.mxu0
        %561 = vmatprep.subr.mxu0 %v383
        %562 = vmatpush1.msra.mxu0 %v382
        %563 = vmatprep.subr.mxu0 %v389
        %564 = vmatpush1.msra.mxu0 %v388
        %565 = vmatprep.subr.mxu0 %v395
        %566 = vmatpush1.msra.mxu0 %v394
        %567 = vmatprep.subr.mxu0 %v401
        %568 = vmatpush1.msra.mxu0 %v400
        %569 = vmatprep.subr.mxu0 %v407
        %570 = vmatpush1.msra.mxu0 %v406
        %571 = vmatprep.subr.mxu0 %v413
        %572 = vmatpush1.msra.mxu0 %v412
        %573 = vmatprep.subr.mxu0 %v419
        %574 = vmatpush1.msra.mxu0 %v418
        %575 = vmatprep.subr.mxu0 %v425
        %576 = vmatpush1.msra.mxu0 %v424
        %577 = vmatprep.subr.mxu0 %v431
        %578 = vmatpush1.msra.mxu0 %v430
        %579 = vmatprep.subr.mxu0 %v437
        %580 = vmatpush1.msra.mxu0 %v436
        %581 = vmatprep.subr.mxu0 %v443
        %582 = vmatpush1.msra.mxu0 %v442
        %583 = vmatprep.subr.mxu0 %v449
        %584 = vmatpush1.msra.mxu0 %v448
        %585 = vmatprep.subr.mxu0 %v455
        %586 = vmatpush1.msra.mxu0 %v454
        %587 = vmatprep.subr.mxu0 %v461
        %588 = vmatpush1.msra.mxu0 %v460
        %589 = vmatprep.subr.mxu0 %v467
        %590 = vmatpush1.msra.mxu0 %v466
        %591 = vmatprep.subr.mxu0 %v473
        %592 = vmatpush1.msra.mxu0 %v472
        %593 = vmatprep.subr.mxu0 0.0
        %594 = vmatpush1.msra.mxu0 0.0
        %595 = vmatprep.subr.mxu0 0.0
        %596 = vmatpush1.msra.mxu0 0.0
        %597 = vmatprep.subr.mxu0 0.0
        %598 = vmatpush1.msra.mxu0 0.0
        %599 = vmatprep.subr.mxu0 0.0
        %600 = vmatpush1.msra.mxu0 0.0
        %601 = vmatprep.subr.mxu0 0.0
        %602 = vmatpush1.msra.mxu0 0.0
        %603 = vmatprep.subr.mxu0 0.0
        %604 = vmatpush1.msra.mxu0 0.0
        %605 = vmatprep.subr.mxu0 0.0
        %606 = vmatpush1.msra.mxu0 0.0
        %607 = vmatprep.subr.mxu0 0.0
        %608 = vmatpush1.msra.mxu0 0.0
        %609 = vmatprep.subr.mxu0 0.0
        %610 = vmatpush1.msra.mxu0 0.0
        %611 = vmatprep.subr.mxu0 0.0
        %612 = vmatpush1.msra.mxu0 0.0
        %613 = vmatprep.subr.mxu0 0.0
        %614 = vmatpush1.msra.mxu0 0.0
        %615 = vmatprep.subr.mxu0 0.0
        %616 = vmatpush1.msra.mxu0 0.0
        %617 = vmatprep.subr.mxu0 0.0
        %618 = vmatpush1.msra.mxu0 0.0
        %619 = vmatprep.subr.mxu0 0.0
        %620 = vmatpush1.msra.mxu0 0.0
        %621 = vmatprep.subr.mxu0 0.0
        %622 = vmatpush1.msra.mxu0 0.0
        %623 = vmatprep.subr.mxu0 0.0
        %624 = vmatpush1.msra.mxu0 0.0
        %625 = vmatprep.mubr.f32.mxu0 0.0
        %626 = vmatmul.mubr.f32.gmra.mrb[0].mxu0 %v481
        %v627 = vpop.f32.mrb[0].mxu0
        %v628 = vadd.f32 0.0, %v627
        %v629 = vpop.f32.mrb[0].mxu0
        %v630 = vadd.f32 0.0, %v629
        %631 = vmatprep.mubr.f32.mxu0 0.0
        %632 = vmatmul.mubr.f32.gmra.mrb[0].mxu0 %v480
        %v633 = vpop.f32.mrb[0].mxu0
        %v634 = vadd.f32 0.0, %v633
        %v635 = vpop.f32.mrb[0].mxu0
        %v636 = vadd.f32 0.0, %v635
        %637 = vdwg.mxu0
        %638 = vmatprep.subr.mxu0 %v385
        %639 = vmatpush1.msra.mxu0 %v384
        %640 = vmatprep.subr.mxu0 %v391
        %641 = vmatpush1.msra.mxu0 %v390
        %642 = vmatprep.subr.mxu0 %v397
        %643 = vmatpush1.msra.mxu0 %v396
        %644 = vmatprep.subr.mxu0 %v403
        %645 = vmatpush1.msra.mxu0 %v402
        %646 = vmatprep.subr.mxu0 %v409
        %647 = vmatpush1.msra.mxu0 %v408
        %648 = vmatprep.subr.mxu0 %v415
        %649 = vmatpush1.msra.mxu0 %v414
        %650 = vmatprep.subr.mxu0 %v421
        %651 = vmatpush1.msra.mxu0 %v420
        %652 = vmatprep.subr.mxu0 %v427
        %653 = vmatpush1.msra.mxu0 %v426
        %654 = vmatprep.subr.mxu0 %v433
        %655 = vmatpush1.msra.mxu0 %v432
        %656 = vmatprep.subr.mxu0 %v439
        %657 = vmatpush1.msra.mxu0 %v438
        %658 = vmatprep.subr.mxu0 %v445
        %659 = vmatpush1.msra.mxu0 %v444
        %660 = vmatprep.subr.mxu0 %v451
        %661 = vmatpush1.msra.mxu0 %v450
        %662 = vmatprep.subr.mxu0 %v457
        %663 = vmatpush1.msra.mxu0 %v456
        %664 = vmatprep.subr.mxu0 %v463
        %665 = vmatpush1.msra.mxu0 %v462
        %666 = vmatprep.subr.mxu0 %v469
        %667 = vmatpush1.msra.mxu0 %v468
        %668 = vmatprep.subr.mxu0 %v475
        %669 = vmatpush1.msra.mxu0 %v474
        %670 = vmatprep.subr.mxu0 0.0
        %671 = vmatpush1.msra.mxu0 0.0
        %672 = vmatprep.subr.mxu0 0.0
        %673 = vmatpush1.msra.mxu0 0.0
        %674 = vmatprep.subr.mxu0 0.0
        %675 = vmatpush1.msra.mxu0 0.0
        %676 = vmatprep.subr.mxu0 0.0
        %677 = vmatpush1.msra.mxu0 0.0
        %678 = vmatprep.subr.mxu0 0.0
        %679 = vmatpush1.msra.mxu0 0.0
        %680 = vmatprep.subr.mxu0 0.0
        %681 = vmatpush1.msra.mxu0 0.0
        %682 = vmatprep.subr.mxu0 0.0
        %683 = vmatpush1.msra.mxu0 0.0
        %684 = vmatprep.subr.mxu0 0.0
        %685 = vmatpush1.msra.mxu0 0.0
        %686 = vmatprep.subr.mxu0 0.0
        %687 = vmatpush1.msra.mxu0 0.0
        %688 = vmatprep.subr.mxu0 0.0
        %689 = vmatpush1.msra.mxu0 0.0
        %690 = vmatprep.subr.mxu0 0.0
        %691 = vmatpush1.msra.mxu0 0.0
        %692 = vmatprep.subr.mxu0 0.0
        %693 = vmatpush1.msra.mxu0 0.0
        %694 = vmatprep.subr.mxu0 0.0
        %695 = vmatpush1.msra.mxu0 0.0
        %696 = vmatprep.subr.mxu0 0.0
        %697 = vmatpush1.msra.mxu0 0.0
        %698 = vmatprep.subr.mxu0 0.0
        %699 = vmatpush1.msra.mxu0 0.0
        %700 = vmatprep.subr.mxu0 0.0
        %701 = vmatpush1.msra.mxu0 0.0
        %702 = vmatprep.mubr.f32.mxu0 0.0
        %703 = vmatmul.mubr.f32.gmra.mrb[0].mxu0 %v481
        %v704 = vpop.f32.mrb[0].mxu0
        %v705 = vadd.f32 0.0, %v704
        %v706 = vpop.f32.mrb[0].mxu0
        %v707 = vadd.f32 0.0, %v706
        %708 = vmatprep.mubr.f32.mxu0 0.0
        %709 = vmatmul.mubr.f32.gmra.mrb[0].mxu0 %v480
        %v710 = vpop.f32.mrb[0].mxu0
        %v711 = vadd.f32 0.0, %v710
        %v712 = vpop.f32.mrb[0].mxu0
        %v713 = vadd.f32 0.0, %v712
        %714 = vdwg.mxu0
        %715 = vmatprep.subr.mxu0 %v285
        %716 = vmatpush1.msra.mxu0 %v284
        %717 = vmatprep.subr.mxu0 %v291
        %718 = vmatpush1.msra.mxu0 %v290
        %719 = vmatprep.subr.mxu0 %v297
        %720 = vmatpush1.msra.mxu0 %v296
        %721 = vmatprep.subr.mxu0 %v303
        %722 = vmatpush1.msra.mxu0 %v302
        %723 = vmatprep.subr.mxu0 %v309
        %724 = vmatpush1.msra.mxu0 %v308
        %725 = vmatprep.subr.mxu0 %v315
        %726 = vmatpush1.msra.mxu0 %v314
        %727 = vmatprep.subr.mxu0 %v321
        %728 = vmatpush1.msra.mxu0 %v320
        %729 = vmatprep.subr.mxu0 %v327
        %730 = vmatpush1.msra.mxu0 %v326
        %731 = vmatprep.subr.mxu0 %v333
        %732 = vmatpush1.msra.mxu0 %v332
        %733 = vmatprep.subr.mxu0 %v339
        %734 = vmatpush1.msra.mxu0 %v338
        %735 = vmatprep.subr.mxu0 %v345
        %736 = vmatpush1.msra.mxu0 %v344
        %737 = vmatprep.subr.mxu0 %v351
        %738 = vmatpush1.msra.mxu0 %v350
        %739 = vmatprep.subr.mxu0 %v357
        %740 = vmatpush1.msra.mxu0 %v356
        %741 = vmatprep.subr.mxu0 %v363
        %742 = vmatpush1.msra.mxu0 %v362
        %743 = vmatprep.subr.mxu0 %v369
        %744 = vmatpush1.msra.mxu0 %v368
        %745 = vmatprep.subr.mxu0 %v375
        %746 = vmatpush1.msra.mxu0 %v374
        %747 = vmatprep.subr.mxu0 0.0
        %748 = vmatpush1.msra.mxu0 0.0
        %749 = vmatprep.subr.mxu0 0.0
        %750 = vmatpush1.msra.mxu0 0.0
        %751 = vmatprep.subr.mxu0 0.0
        %752 = vmatpush1.msra.mxu0 0.0
        %753 = vmatprep.subr.mxu0 0.0
        %754 = vmatpush1.msra.mxu0 0.0
        %755 = vmatprep.subr.mxu0 0.0
        %756 = vmatpush1.msra.mxu0 0.0
        %757 = vmatprep.subr.mxu0 0.0
        %758 = vmatpush1.msra.mxu0 0.0
        %759 = vmatprep.subr.mxu0 0.0
        %760 = vmatpush1.msra.mxu0 0.0
        %761 = vmatprep.subr.mxu0 0.0
        %762 = vmatpush1.msra.mxu0 0.0
        %763 = vmatprep.subr.mxu0 0.0
        %764 = vmatpush1.msra.mxu0 0.0
        %765 = vmatprep.subr.mxu0 0.0
        %766 = vmatpush1.msra.mxu0 0.0
        %767 = vmatprep.subr.mxu0 0.0
        %768 = vmatpush1.msra.mxu0 0.0
        %769 = vmatprep.subr.mxu0 0.0
        %770 = vmatpush1.msra.mxu0 0.0
        %771 = vmatprep.subr.mxu0 0.0
        %772 = vmatpush1.msra.mxu0 0.0
        %773 = vmatprep.subr.mxu0 0.0
        %774 = vmatpush1.msra.mxu0 0.0
        %775 = vmatprep.subr.mxu0 0.0
        %776 = vmatpush1.msra.mxu0 0.0
        %777 = vmatprep.subr.mxu0 0.0
        %778 = vmatpush1.msra.mxu0 0.0
        %779 = vmatprep.mubr.f32.mxu0 0.0
        %780 = vmatmul.mubr.f32.gmra.mrb[0].mxu0 %v282
        %v781 = vpop.f32.mrb[0].mxu0
        %v782 = vadd.f32 %v551, %v781
        %v783 = vpop.f32.mrb[0].mxu0
        %v784 = vadd.f32 %v553, %v783
        %785 = vmatprep.mubr.f32.mxu0 0.0
        %786 = vmatmul.mubr.f32.gmra.mrb[0].mxu0 %v283
        %v787 = vpop.f32.mrb[0].mxu0
        %v788 = vadd.f32 %v557, %v787
        %v789 = vpop.f32.mrb[0].mxu0
        %v790 = vadd.f32 %v559, %v789
        %791 = vdwg.mxu0
        %792 = vmatprep.subr.mxu0 %v287
        %793 = vmatpush1.msra.mxu0 %v286
        %794 = vmatprep.subr.mxu0 %v293
        %795 = vmatpush1.msra.mxu0 %v292
        %796 = vmatprep.subr.mxu0 %v299
        %797 = vmatpush1.msra.mxu0 %v298
        %798 = vmatprep.subr.mxu0 %v305
        %799 = vmatpush1.msra.mxu0 %v304
        %800 = vmatprep.subr.mxu0 %v311
        %801 = vmatpush1.msra.mxu0 %v310
        %802 = vmatprep.subr.mxu0 %v317
        %803 = vmatpush1.msra.mxu0 %v316
        %804 = vmatprep.subr.mxu0 %v323
        %805 = vmatpush1.msra.mxu0 %v322
        %806 = vmatprep.subr.mxu0 %v329
        %807 = vmatpush1.msra.mxu0 %v328
        %808 = vmatprep.subr.mxu0 %v335
        %809 = vmatpush1.msra.mxu0 %v334
        %810 = vmatprep.subr.mxu0 %v341
        %811 = vmatpush1.msra.mxu0 %v340
        %812 = vmatprep.subr.mxu0 %v347
        %813 = vmatpush1.msra.mxu0 %v346
        %814 = vmatprep.subr.mxu0 %v353
        %815 = vmatpush1.msra.mxu0 %v352
        %816 = vmatprep.subr.mxu0 %v359
        %817 = vmatpush1.msra.mxu0 %v358
        %818 = vmatprep.subr.mxu0 %v365
        %819 = vmatpush1.msra.mxu0 %v364
        %820 = vmatprep.subr.mxu0 %v371
        %821 = vmatpush1.msra.mxu0 %v370
        %822 = vmatprep.subr.mxu0 %v377
        %823 = vmatpush1.msra.mxu0 %v376
        %824 = vmatprep.subr.mxu0 0.0
        %825 = vmatpush1.msra.mxu0 0.0
        %826 = vmatprep.subr.mxu0 0.0
        %827 = vmatpush1.msra.mxu0 0.0
        %828 = vmatprep.subr.mxu0 0.0
        %829 = vmatpush1.msra.mxu0 0.0
        %830 = vmatprep.subr.mxu0 0.0
        %831 = vmatpush1.msra.mxu0 0.0
        %832 = vmatprep.subr.mxu0 0.0
        %833 = vmatpush1.msra.mxu0 0.0
        %834 = vmatprep.subr.mxu0 0.0
        %835 = vmatpush1.msra.mxu0 0.0
        %836 = vmatprep.subr.mxu0 0.0
        %837 = vmatpush1.msra.mxu0 0.0
        %838 = vmatprep.subr.mxu0 0.0
        %839 = vmatpush1.msra.mxu0 0.0
        %840 = vmatprep.subr.mxu0 0.0
        %841 = vmatpush1.msra.mxu0 0.0
        %842 = vmatprep.subr.mxu0 0.0
        %843 = vmatpush1.msra.mxu0 0.0
        %844 = vmatprep.subr.mxu0 0.0
        %845 = vmatpush1.msra.mxu0 0.0
        %846 = vmatprep.subr.mxu0 0.0
        %847 = vmatpush1.msra.mxu0 0.0
        %848 = vmatprep.subr.mxu0 0.0
        %849 = vmatpush1.msra.mxu0 0.0
        %850 = vmatprep.subr.mxu0 0.0
        %851 = vmatpush1.msra.mxu0 0.0
        %852 = vmatprep.subr.mxu0 0.0
        %853 = vmatpush1.msra.mxu0 0.0
        %854 = vmatprep.subr.mxu0 0.0
        %855 = vmatpush1.msra.mxu0 0.0
        %856 = vmatprep.mubr.f32.mxu0 0.0
        %857 = vmatmul.mubr.f32.gmra.mrb[0].mxu0 %v282
        %v858 = vpop.f32.mrb[0].mxu0
        %v859 = vadd.f32 %v628, %v858
        %v860 = vpop.f32.mrb[0].mxu0
        %v861 = vadd.f32 %v630, %v860
        %862 = vmatprep.mubr.f32.mxu0 0.0
        %863 = vmatmul.mubr.f32.gmra.mrb[0].mxu0 %v283
        %v864 = vpop.f32.mrb[0].mxu0
        %v865 = vadd.f32 %v634, %v864
        %v866 = vpop.f32.mrb[0].mxu0
        %v867 = vadd.f32 %v636, %v866
        %868 = vdwg.mxu0
        %869 = vmatprep.subr.mxu0 %v289
        %870 = vmatpush1.msra.mxu0 %v288
        %871 = vmatprep.subr.mxu0 %v295
        %872 = vmatpush1.msra.mxu0 %v294
        %873 = vmatprep.subr.mxu0 %v301
        %874 = vmatpush1.msra.mxu0 %v300
        %875 = vmatprep.subr.mxu0 %v307
        %876 = vmatpush1.msra.mxu0 %v306
        %877 = vmatprep.subr.mxu0 %v313
        %878 = vmatpush1.msra.mxu0 %v312
        %879 = vmatprep.subr.mxu0 %v319
        %880 = vmatpush1.msra.mxu0 %v318
        %881 = vmatprep.subr.mxu0 %v325
        %882 = vmatpush1.msra.mxu0 %v324
        %883 = vmatprep.subr.mxu0 %v331
        %884 = vmatpush1.msra.mxu0 %v330
        %885 = vmatprep.subr.mxu0 %v337
        %886 = vmatpush1.msra.mxu0 %v336
        %887 = vmatprep.subr.mxu0 %v343
        %888 = vmatpush1.msra.mxu0 %v342
        %889 = vmatprep.subr.mxu0 %v349
        %890 = vmatpush1.msra.mxu0 %v348
        %891 = vmatprep.subr.mxu0 %v355
        %892 = vmatpush1.msra.mxu0 %v354
        %893 = vmatprep.subr.mxu0 %v361
        %894 = vmatpush1.msra.mxu0 %v360
        %895 = vmatprep.subr.mxu0 %v367
        %896 = vmatpush1.msra.mxu0 %v366
        %897 = vmatprep.subr.mxu0 %v373
        %898 = vmatpush1.msra.mxu0 %v372
        %899 = vmatprep.subr.mxu0 %v379
        %900 = vmatpush1.msra.mxu0 %v378
        %901 = vmatprep.subr.mxu0 0.0
        %902 = vmatpush1.msra.mxu0 0.0
        %903 = vmatprep.subr.mxu0 0.0
        %904 = vmatpush1.msra.mxu0 0.0
        %905 = vmatprep.subr.mxu0 0.0
        %906 = vmatpush1.msra.mxu0 0.0
        %907 = vmatprep.subr.mxu0 0.0
        %908 = vmatpush1.msra.mxu0 0.0
        %909 = vmatprep.subr.mxu0 0.0
        %910 = vmatpush1.msra.mxu0 0.0
        %911 = vmatprep.subr.mxu0 0.0
        %912 = vmatpush1.msra.mxu0 0.0
        %913 = vmatprep.subr.mxu0 0.0
        %914 = vmatpush1.msra.mxu0 0.0
        %915 = vmatprep.subr.mxu0 0.0
        %916 = vmatpush1.msra.mxu0 0.0
        %917 = vmatprep.subr.mxu0 0.0
        %918 = vmatpush1.msra.mxu0 0.0
        %919 = vmatprep.subr.mxu0 0.0
        %920 = vmatpush1.msra.mxu0 0.0
        %921 = vmatprep.subr.mxu0 0.0
        %922 = vmatpush1.msra.mxu0 0.0
        %923 = vmatprep.subr.mxu0 0.0
        %924 = vmatpush1.msra.mxu0 0.0
        %925 = vmatprep.subr.mxu0 0.0
        %926 = vmatpush1.msra.mxu0 0.0
        %927 = vmatprep.subr.mxu0 0.0
        %928 = vmatpush1.msra.mxu0 0.0
        %929 = vmatprep.subr.mxu0 0.0
        %930 = vmatpush1.msra.mxu0 0.0
        %931 = vmatprep.subr.mxu0 0.0
        %932 = vmatpush1.msra.mxu0 0.0
        %933 = vmatprep.mubr.f32.mxu0 0.0
        %934 = vmatmul.mubr.f32.gmra.mrb[0].mxu0 %v282
        %v935 = vpop.f32.mrb[0].mxu0
        %v936 = vadd.f32 %v705, %v935
        %v937 = vpop.f32.mrb[0].mxu0
        %v938 = vadd.f32 %v707, %v937
        %939 = vmatprep.mubr.f32.mxu0 0.0
        %940 = vmatmul.mubr.f32.gmra.mrb[0].mxu0 %v283
        %v941 = vpop.f32.mrb[0].mxu0
        %v942 = vadd.f32 %v711, %v941
        %v943 = vpop.f32.mrb[0].mxu0
        %v944 = vadd.f32 %v713, %v943
        %945 = vdwg.mxu0
        %v946 = vld [vmem:[#allocation3 + $0x600] sm:$0xff]
        %v947 = vld [vmem:[#allocation3 + $0x608] sm:$0xff]
        %v948 = vld [vmem:[#allocation3 + $0x610] sm:$0xff]
        %v949 = vld [vmem:[#allocation3 + $0x618] sm:$0xff]
        %v950 = vld [vmem:[#allocation3 + $0x620] sm:$0xff]
        %v951 = vld [vmem:[#allocation3 + $0x628] sm:$0xff]
        %v952 = vld [vmem:[#allocation3 + $0x630] sm:$0xff]
        %v953 = vld [vmem:[#allocation3 + $0x638] sm:$0xff]
        %v954 = vld [vmem:[#allocation3 + $0x640] sm:$0xff]
        %v955 = vld [vmem:[#allocation3 + $0x648] sm:$0xff]
        %v956 = vld [vmem:[#allocation3 + $0x650] sm:$0xff]
        %v957 = vld [vmem:[#allocation3 + $0x658] sm:$0xff]
        %v958 = vld [vmem:[#allocation3 + $0x660] sm:$0xff]
        %v959 = vld [vmem:[#allocation3 + $0x668] sm:$0xff]
        %v960 = vld [vmem:[#allocation3 + $0x670] sm:$0xff]
        %v961 = vld [vmem:[#allocation3 + $0x678] sm:$0xff]
        %v962 = vld [vmem:[#allocation3 + $0x680] sm:$0xff]
        %v963 = vld [vmem:[#allocation3 + $0x688] sm:$0xff]
        %v964 = vld [vmem:[#allocation3 + $0x690] sm:$0xff]
        %v965 = vld [vmem:[#allocation3 + $0x698] sm:$0xff]
        %v966 = vld [vmem:[#allocation3 + $0x6a0] sm:$0xff]
        %v967 = vld [vmem:[#allocation3 + $0x6a8] sm:$0xff]
        %v968 = vld [vmem:[#allocation3 + $0x6b0] sm:$0xff]
        %v969 = vld [vmem:[#allocation3 + $0x6b8] sm:$0xff]
        %v970 = vld [vmem:[#allocation3 + $0x6c0] sm:$0xff]
        %v971 = vld [vmem:[#allocation3 + $0x6c8] sm:$0xff]
        %v972 = vld [vmem:[#allocation3 + $0x6d0] sm:$0xff]
        %v973 = vld [vmem:[#allocation3 + $0x6d8] sm:$0xff]
        %v974 = vld [vmem:[#allocation3 + $0x6e0] sm:$0xff]
        %v975 = vld [vmem:[#allocation3 + $0x6e8] sm:$0xff]
        %v976 = vld [vmem:[#allocation3 + $0x6f0] sm:$0xff]
        %v977 = vld [vmem:[#allocation3 + $0x6f8] sm:$0xff]
        %v978 = vld [vmem:[#allocation3 + $0x700] sm:$0xff]
        %v979 = vld [vmem:[#allocation3 + $0x708] sm:$0xff]
        %v980 = vld [vmem:[#allocation3 + $0x710] sm:$0xff]
        %v981 = vld [vmem:[#allocation3 + $0x718] sm:$0xff]
        %v982 = vld [vmem:[#allocation3 + $0x720] sm:$0xff]
        %v983 = vld [vmem:[#allocation3 + $0x728] sm:$0xff]
        %v984 = vld [vmem:[#allocation3 + $0x730] sm:$0xff]
        %v985 = vld [vmem:[#allocation3 + $0x738] sm:$0xff]
        %v986 = vld [vmem:[#allocation3 + $0x740] sm:$0xff]
        %v987 = vld [vmem:[#allocation3 + $0x748] sm:$0xff]
        %v988 = vld [vmem:[#allocation3 + $0x750] sm:$0xff]
        %v989 = vld [vmem:[#allocation3 + $0x758] sm:$0xff]
        %v990 = vld [vmem:[#allocation3 + $0x760] sm:$0xff]
        %v991 = vld [vmem:[#allocation3 + $0x768] sm:$0xff]
        %v992 = vld [vmem:[#allocation3 + $0x770] sm:$0xff]
        %v993 = vld [vmem:[#allocation3 + $0x778] sm:$0xff]
        %v994 = vld [vmem:[#allocation3 + $0x780] sm:$0xff]
        %v995 = vld [vmem:[#allocation3 + $0x788] sm:$0xff]
        %v996 = vld [vmem:[#allocation3 + $0x790] sm:$0xff]
        %v997 = vld [vmem:[#allocation3 + $0x798] sm:$0xff]
        %v998 = vld [vmem:[#allocation3 + $0x7a0] sm:$0xff]
        %v999 = vld [vmem:[#allocation3 + $0x7a8] sm:$0xff]
        %v1000 = vld [vmem:[#allocation3 + $0x7b0] sm:$0xff]
        %v1001 = vld [vmem:[#allocation3 + $0x7b8] sm:$0xff]
        %v1002 = vld [vmem:[#allocation3 + $0x7c0] sm:$0xff]
        %v1003 = vld [vmem:[#allocation3 + $0x7c8] sm:$0xff]
        %v1004 = vld [vmem:[#allocation3 + $0x7d0] sm:$0xff]
        %v1005 = vld [vmem:[#allocation3 + $0x7d8] sm:$0xff]
        %v1006 = vld [vmem:[#allocation3 + $0x7e0] sm:$0xff]
        %v1007 = vld [vmem:[#allocation3 + $0x7e8] sm:$0xff]
        %v1008 = vld [vmem:[#allocation3 + $0x7f0] sm:$0xff]
        %v1009 = vld [vmem:[#allocation3 + $0x7f8] sm:$0xff]
        %v1010 = vld [vmem:[#allocation3 + $0x800] sm:$0xff]
        %v1011 = vld [vmem:[#allocation3 + $0x808] sm:$0xff]
        %v1012 = vld [vmem:[#allocation3 + $0x810] sm:$0xff]
        %v1013 = vld [vmem:[#allocation3 + $0x818] sm:$0xff]
        %v1014 = vld [vmem:[#allocation3 + $0x820] sm:$0xff]
        %v1015 = vld [vmem:[#allocation3 + $0x828] sm:$0xff]
        %v1016 = vld [vmem:[#allocation3 + $0x830] sm:$0xff]
        %v1017 = vld [vmem:[#allocation3 + $0x838] sm:$0xff]
        %v1018 = vld [vmem:[#allocation3 + $0x840] sm:$0xff]
        %v1019 = vld [vmem:[#allocation3 + $0x848] sm:$0xff]
        %v1020 = vld [vmem:[#allocation3 + $0x850] sm:$0xff]
        %v1021 = vld [vmem:[#allocation3 + $0x858] sm:$0xff]
        %v1022 = vld [vmem:[#allocation3 + $0x860] sm:$0xff]
        %v1023 = vld [vmem:[#allocation3 + $0x868] sm:$0xff]
        %v1024 = vld [vmem:[#allocation3 + $0x870] sm:$0xff]
        %v1025 = vld [vmem:[#allocation3 + $0x878] sm:$0xff]
        %v1026 = vld [vmem:[#allocation3 + $0x880] sm:$0xff]
        %v1027 = vld [vmem:[#allocation3 + $0x888] sm:$0xff]
        %v1028 = vld [vmem:[#allocation3 + $0x890] sm:$0xff]
        %v1029 = vld [vmem:[#allocation3 + $0x898] sm:$0xff]
        %v1030 = vld [vmem:[#allocation3 + $0x8a0] sm:$0xff]
        %v1031 = vld [vmem:[#allocation3 + $0x8a8] sm:$0xff]
        %v1032 = vld [vmem:[#allocation3 + $0x8b0] sm:$0xff]
        %v1033 = vld [vmem:[#allocation3 + $0x8b8] sm:$0xff]
        %v1034 = vld [vmem:[#allocation3 + $0x8c0] sm:$0xff]
        %v1035 = vld [vmem:[#allocation3 + $0x8c8] sm:$0xff]
        %v1036 = vld [vmem:[#allocation3 + $0x8d0] sm:$0xff]
        %v1037 = vld [vmem:[#allocation3 + $0x8d8] sm:$0xff]
        %v1038 = vld [vmem:[#allocation3 + $0x8e0] sm:$0xff]
        %v1039 = vld [vmem:[#allocation3 + $0x8e8] sm:$0xff]
        %v1040 = vld [vmem:[#allocation3 + $0x8f0] sm:$0xff]
        %v1041 = vld [vmem:[#allocation3 + $0x8f8] sm:$0xff]
        %vm1042 = vcmask 1045504
        %v1043 = vrot.slane %v282, 2
        %v1044 = vrot.slane %v283, 2
        %v1045 = vsel %vm1042, %v1043, %v1044
        %1048 = vmatprep.subr.mxu0 %v947
        %1049 = vmatpush1.msra.mxu0 %v946
        %1050 = vmatprep.subr.mxu0 %v953
        %1051 = vmatpush1.msra.mxu0 %v952
        %1052 = vmatprep.subr.mxu0 %v959
        %1053 = vmatpush1.msra.mxu0 %v958
        %1054 = vmatprep.subr.mxu0 %v965
        %1055 = vmatpush1.msra.mxu0 %v964
        %1056 = vmatprep.subr.mxu0 %v971
        %1057 = vmatpush1.msra.mxu0 %v970
        %1058 = vmatprep.subr.mxu0 %v977
        %1059 = vmatpush1.msra.mxu0 %v976
        %1060 = vmatprep.subr.mxu0 %v983
        %1061 = vmatpush1.msra.mxu0 %v982
        %1062 = vmatprep.subr.mxu0 %v989
        %1063 = vmatpush1.msra.mxu0 %v988
        %1064 = vmatprep.subr.mxu0 %v995
        %1065 = vmatpush1.msra.mxu0 %v994
        %1066 = vmatprep.subr.mxu0 %v1001
        %1067 = vmatpush1.msra.mxu0 %v1000
        %1068 = vmatprep.subr.mxu0 %v1007
        %1069 = vmatpush1.msra.mxu0 %v1006
        %1070 = vmatprep.subr.mxu0 %v1013
        %1071 = vmatpush1.msra.mxu0 %v1012
        %1072 = vmatprep.subr.mxu0 %v1019
        %1073 = vmatpush1.msra.mxu0 %v1018
        %1074 = vmatprep.subr.mxu0 %v1025
        %1075 = vmatpush1.msra.mxu0 %v1024
        %1076 = vmatprep.subr.mxu0 %v1031
        %1077 = vmatpush1.msra.mxu0 %v1030
        %1078 = vmatprep.subr.mxu0 %v1037
        %1079 = vmatpush1.msra.mxu0 %v1036
        %1080 = vmatprep.subr.mxu0 0.0
        %1081 = vmatpush1.msra.mxu0 0.0
        %1082 = vmatprep.subr.mxu0 0.0
        %1083 = vmatpush1.msra.mxu0 0.0
        %1084 = vmatprep.subr.mxu0 0.0
        %1085 = vmatpush1.msra.mxu0 0.0
        %1086 = vmatprep.subr.mxu0 0.0
        %1087 = vmatpush1.msra.mxu0 0.0
        %1088 = vmatprep.subr.mxu0 0.0
        %1089 = vmatpush1.msra.mxu0 0.0
        %1090 = vmatprep.subr.mxu0 0.0
        %1091 = vmatpush1.msra.mxu0 0.0
        %1092 = vmatprep.subr.mxu0 0.0
        %1093 = vmatpush1.msra.mxu0 0.0
        %1094 = vmatprep.subr.mxu0 0.0
        %1095 = vmatpush1.msra.mxu0 0.0
        %1096 = vmatprep.subr.mxu0 0.0
        %1097 = vmatpush1.msra.mxu0 0.0
        %1098 = vmatprep.subr.mxu0 0.0
        %1099 = vmatpush1.msra.mxu0 0.0
        %1100 = vmatprep.subr.mxu0 0.0
        %1101 = vmatpush1.msra.mxu0 0.0
        %1102 = vmatprep.subr.mxu0 0.0
        %1103 = vmatpush1.msra.mxu0 0.0
        %1104 = vmatprep.subr.mxu0 0.0
        %1105 = vmatpush1.msra.mxu0 0.0
        %1106 = vmatprep.subr.mxu0 0.0
        %1107 = vmatpush1.msra.mxu0 0.0
        %1108 = vmatprep.subr.mxu0 0.0
        %1109 = vmatpush1.msra.mxu0 0.0
        %1110 = vmatprep.subr.mxu0 0.0
        %1111 = vmatpush1.msra.mxu0 0.0
        %1112 = vmatprep.mubr.f32.mxu0 0.0
        %1113 = vmatmul.mubr.f32.gmra.mrb[0].mxu0 %v1045
        %v1114 = vpop.f32.mrb[0].mxu0
        %v1115 = vadd.f32 0.0, %v1114
        %v1116 = vpop.f32.mrb[0].mxu0
        %v1117 = vadd.f32 0.0, %v1116
        %1118 = vmatprep.mubr.f32.mxu0 0.0
        %1119 = vmatmul.mubr.f32.gmra.mrb[0].mxu0 %v1044
        %v1120 = vpop.f32.mrb[0].mxu0
        %v1121 = vadd.f32 0.0, %v1120
        %v1122 = vpop.f32.mrb[0].mxu0
        %v1123 = vadd.f32 0.0, %v1122
        %1124 = vdwg.mxu0
        %1125 = vmatprep.subr.mxu0 %v949
        %1126 = vmatpush1.msra.mxu0 %v948
        %1127 = vmatprep.subr.mxu0 %v955
        %1128 = vmatpush1.msra.mxu0 %v954
        %1129 = vmatprep.subr.mxu0 %v961
        %1130 = vmatpush1.msra.mxu0 %v960
        %1131 = vmatprep.subr.mxu0 %v967
        %1132 = vmatpush1.msra.mxu0 %v966
        %1133 = vmatprep.subr.mxu0 %v973
        %1134 = vmatpush1.msra.mxu0 %v972
        %1135 = vmatprep.subr.mxu0 %v979
        %1136 = vmatpush1.msra.mxu0 %v978
        %1137 = vmatprep.subr.mxu0 %v985
        %1138 = vmatpush1.msra.mxu0 %v984
        %1139 = vmatprep.subr.mxu0 %v991
        %1140 = vmatpush1.msra.mxu0 %v990
        %1141 = vmatprep.subr.mxu0 %v997
        %1142 = vmatpush1.msra.mxu0 %v996
        %1143 = vmatprep.subr.mxu0 %v1003
        %1144 = vmatpush1.msra.mxu0 %v1002
        %1145 = vmatprep.subr.mxu0 %v1009
        %1146 = vmatpush1.msra.mxu0 %v1008
        %1147 = vmatprep.subr.mxu0 %v1015
        %1148 = vmatpush1.msra.mxu0 %v1014
        %1149 = vmatprep.subr.mxu0 %v1021
        %1150 = vmatpush1.msra.mxu0 %v1020
        %1151 = vmatprep.subr.mxu0 %v1027
        %1152 = vmatpush1.msra.mxu0 %v1026
        %1153 = vmatprep.subr.mxu0 %v1033
        %1154 = vmatpush1.msra.mxu0 %v1032
        %1155 = vmatprep.subr.mxu0 %v1039
        %1156 = vmatpush1.msra.mxu0 %v1038
        %1157 = vmatprep.subr.mxu0 0.0
        %1158 = vmatpush1.msra.mxu0 0.0
        %1159 = vmatprep.subr.mxu0 0.0
        %1160 = vmatpush1.msra.mxu0 0.0
        %1161 = vmatprep.subr.mxu0 0.0
        %1162 = vmatpush1.msra.mxu0 0.0
        %1163 = vmatprep.subr.mxu0 0.0
        %1164 = vmatpush1.msra.mxu0 0.0
        %1165 = vmatprep.subr.mxu0 0.0
        %1166 = vmatpush1.msra.mxu0 0.0
        %1167 = vmatprep.subr.mxu0 0.0
        %1168 = vmatpush1.msra.mxu0 0.0
        %1169 = vmatprep.subr.mxu0 0.0
        %1170 = vmatpush1.msra.mxu0 0.0
        %1171 = vmatprep.subr.mxu0 0.0
        %1172 = vmatpush1.msra.mxu0 0.0
        %1173 = vmatprep.subr.mxu0 0.0
        %1174 = vmatpush1.msra.mxu0 0.0
        %1175 = vmatprep.subr.mxu0 0.0
        %1176 = vmatpush1.msra.mxu0 0.0
        %1177 = vmatprep.subr.mxu0 0.0
        %1178 = vmatpush1.msra.mxu0 0.0
        %1179 = vmatprep.subr.mxu0 0.0
        %1180 = vmatpush1.msra.mxu0 0.0
        %1181 = vmatprep.subr.mxu0 0.0
        %1182 = vmatpush1.msra.mxu0 0.0
        %1183 = vmatprep.subr.mxu0 0.0
        %1184 = vmatpush1.msra.mxu0 0.0
        %1185 = vmatprep.subr.mxu0 0.0
        %1186 = vmatpush1.msra.mxu0 0.0
        %1187 = vmatprep.subr.mxu0 0.0
        %1188 = vmatpush1.msra.mxu0 0.0
        %1189 = vmatprep.mubr.f32.mxu0 0.0
        %1190 = vmatmul.mubr.f32.gmra.mrb[0].mxu0 %v1045
        %v1191 = vpop.f32.mrb[0].mxu0
        %v1192 = vadd.f32 0.0, %v1191
        %v1193 = vpop.f32.mrb[0].mxu0
        %v1194 = vadd.f32 0.0, %v1193
        %1195 = vmatprep.mubr.f32.mxu0 0.0
        %1196 = vmatmul.mubr.f32.gmra.mrb[0].mxu0 %v1044
        %v1197 = vpop.f32.mrb[0].mxu0
        %v1198 = vadd.f32 0.0, %v1197
        %v1199 = vpop.f32.mrb[0].mxu0
        %v1200 = vadd.f32 0.0, %v1199
        %1201 = vdwg.mxu0
        %1202 = vmatprep.subr.mxu0 %v951
        %1203 = vmatpush1.msra.mxu0 %v950
        %1204 = vmatprep.subr.mxu0 %v957
        %1205 = vmatpush1.msra.mxu0 %v956
        %1206 = vmatprep.subr.mxu0 %v963
        %1207 = vmatpush1.msra.mxu0 %v962
        %1208 = vmatprep.subr.mxu0 %v969
        %1209 = vmatpush1.msra.mxu0 %v968
        %1210 = vmatprep.subr.mxu0 %v975
        %1211 = vmatpush1.msra.mxu0 %v974
        %1212 = vmatprep.subr.mxu0 %v981
        %1213 = vmatpush1.msra.mxu0 %v980
        %1214 = vmatprep.subr.mxu0 %v987
        %1215 = vmatpush1.msra.mxu0 %v986
        %1216 = vmatprep.subr.mxu0 %v993
        %1217 = vmatpush1.msra.mxu0 %v992
        %1218 = vmatprep.subr.mxu0 %v999
        %1219 = vmatpush1.msra.mxu0 %v998
        %1220 = vmatprep.subr.mxu0 %v1005
        %1221 = vmatpush1.msra.mxu0 %v1004
        %1222 = vmatprep.subr.mxu0 %v1011
        %1223 = vmatpush1.msra.mxu0 %v1010
        %1224 = vmatprep.subr.mxu0 %v1017
        %1225 = vmatpush1.msra.mxu0 %v1016
        %1226 = vmatprep.subr.mxu0 %v1023
        %1227 = vmatpush1.msra.mxu0 %v1022
        %1228 = vmatprep.subr.mxu0 %v1029
        %1229 = vmatpush1.msra.mxu0 %v1028
        %1230 = vmatprep.subr.mxu0 %v1035
        %1231 = vmatpush1.msra.mxu0 %v1034
        %1232 = vmatprep.subr.mxu0 %v1041
        %1233 = vmatpush1.msra.mxu0 %v1040
        %1234 = vmatprep.subr.mxu0 0.0
        %1235 = vmatpush1.msra.mxu0 0.0
        %1236 = vmatprep.subr.mxu0 0.0
        %1237 = vmatpush1.msra.mxu0 0.0
        %1238 = vmatprep.subr.mxu0 0.0
        %1239 = vmatpush1.msra.mxu0 0.0
        %1240 = vmatprep.subr.mxu0 0.0
        %1241 = vmatpush1.msra.mxu0 0.0
        %1242 = vmatprep.subr.mxu0 0.0
        %1243 = vmatpush1.msra.mxu0 0.0
        %1244 = vmatprep.subr.mxu0 0.0
        %1245 = vmatpush1.msra.mxu0 0.0
        %1246 = vmatprep.subr.mxu0 0.0
        %1247 = vmatpush1.msra.mxu0 0.0
        %1248 = vmatprep.subr.mxu0 0.0
        %1249 = vmatpush1.msra.mxu0 0.0
        %1250 = vmatprep.subr.mxu0 0.0
        %1251 = vmatpush1.msra.mxu0 0.0
        %1252 = vmatprep.subr.mxu0 0.0
        %1253 = vmatpush1.msra.mxu0 0.0
        %1254 = vmatprep.subr.mxu0 0.0
        %1255 = vmatpush1.msra.mxu0 0.0
        %1256 = vmatprep.subr.mxu0 0.0
        %1257 = vmatpush1.msra.mxu0 0.0
        %1258 = vmatprep.subr.mxu0 0.0
        %1259 = vmatpush1.msra.mxu0 0.0
        %1260 = vmatprep.subr.mxu0 0.0
        %1261 = vmatpush1.msra.mxu0 0.0
        %1262 = vmatprep.subr.mxu0 0.0
        %1263 = vmatpush1.msra.mxu0 0.0
        %1264 = vmatprep.subr.mxu0 0.0
        %1265 = vmatpush1.msra.mxu0 0.0
        %1266 = vmatprep.mubr.f32.mxu0 0.0
        %1267 = vmatmul.mubr.f32.gmra.mrb[0].mxu0 %v1045
        %v1268 = vpop.f32.mrb[0].mxu0
        %v1269 = vadd.f32 0.0, %v1268
        %v1270 = vpop.f32.mrb[0].mxu0
        %v1271 = vadd.f32 0.0, %v1270
        %1272 = vmatprep.mubr.f32.mxu0 0.0
        %1273 = vmatmul.mubr.f32.gmra.mrb[0].mxu0 %v1044
        %v1274 = vpop.f32.mrb[0].mxu0
        %v1275 = vadd.f32 0.0, %v1274
        %v1276 = vpop.f32.mrb[0].mxu0
        %v1277 = vadd.f32 0.0, %v1276
        %1278 = vdwg.mxu0
        %v1279 = vadd.f32 %v782, %v1115
        %v1280 = vadd.f32 %v784, %v1117
        %v1281 = vadd.f32 %v859, %v1192
        %v1282 = vadd.f32 %v861, %v1194
        %v1283 = vadd.f32 %v936, %v1269
        %v1284 = vadd.f32 %v938, %v1271
        %v1285 = vadd.f32 %v788, %v1121
        %v1286 = vadd.f32 %v790, %v1123
        %v1287 = vadd.f32 %v865, %v1198
        %v1288 = vadd.f32 %v867, %v1200
        %v1289 = vadd.f32 %v942, %v1275
        %v1290 = vadd.f32 %v944, %v1277
        %v1291 = vld [vmem:[#allocation3 + $0x900] sm:$0xff]
        %v1292 = vld [vmem:[#allocation3 + $0x908] sm:$0xff]
        %v1293 = vld [vmem:[#allocation3 + $0x910] sm:$0xff]
        %v1294 = vld [vmem:[#allocation3 + $0x918] sm:$0xff]
        %v1295 = vld [vmem:[#allocation3 + $0x920] sm:$0xff]
        %v1296 = vld [vmem:[#allocation3 + $0x928] sm:$0xff]
        %v1297 = vld [vmem:[#allocation3 + $0x930] sm:$0xff]
        %v1298 = vld [vmem:[#allocation3 + $0x938] sm:$0xff]
        %v1299 = vld [vmem:[#allocation3 + $0x940] sm:$0xff]
        %v1300 = vld [vmem:[#allocation3 + $0x948] sm:$0xff]
        %v1301 = vld [vmem:[#allocation3 + $0x950] sm:$0xff]
        %v1302 = vld [vmem:[#allocation3 + $0x958] sm:$0xff]
        %v1303 = vld [vmem:[#allocation3 + $0x960] sm:$0xff]
        %v1304 = vld [vmem:[#allocation3 + $0x968] sm:$0xff]
        %v1305 = vld [vmem:[#allocation3 + $0x970] sm:$0xff]
        %v1306 = vld [vmem:[#allocation3 + $0x978] sm:$0xff]
        %v1307 = vld [vmem:[#allocation3 + $0x980] sm:$0xff]
        %v1308 = vld [vmem:[#allocation3 + $0x988] sm:$0xff]
        %v1309 = vld [vmem:[#allocation3 + $0x990] sm:$0xff]
        %v1310 = vld [vmem:[#allocation3 + $0x998] sm:$0xff]
        %v1311 = vld [vmem:[#allocation3 + $0x9a0] sm:$0xff]
        %v1312 = vld [vmem:[#allocation3 + $0x9a8] sm:$0xff]
        %v1313 = vld [vmem:[#allocation3 + $0x9b0] sm:$0xff]
        %v1314 = vld [vmem:[#allocation3 + $0x9b8] sm:$0xff]
        %v1315 = vld [vmem:[#allocation3 + $0x9c0] sm:$0xff]
        %v1316 = vld [vmem:[#allocation3 + $0x9c8] sm:$0xff]
        %v1317 = vld [vmem:[#allocation3 + $0x9d0] sm:$0xff]
        %v1318 = vld [vmem:[#allocation3 + $0x9d8] sm:$0xff]
        %v1319 = vld [vmem:[#allocation3 + $0x9e0] sm:$0xff]
        %v1320 = vld [vmem:[#allocation3 + $0x9e8] sm:$0xff]
        %v1321 = vld [vmem:[#allocation3 + $0x9f0] sm:$0xff]
        %v1322 = vld [vmem:[#allocation3 + $0x9f8] sm:$0xff]
        %v1323 = vld [vmem:[#allocation3 + $0xa00] sm:$0xff]
        %v1324 = vld [vmem:[#allocation3 + $0xa08] sm:$0xff]
        %v1325 = vld [vmem:[#allocation3 + $0xa10] sm:$0xff]
        %v1326 = vld [vmem:[#allocation3 + $0xa18] sm:$0xff]
        %v1327 = vld [vmem:[#allocation3 + $0xa20] sm:$0xff]
        %v1328 = vld [vmem:[#allocation3 + $0xa28] sm:$0xff]
        %v1329 = vld [vmem:[#allocation3 + $0xa30] sm:$0xff]
        %v1330 = vld [vmem:[#allocation3 + $0xa38] sm:$0xff]
        %v1331 = vld [vmem:[#allocation3 + $0xa40] sm:$0xff]
        %v1332 = vld [vmem:[#allocation3 + $0xa48] sm:$0xff]
        %v1333 = vld [vmem:[#allocation3 + $0xa50] sm:$0xff]
        %v1334 = vld [vmem:[#allocation3 + $0xa58] sm:$0xff]
        %v1335 = vld [vmem:[#allocation3 + $0xa60] sm:$0xff]
        %v1336 = vld [vmem:[#allocation3 + $0xa68] sm:$0xff]
        %v1337 = vld [vmem:[#allocation3 + $0xa70] sm:$0xff]
        %v1338 = vld [vmem:[#allocation3 + $0xa78] sm:$0xff]
        %v1339 = vld [vmem:[#allocation3 + $0xa80] sm:$0xff]
        %v1340 = vld [vmem:[#allocation3 + $0xa88] sm:$0xff]
        %v1341 = vld [vmem:[#allocation3 + $0xa90] sm:$0xff]
        %v1342 = vld [vmem:[#allocation3 + $0xa98] sm:$0xff]
        %v1343 = vld [vmem:[#allocation3 + $0xaa0] sm:$0xff]
        %v1344 = vld [vmem:[#allocation3 + $0xaa8] sm:$0xff]
        %v1345 = vld [vmem:[#allocation3 + $0xab0] sm:$0xff]
        %v1346 = vld [vmem:[#allocation3 + $0xab8] sm:$0xff]
        %v1347 = vld [vmem:[#allocation3 + $0xac0] sm:$0xff]
        %v1348 = vld [vmem:[#allocation3 + $0xac8] sm:$0xff]
        %v1349 = vld [vmem:[#allocation3 + $0xad0] sm:$0xff]
        %v1350 = vld [vmem:[#allocation3 + $0xad8] sm:$0xff]
        %v1351 = vld [vmem:[#allocation3 + $0xae0] sm:$0xff]
        %v1352 = vld [vmem:[#allocation3 + $0xae8] sm:$0xff]
        %v1353 = vld [vmem:[#allocation3 + $0xaf0] sm:$0xff]
        %v1354 = vld [vmem:[#allocation3 + $0xaf8] sm:$0xff]
        %v1355 = vld [vmem:[#allocation3 + $0xb00] sm:$0xff]
        %v1356 = vld [vmem:[#allocation3 + $0xb08] sm:$0xff]
        %v1357 = vld [vmem:[#allocation3 + $0xb10] sm:$0xff]
        %v1358 = vld [vmem:[#allocation3 + $0xb18] sm:$0xff]
        %v1359 = vld [vmem:[#allocation3 + $0xb20] sm:$0xff]
        %v1360 = vld [vmem:[#allocation3 + $0xb28] sm:$0xff]
        %v1361 = vld [vmem:[#allocation3 + $0xb30] sm:$0xff]
        %v1362 = vld [vmem:[#allocation3 + $0xb38] sm:$0xff]
        %v1363 = vld [vmem:[#allocation3 + $0xb40] sm:$0xff]
        %v1364 = vld [vmem:[#allocation3 + $0xb48] sm:$0xff]
        %v1365 = vld [vmem:[#allocation3 + $0xb50] sm:$0xff]
        %v1366 = vld [vmem:[#allocation3 + $0xb58] sm:$0xff]
        %v1367 = vld [vmem:[#allocation3 + $0xb60] sm:$0xff]
        %v1368 = vld [vmem:[#allocation3 + $0xb68] sm:$0xff]
        %v1369 = vld [vmem:[#allocation3 + $0xb70] sm:$0xff]
        %v1370 = vld [vmem:[#allocation3 + $0xb78] sm:$0xff]
        %v1371 = vld [vmem:[#allocation3 + $0xb80] sm:$0xff]
        %v1372 = vld [vmem:[#allocation3 + $0xb88] sm:$0xff]
        %v1373 = vld [vmem:[#allocation3 + $0xb90] sm:$0xff]
        %v1374 = vld [vmem:[#allocation3 + $0xb98] sm:$0xff]
        %v1375 = vld [vmem:[#allocation3 + $0xba0] sm:$0xff]
        %v1376 = vld [vmem:[#allocation3 + $0xba8] sm:$0xff]
        %v1377 = vld [vmem:[#allocation3 + $0xbb0] sm:$0xff]
        %v1378 = vld [vmem:[#allocation3 + $0xbb8] sm:$0xff]
        %v1379 = vld [vmem:[#allocation3 + $0xbc0] sm:$0xff]
        %v1380 = vld [vmem:[#allocation3 + $0xbc8] sm:$0xff]
        %v1381 = vld [vmem:[#allocation3 + $0xbd0] sm:$0xff]
        %v1382 = vld [vmem:[#allocation3 + $0xbd8] sm:$0xff]
        %v1383 = vld [vmem:[#allocation3 + $0xbe0] sm:$0xff]
        %v1384 = vld [vmem:[#allocation3 + $0xbe8] sm:$0xff]
        %v1385 = vld [vmem:[#allocation3 + $0xbf0] sm:$0xff]
        %v1386 = vld [vmem:[#allocation3 + $0xbf8] sm:$0xff]
        %vm1387 = vcmask 1044480
        %v1388 = vrot.slane %v282, 3
        %v1389 = vrot.slane %v283, 3
        %v1390 = vsel %vm1387, %v1388, %v1389
        %1393 = vmatprep.subr.mxu0 %v1292
        %1394 = vmatpush1.msra.mxu0 %v1291
        %1395 = vmatprep.subr.mxu0 %v1298
        %1396 = vmatpush1.msra.mxu0 %v1297
        %1397 = vmatprep.subr.mxu0 %v1304
        %1398 = vmatpush1.msra.mxu0 %v1303
        %1399 = vmatprep.subr.mxu0 %v1310
        %1400 = vmatpush1.msra.mxu0 %v1309
        %1401 = vmatprep.subr.mxu0 %v1316
        %1402 = vmatpush1.msra.mxu0 %v1315
        %1403 = vmatprep.subr.mxu0 %v1322
        %1404 = vmatpush1.msra.mxu0 %v1321
        %1405 = vmatprep.subr.mxu0 %v1328
        %1406 = vmatpush1.msra.mxu0 %v1327
        %1407 = vmatprep.subr.mxu0 %v1334
        %1408 = vmatpush1.msra.mxu0 %v1333
        %1409 = vmatprep.subr.mxu0 %v1340
        %1410 = vmatpush1.msra.mxu0 %v1339
        %1411 = vmatprep.subr.mxu0 %v1346
        %1412 = vmatpush1.msra.mxu0 %v1345
        %1413 = vmatprep.subr.mxu0 %v1352
        %1414 = vmatpush1.msra.mxu0 %v1351
        %1415 = vmatprep.subr.mxu0 %v1358
        %1416 = vmatpush1.msra.mxu0 %v1357
        %1417 = vmatprep.subr.mxu0 %v1364
        %1418 = vmatpush1.msra.mxu0 %v1363
        %1419 = vmatprep.subr.mxu0 %v1370
        %1420 = vmatpush1.msra.mxu0 %v1369
        %1421 = vmatprep.subr.mxu0 %v1376
        %1422 = vmatpush1.msra.mxu0 %v1375
        %1423 = vmatprep.subr.mxu0 %v1382
        %1424 = vmatpush1.msra.mxu0 %v1381
        %1425 = vmatprep.subr.mxu0 0.0
        %1426 = vmatpush1.msra.mxu0 0.0
        %1427 = vmatprep.subr.mxu0 0.0
        %1428 = vmatpush1.msra.mxu0 0.0
        %1429 = vmatprep.subr.mxu0 0.0
        %1430 = vmatpush1.msra.mxu0 0.0
        %1431 = vmatprep.subr.mxu0 0.0
        %1432 = vmatpush1.msra.mxu0 0.0
        %1433 = vmatprep.subr.mxu0 0.0
        %1434 = vmatpush1.msra.mxu0 0.0
        %1435 = vmatprep.subr.mxu0 0.0
        %1436 = vmatpush1.msra.mxu0 0.0
        %1437 = vmatprep.subr.mxu0 0.0
        %1438 = vmatpush1.msra.mxu0 0.0
        %1439 = vmatprep.subr.mxu0 0.0
        %1440 = vmatpush1.msra.mxu0 0.0
        %1441 = vmatprep.subr.mxu0 0.0
        %1442 = vmatpush1.msra.mxu0 0.0
        %1443 = vmatprep.subr.mxu0 0.0
        %1444 = vmatpush1.msra.mxu0 0.0
        %1445 = vmatprep.subr.mxu0 0.0
        %1446 = vmatpush1.msra.mxu0 0.0
        %1447 = vmatprep.subr.mxu0 0.0
        %1448 = vmatpush1.msra.mxu0 0.0
        %1449 = vmatprep.subr.mxu0 0.0
        %1450 = vmatpush1.msra.mxu0 0.0
        %1451 = vmatprep.subr.mxu0 0.0
        %1452 = vmatpush1.msra.mxu0 0.0
        %1453 = vmatprep.subr.mxu0 0.0
        %1454 = vmatpush1.msra.mxu0 0.0
        %1455 = vmatprep.subr.mxu0 0.0
        %1456 = vmatpush1.msra.mxu0 0.0
        %1457 = vmatprep.mubr.f32.mxu0 0.0
        %1458 = vmatmul.mubr.f32.gmra.mrb[0].mxu0 %v1390
        %v1459 = vpop.f32.mrb[0].mxu0
        %v1460 = vadd.f32 0.0, %v1459
        %v1461 = vpop.f32.mrb[0].mxu0
        %v1462 = vadd.f32 0.0, %v1461
        %1463 = vmatprep.mubr.f32.mxu0 0.0
        %1464 = vmatmul.mubr.f32.gmra.mrb[0].mxu0 %v1389
        %v1465 = vpop.f32.mrb[0].mxu0
        %v1466 = vadd.f32 0.0, %v1465
        %v1467 = vpop.f32.mrb[0].mxu0
        %v1468 = vadd.f32 0.0, %v1467
        %1469 = vdwg.mxu0
        %1470 = vmatprep.subr.mxu0 %v1294
        %1471 = vmatpush1.msra.mxu0 %v1293
        %1472 = vmatprep.subr.mxu0 %v1300
        %1473 = vmatpush1.msra.mxu0 %v1299
        %1474 = vmatprep.subr.mxu0 %v1306
        %1475 = vmatpush1.msra.mxu0 %v1305
        %1476 = vmatprep.subr.mxu0 %v1312
        %1477 = vmatpush1.msra.mxu0 %v1311
        %1478 = vmatprep.subr.mxu0 %v1318
        %1479 = vmatpush1.msra.mxu0 %v1317
        %1480 = vmatprep.subr.mxu0 %v1324
        %1481 = vmatpush1.msra.mxu0 %v1323
        %1482 = vmatprep.subr.mxu0 %v1330
        %1483 = vmatpush1.msra.mxu0 %v1329
        %1484 = vmatprep.subr.mxu0 %v1336
        %1485 = vmatpush1.msra.mxu0 %v1335
        %1486 = vmatprep.subr.mxu0 %v1342
        %1487 = vmatpush1.msra.mxu0 %v1341
        %1488 = vmatprep.subr.mxu0 %v1348
        %1489 = vmatpush1.msra.mxu0 %v1347
        %1490 = vmatprep.subr.mxu0 %v1354
        %1491 = vmatpush1.msra.mxu0 %v1353
        %1492 = vmatprep.subr.mxu0 %v1360
        %1493 = vmatpush1.msra.mxu0 %v1359
        %1494 = vmatprep.subr.mxu0 %v1366
        %1495 = vmatpush1.msra.mxu0 %v1365
        %1496 = vmatprep.subr.mxu0 %v1372
        %1497 = vmatpush1.msra.mxu0 %v1371
        %1498 = vmatprep.subr.mxu0 %v1378
        %1499 = vmatpush1.msra.mxu0 %v1377
        %1500 = vmatprep.subr.mxu0 %v1384
        %1501 = vmatpush1.msra.mxu0 %v1383
        %1502 = vmatprep.subr.mxu0 0.0
        %1503 = vmatpush1.msra.mxu0 0.0
        %1504 = vmatprep.subr.mxu0 0.0
        %1505 = vmatpush1.msra.mxu0 0.0
        %1506 = vmatprep.subr.mxu0 0.0
        %1507 = vmatpush1.msra.mxu0 0.0
        %1508 = vmatprep.subr.mxu0 0.0
        %1509 = vmatpush1.msra.mxu0 0.0
        %1510 = vmatprep.subr.mxu0 0.0
        %1511 = vmatpush1.msra.mxu0 0.0
        %1512 = vmatprep.subr.mxu0 0.0
        %1513 = vmatpush1.msra.mxu0 0.0
        %1514 = vmatprep.subr.mxu0 0.0
        %1515 = vmatpush1.msra.mxu0 0.0
        %1516 = vmatprep.subr.mxu0 0.0
        %1517 = vmatpush1.msra.mxu0 0.0
        %1518 = vmatprep.subr.mxu0 0.0
        %1519 = vmatpush1.msra.mxu0 0.0
        %1520 = vmatprep.subr.mxu0 0.0
        %1521 = vmatpush1.msra.mxu0 0.0
        %1522 = vmatprep.subr.mxu0 0.0
        %1523 = vmatpush1.msra.mxu0 0.0
        %1524 = vmatprep.subr.mxu0 0.0
        %1525 = vmatpush1.msra.mxu0 0.0
        %1526 = vmatprep.subr.mxu0 0.0
        %1527 = vmatpush1.msra.mxu0 0.0
        %1528 = vmatprep.subr.mxu0 0.0
        %1529 = vmatpush1.msra.mxu0 0.0
        %1530 = vmatprep.subr.mxu0 0.0
        %1531 = vmatpush1.msra.mxu0 0.0
        %1532 = vmatprep.subr.mxu0 0.0
        %1533 = vmatpush1.msra.mxu0 0.0
        %1534 = vmatprep.mubr.f32.mxu0 0.0
        %1535 = vmatmul.mubr.f32.gmra.mrb[0].mxu0 %v1390
        %v1536 = vpop.f32.mrb[0].mxu0
        %v1537 = vadd.f32 0.0, %v1536
        %v1538 = vpop.f32.mrb[0].mxu0
        %v1539 = vadd.f32 0.0, %v1538
        %1540 = vmatprep.mubr.f32.mxu0 0.0
        %1541 = vmatmul.mubr.f32.gmra.mrb[0].mxu0 %v1389
        %v1542 = vpop.f32.mrb[0].mxu0
        %v1543 = vadd.f32 0.0, %v1542
        %v1544 = vpop.f32.mrb[0].mxu0
        %v1545 = vadd.f32 0.0, %v1544
        %1546 = vdwg.mxu0
        %1547 = vmatprep.subr.mxu0 %v1296
        %1548 = vmatpush1.msra.mxu0 %v1295
        %1549 = vmatprep.subr.mxu0 %v1302
        %1550 = vmatpush1.msra.mxu0 %v1301
        %1551 = vmatprep.subr.mxu0 %v1308
        %1552 = vmatpush1.msra.mxu0 %v1307
        %1553 = vmatprep.subr.mxu0 %v1314
        %1554 = vmatpush1.msra.mxu0 %v1313
        %1555 = vmatprep.subr.mxu0 %v1320
        %1556 = vmatpush1.msra.mxu0 %v1319
        %1557 = vmatprep.subr.mxu0 %v1326
        %1558 = vmatpush1.msra.mxu0 %v1325
        %1559 = vmatprep.subr.mxu0 %v1332
        %1560 = vmatpush1.msra.mxu0 %v1331
        %1561 = vmatprep.subr.mxu0 %v1338
        %1562 = vmatpush1.msra.mxu0 %v1337
        %1563 = vmatprep.subr.mxu0 %v1344
        %1564 = vmatpush1.msra.mxu0 %v1343
        %1565 = vmatprep.subr.mxu0 %v1350
        %1566 = vmatpush1.msra.mxu0 %v1349
        %1567 = vmatprep.subr.mxu0 %v1356
        %1568 = vmatpush1.msra.mxu0 %v1355
        %1569 = vmatprep.subr.mxu0 %v1362
        %1570 = vmatpush1.msra.mxu0 %v1361
        %1571 = vmatprep.subr.mxu0 %v1368
        %1572 = vmatpush1.msra.mxu0 %v1367
        %1573 = vmatprep.subr.mxu0 %v1374
        %1574 = vmatpush1.msra.mxu0 %v1373
        %1575 = vmatprep.subr.mxu0 %v1380
        %1576 = vmatpush1.msra.mxu0 %v1379
        %1577 = vmatprep.subr.mxu0 %v1386
        %1578 = vmatpush1.msra.mxu0 %v1385
        %1579 = vmatprep.subr.mxu0 0.0
        %1580 = vmatpush1.msra.mxu0 0.0
        %1581 = vmatprep.subr.mxu0 0.0
        %1582 = vmatpush1.msra.mxu0 0.0
        %1583 = vmatprep.subr.mxu0 0.0
        %1584 = vmatpush1.msra.mxu0 0.0
        %1585 = vmatprep.subr.mxu0 0.0
        %1586 = vmatpush1.msra.mxu0 0.0
        %1587 = vmatprep.subr.mxu0 0.0
        %1588 = vmatpush1.msra.mxu0 0.0
        %1589 = vmatprep.subr.mxu0 0.0
        %1590 = vmatpush1.msra.mxu0 0.0
        %1591 = vmatprep.subr.mxu0 0.0
        %1592 = vmatpush1.msra.mxu0 0.0
        %1593 = vmatprep.subr.mxu0 0.0
        %1594 = vmatpush1.msra.mxu0 0.0
        %1595 = vmatprep.subr.mxu0 0.0
        %1596 = vmatpush1.msra.mxu0 0.0
        %1597 = vmatprep.subr.mxu0 0.0
        %1598 = vmatpush1.msra.mxu0 0.0
        %1599 = vmatprep.subr.mxu0 0.0
        %1600 = vmatpush1.msra.mxu0 0.0
        %1601 = vmatprep.subr.mxu0 0.0
        %1602 = vmatpush1.msra.mxu0 0.0
        %1603 = vmatprep.subr.mxu0 0.0
        %1604 = vmatpush1.msra.mxu0 0.0
        %1605 = vmatprep.subr.mxu0 0.0
        %1606 = vmatpush1.msra.mxu0 0.0
        %1607 = vmatprep.subr.mxu0 0.0
        %1608 = vmatpush1.msra.mxu0 0.0
        %1609 = vmatprep.subr.mxu0 0.0
        %1610 = vmatpush1.msra.mxu0 0.0
        %1611 = vmatprep.mubr.f32.mxu0 0.0
        %1612 = vmatmul.mubr.f32.gmra.mrb[0].mxu0 %v1390
        %v1613 = vpop.f32.mrb[0].mxu0
        %v1614 = vadd.f32 0.0, %v1613
        %v1615 = vpop.f32.mrb[0].mxu0
        %v1616 = vadd.f32 0.0, %v1615
        %1617 = vmatprep.mubr.f32.mxu0 0.0
        %1618 = vmatmul.mubr.f32.gmra.mrb[0].mxu0 %v1389
        %v1619 = vpop.f32.mrb[0].mxu0
        %v1620 = vadd.f32 0.0, %v1619
        %v1621 = vpop.f32.mrb[0].mxu0
        %v1622 = vadd.f32 0.0, %v1621
        %1623 = vdwg.mxu0
        %v1624 = vadd.f32 %v1279, %v1460
        %v1625 = vadd.f32 %v1280, %v1462
        %v1626 = vadd.f32 %v1281, %v1537
        %v1627 = vadd.f32 %v1282, %v1539
        %v1628 = vadd.f32 %v1283, %v1614
        %v1629 = vadd.f32 %v1284, %v1616
        %v1630 = vadd.f32 %v1285, %v1466
        %v1631 = vadd.f32 %v1286, %v1468
        %v1632 = vadd.f32 %v1287, %v1543
        %v1633 = vadd.f32 %v1288, %v1545
        %v1634 = vadd.f32 %v1289, %v1620
        %v1635 = vadd.f32 %v1290, %v1622
        %v1636 = vmul.f32 %v1624, %v1624
        %v1637 = vmul.f32 %v1625, %v1625
        %v1638 = vmul.f32 %v1626, %v1626
        %v1639 = vmul.f32 %v1630, %v1630
        %v1640 = vmul.f32 %v1631, %v1631
        %v1641 = vmul.f32 %v1632, %v1632
        %v1642 = vmul.f32 %v1627, %v1627
        %v1643 = vmul.f32 %v1628, %v1628
        %v1644 = vmul.f32 %v1629, %v1629
        %v1645 = vmul.f32 %v1633, %v1633
        %v1646 = vmul.f32 %v1634, %v1634
        %v1647 = vmul.f32 %v1635, %v1635
        %v1648 = vadd.f32 %v1636, %v1642
        %v1649 = vadd.f32 %v1637, %v1643
        %v1650 = vadd.f32 %v1638, %v1644
        %v1651 = vadd.f32 %v1639, %v1645
        %v1652 = vadd.f32 %v1640, %v1646
        %v1653 = vadd.f32 %v1641, %v1647
        %vm1654 = vcmp.gt.f32.partialorder %v1648, 0.0
        %vm1655 = vcmp.gt.f32.partialorder %v1649, 0.0
        %vm1656 = vcmp.gt.f32.partialorder %v1650, 0.0
        %vm1657 = vcmp.gt.f32.partialorder %v1651, 0.0
        %vm1658 = vcmp.gt.f32.partialorder %v1652, 0.0
        %vm1659 = vcmp.gt.f32.partialorder %v1653, 0.0
        %v1660 = vsel %vm1654, %v1648, 1.0
        %v1661 = vsel %vm1655, %v1649, 1.0
        %v1662 = vsel %vm1656, %v1650, 1.0
        %v1663 = vsel %vm1657, %v1651, 1.0
        %v1664 = vsel %vm1658, %v1652, 1.0
        %v1665 = vsel %vm1659, %v1653, 1.0
        %v1666 = vrsqrt.pop %v1660
        %v1667 = vrsqrt.pop %v1661
        %v1668 = vrsqrt.pop %v1662
        %v1669 = vrsqrt.pop %v1663
        %v1670 = vrsqrt.pop %v1664
        %v1671 = vrsqrt.pop %v1665
        %v1672 = vld [vmem:[#allocation7] sm:$0x7]
        %v1674 = vlaneseq
        %v1675 = vshrl.u32 %v1674, 7
        %v1676 = vsub.s32 0, %v1675
        %v1677 = vrot.slane %v1672, %v1676
        %v1678 = vlaneseq
        %v1679 = vshrl.u32 %v1678, 7
        %v1680 = vsub.s32 1, %v1679
        %v1681 = vrot.slane %v1672, %v1680
        %v1682 = vlaneseq
        %v1683 = vshrl.u32 %v1682, 7
        %v1684 = vsub.s32 2, %v1683
        %v1685 = vrot.slane %v1672, %v1684
        %v1689 = vmul.f32 %v1677, %v1666
        %v1690 = vmul.f32 %v1681, %v1667
        %v1691 = vmul.f32 %v1685, %v1668
        %v1692 = vmul.f32 %v1677, %v1669
        %v1693 = vmul.f32 %v1681, %v1670
        %v1694 = vmul.f32 %v1685, %v1671
        %v1695 = vsub.f32 1.0, %v1689
        %v1696 = vsub.f32 1.0, %v1690
        %v1697 = vsub.f32 1.0, %v1691
        %v1698 = vsub.f32 1.0, %v1692
        %v1699 = vsub.f32 1.0, %v1693
        %v1700 = vsub.f32 1.0, %v1694
        %v1701 = vmax.f32 %v1695, 0.0
        %v1702 = vmax.f32 %v1696, 0.0
        %v1703 = vmax.f32 %v1697, 0.0
        %v1704 = vmax.f32 %v1698, 0.0
        %v1705 = vmax.f32 %v1699, 0.0
        %v1706 = vmax.f32 %v1700, 0.0
        %v1707 = vsel %vm1654, %v1701, 0.0
        %v1708 = vsel %vm1655, %v1702, 0.0
        %v1709 = vsel %vm1656, %v1703, 0.0
        %v1710 = vsel %vm1657, %v1704, 0.0
        %v1711 = vsel %vm1658, %v1705, 0.0
        %v1712 = vsel %vm1659, %v1706, 0.0
        %v1713 = vmul.f32 %v1624, %v1707
        %v1714 = vmul.f32 %v1625, %v1708
        %v1715 = vmul.f32 %v1626, %v1709
        %v1716 = vmul.f32 %v1630, %v1710
        %v1717 = vmul.f32 %v1631, %v1711
        %v1718 = vmul.f32 %v1632, %v1712
        %v1719 = vmul.f32 %v1627, %v1707
        %v1720 = vmul.f32 %v1628, %v1708
        %v1721 = vmul.f32 %v1629, %v1709
        %v1722 = vmul.f32 %v1633, %v1710
        %v1723 = vmul.f32 %v1634, %v1711
        %v1724 = vmul.f32 %v1635, %v1712
        %v1725 = vld [vmem:[#allocation5] sm:$0xff]
        %v1726 = vld [vmem:[#allocation5 + $0x8] sm:$0xff]
        %v1727 = vld [vmem:[#allocation5 + $0x10] sm:$0xff]
        %v1728 = vld [vmem:[#allocation5 + $0x18] sm:$0xff]
        %v1729 = vld [vmem:[#allocation5 + $0x20] sm:$0xff]
        %v1730 = vld [vmem:[#allocation5 + $0x28] sm:$0xff]
        %v1731 = vld [vmem:[#allocation5 + $0x30] sm:$0xff]
        %v1732 = vld [vmem:[#allocation5 + $0x38] sm:$0xff]
        %v1733 = vld [vmem:[#allocation5 + $0x40] sm:$0xff]
        %v1734 = vld [vmem:[#allocation5 + $0x48] sm:$0xff]
        %v1735 = vld [vmem:[#allocation5 + $0x50] sm:$0xff]
        %v1736 = vld [vmem:[#allocation5 + $0x58] sm:$0xff]
        %v1737 = vld [vmem:[#allocation5 + $0x60] sm:$0xff]
        %v1738 = vld [vmem:[#allocation5 + $0x68] sm:$0xff]
        %v1739 = vld [vmem:[#allocation5 + $0x70] sm:$0xff]
        %v1740 = vld [vmem:[#allocation5 + $0x78] sm:$0xff]
        %v1741 = vld [vmem:[#allocation5 + $0x80] sm:$0xff]
        %v1742 = vld [vmem:[#allocation5 + $0x88] sm:$0xff]
        %v1743 = vld [vmem:[#allocation5 + $0x90] sm:$0xff]
        %v1744 = vld [vmem:[#allocation5 + $0x98] sm:$0xff]
        %v1745 = vld [vmem:[#allocation5 + $0xa0] sm:$0xff]
        %v1746 = vld [vmem:[#allocation5 + $0xa8] sm:$0xff]
        %v1747 = vld [vmem:[#allocation5 + $0xb0] sm:$0xff]
        %v1748 = vld [vmem:[#allocation5 + $0xb8] sm:$0xff]
        %v1749 = vld [vmem:[#allocation5 + $0xc0] sm:$0xff]
        %v1750 = vld [vmem:[#allocation5 + $0xc8] sm:$0xff]
        %v1751 = vld [vmem:[#allocation5 + $0xd0] sm:$0xff]
        %v1752 = vld [vmem:[#allocation5 + $0xd8] sm:$0xff]
        %v1753 = vld [vmem:[#allocation5 + $0xe0] sm:$0xff]
        %v1754 = vld [vmem:[#allocation5 + $0xe8] sm:$0xff]
        %v1755 = vld [vmem:[#allocation5 + $0xf0] sm:$0xff]
        %v1756 = vld [vmem:[#allocation5 + $0xf8] sm:$0xff]
        %v1757 = vld [vmem:[#allocation5 + $0x100] sm:$0xff]
        %v1758 = vld [vmem:[#allocation5 + $0x108] sm:$0xff]
        %v1759 = vld [vmem:[#allocation5 + $0x110] sm:$0xff]
        %v1760 = vld [vmem:[#allocation5 + $0x118] sm:$0xff]
        %v1761 = vld [vmem:[#allocation5 + $0x120] sm:$0xff]
        %v1762 = vld [vmem:[#allocation5 + $0x128] sm:$0xff]
        %v1763 = vld [vmem:[#allocation5 + $0x130] sm:$0xff]
        %v1764 = vld [vmem:[#allocation5 + $0x138] sm:$0xff]
        %v1765 = vld [vmem:[#allocation5 + $0x140] sm:$0xff]
        %v1766 = vld [vmem:[#allocation5 + $0x148] sm:$0xff]
        %v1767 = vld [vmem:[#allocation5 + $0x150] sm:$0xff]
        %v1768 = vld [vmem:[#allocation5 + $0x158] sm:$0xff]
        %v1769 = vld [vmem:[#allocation5 + $0x160] sm:$0xff]
        %v1770 = vld [vmem:[#allocation5 + $0x168] sm:$0xff]
        %v1771 = vld [vmem:[#allocation5 + $0x170] sm:$0xff]
        %v1772 = vld [vmem:[#allocation5 + $0x178] sm:$0xff]
        %v1773 = vld [vmem:[#allocation5 + $0x180] sm:$0xff]
        %v1774 = vld [vmem:[#allocation5 + $0x188] sm:$0xff]
        %v1775 = vld [vmem:[#allocation5 + $0x190] sm:$0xff]
        %v1776 = vld [vmem:[#allocation5 + $0x198] sm:$0xff]
        %v1777 = vld [vmem:[#allocation5 + $0x1a0] sm:$0xff]
        %v1778 = vld [vmem:[#allocation5 + $0x1a8] sm:$0xff]
        %v1779 = vld [vmem:[#allocation5 + $0x1b0] sm:$0xff]
        %v1780 = vld [vmem:[#allocation5 + $0x1b8] sm:$0xff]
        %v1781 = vld [vmem:[#allocation5 + $0x1c0] sm:$0xff]
        %v1782 = vld [vmem:[#allocation5 + $0x1c8] sm:$0xff]
        %v1783 = vld [vmem:[#allocation5 + $0x1d0] sm:$0xff]
        %v1784 = vld [vmem:[#allocation5 + $0x1d8] sm:$0xff]
        %v1785 = vld [vmem:[#allocation5 + $0x1e0] sm:$0xff]
        %v1786 = vld [vmem:[#allocation5 + $0x1e8] sm:$0xff]
        %v1787 = vld [vmem:[#allocation5 + $0x1f0] sm:$0xff]
        %v1788 = vld [vmem:[#allocation5 + $0x1f8] sm:$0xff]
        %v1789 = vld [vmem:[#allocation5 + $0x200] sm:$0xff]
        %v1790 = vld [vmem:[#allocation5 + $0x208] sm:$0xff]
        %v1791 = vld [vmem:[#allocation5 + $0x210] sm:$0xff]
        %v1792 = vld [vmem:[#allocation5 + $0x218] sm:$0xff]
        %v1793 = vld [vmem:[#allocation5 + $0x220] sm:$0xff]
        %v1794 = vld [vmem:[#allocation5 + $0x228] sm:$0xff]
        %v1795 = vld [vmem:[#allocation5 + $0x230] sm:$0xff]
        %v1796 = vld [vmem:[#allocation5 + $0x238] sm:$0xff]
        %v1797 = vld [vmem:[#allocation5 + $0x240] sm:$0xff]
        %v1798 = vld [vmem:[#allocation5 + $0x248] sm:$0xff]
        %v1799 = vld [vmem:[#allocation5 + $0x250] sm:$0xff]
        %v1800 = vld [vmem:[#allocation5 + $0x258] sm:$0xff]
        %v1801 = vld [vmem:[#allocation5 + $0x260] sm:$0xff]
        %v1802 = vld [vmem:[#allocation5 + $0x268] sm:$0xff]
        %v1803 = vld [vmem:[#allocation5 + $0x270] sm:$0xff]
        %v1804 = vld [vmem:[#allocation5 + $0x278] sm:$0xff]
        %v1805 = vld [vmem:[#allocation5 + $0x280] sm:$0xff]
        %v1806 = vld [vmem:[#allocation5 + $0x288] sm:$0xff]
        %v1807 = vld [vmem:[#allocation5 + $0x290] sm:$0xff]
        %v1808 = vld [vmem:[#allocation5 + $0x298] sm:$0xff]
        %v1809 = vld [vmem:[#allocation5 + $0x2a0] sm:$0xff]
        %v1810 = vld [vmem:[#allocation5 + $0x2a8] sm:$0xff]
        %v1811 = vld [vmem:[#allocation5 + $0x2b0] sm:$0xff]
        %v1812 = vld [vmem:[#allocation5 + $0x2b8] sm:$0xff]
        %v1813 = vld [vmem:[#allocation5 + $0x2c0] sm:$0xff]
        %v1814 = vld [vmem:[#allocation5 + $0x2c8] sm:$0xff]
        %v1815 = vld [vmem:[#allocation5 + $0x2d0] sm:$0xff]
        %v1816 = vld [vmem:[#allocation5 + $0x2d8] sm:$0xff]
        %v1817 = vld [vmem:[#allocation5 + $0x2e0] sm:$0xff]
        %v1818 = vld [vmem:[#allocation5 + $0x2e8] sm:$0xff]
        %v1819 = vld [vmem:[#allocation5 + $0x2f0] sm:$0xff]
        %v1820 = vld [vmem:[#allocation5 + $0x2f8] sm:$0xff]
        %v1821 = vld [vmem:[#allocation5 + $0x300] sm:$0xff]
        %v1822 = vld [vmem:[#allocation5 + $0x308] sm:$0xff]
        %v1823 = vld [vmem:[#allocation5 + $0x310] sm:$0xff]
        %v1824 = vld [vmem:[#allocation5 + $0x318] sm:$0xff]
        %v1825 = vld [vmem:[#allocation5 + $0x320] sm:$0xff]
        %v1826 = vld [vmem:[#allocation5 + $0x328] sm:$0xff]
        %v1827 = vld [vmem:[#allocation5 + $0x330] sm:$0xff]
        %v1828 = vld [vmem:[#allocation5 + $0x338] sm:$0xff]
        %v1829 = vld [vmem:[#allocation5 + $0x340] sm:$0xff]
        %v1830 = vld [vmem:[#allocation5 + $0x348] sm:$0xff]
        %v1831 = vld [vmem:[#allocation5 + $0x350] sm:$0xff]
        %v1832 = vld [vmem:[#allocation5 + $0x358] sm:$0xff]
        %v1833 = vld [vmem:[#allocation5 + $0x360] sm:$0xff]
        %v1834 = vld [vmem:[#allocation5 + $0x368] sm:$0xff]
        %v1835 = vld [vmem:[#allocation5 + $0x370] sm:$0xff]
        %v1836 = vld [vmem:[#allocation5 + $0x378] sm:$0xff]
        %v1837 = vld [vmem:[#allocation5 + $0x380] sm:$0xff]
        %v1838 = vld [vmem:[#allocation5 + $0x388] sm:$0xff]
        %v1839 = vld [vmem:[#allocation5 + $0x390] sm:$0xff]
        %v1840 = vld [vmem:[#allocation5 + $0x398] sm:$0xff]
        %v1841 = vld [vmem:[#allocation5 + $0x3a0] sm:$0xff]
        %v1842 = vld [vmem:[#allocation5 + $0x3a8] sm:$0xff]
        %v1843 = vld [vmem:[#allocation5 + $0x3b0] sm:$0xff]
        %v1844 = vld [vmem:[#allocation5 + $0x3b8] sm:$0xff]
        %v1845 = vld [vmem:[#allocation5 + $0x3c0] sm:$0xff]
        %v1846 = vld [vmem:[#allocation5 + $0x3c8] sm:$0xff]
        %v1847 = vld [vmem:[#allocation5 + $0x3d0] sm:$0xff]
        %v1848 = vld [vmem:[#allocation5 + $0x3d8] sm:$0xff]
        %v1849 = vld [vmem:[#allocation5 + $0x3e0] sm:$0xff]
        %v1850 = vld [vmem:[#allocation5 + $0x3e8] sm:$0xff]
        %v1851 = vld [vmem:[#allocation5 + $0x3f0] sm:$0xff]
        %v1852 = vld [vmem:[#allocation5 + $0x3f8] sm:$0xff]
        %v1853 = vld [vmem:[#allocation5 + $0x400] sm:$0xff]
        %v1854 = vld [vmem:[#allocation5 + $0x408] sm:$0xff]
        %v1855 = vld [vmem:[#allocation5 + $0x410] sm:$0xff]
        %v1856 = vld [vmem:[#allocation5 + $0x418] sm:$0xff]
        %v1857 = vld [vmem:[#allocation5 + $0x420] sm:$0xff]
        %v1858 = vld [vmem:[#allocation5 + $0x428] sm:$0xff]
        %v1859 = vld [vmem:[#allocation5 + $0x430] sm:$0xff]
        %v1860 = vld [vmem:[#allocation5 + $0x438] sm:$0xff]
        %v1861 = vld [vmem:[#allocation5 + $0x440] sm:$0xff]
        %v1862 = vld [vmem:[#allocation5 + $0x448] sm:$0xff]
        %v1863 = vld [vmem:[#allocation5 + $0x450] sm:$0xff]
        %v1864 = vld [vmem:[#allocation5 + $0x458] sm:$0xff]
        %v1865 = vld [vmem:[#allocation5 + $0x460] sm:$0xff]
        %v1866 = vld [vmem:[#allocation5 + $0x468] sm:$0xff]
        %v1867 = vld [vmem:[#allocation5 + $0x470] sm:$0xff]
        %v1868 = vld [vmem:[#allocation5 + $0x478] sm:$0xff]
        %v1869 = vld [vmem:[#allocation5 + $0x480] sm:$0xff]
        %v1870 = vld [vmem:[#allocation5 + $0x488] sm:$0xff]
        %v1871 = vld [vmem:[#allocation5 + $0x490] sm:$0xff]
        %v1872 = vld [vmem:[#allocation5 + $0x498] sm:$0xff]
        %v1873 = vld [vmem:[#allocation5 + $0x4a0] sm:$0xff]
        %v1874 = vld [vmem:[#allocation5 + $0x4a8] sm:$0xff]
        %v1875 = vld [vmem:[#allocation5 + $0x4b0] sm:$0xff]
        %v1876 = vld [vmem:[#allocation5 + $0x4b8] sm:$0xff]
        %v1877 = vld [vmem:[#allocation5 + $0x4c0] sm:$0xff]
        %v1878 = vld [vmem:[#allocation5 + $0x4c8] sm:$0xff]
        %v1879 = vld [vmem:[#allocation5 + $0x4d0] sm:$0xff]
        %v1880 = vld [vmem:[#allocation5 + $0x4d8] sm:$0xff]
        %v1881 = vld [vmem:[#allocation5 + $0x4e0] sm:$0xff]
        %v1882 = vld [vmem:[#allocation5 + $0x4e8] sm:$0xff]
        %v1883 = vld [vmem:[#allocation5 + $0x4f0] sm:$0xff]
        %v1884 = vld [vmem:[#allocation5 + $0x4f8] sm:$0xff]
        %v1885 = vld [vmem:[#allocation5 + $0x500] sm:$0xff]
        %v1886 = vld [vmem:[#allocation5 + $0x508] sm:$0xff]
        %v1887 = vld [vmem:[#allocation5 + $0x510] sm:$0xff]
        %v1888 = vld [vmem:[#allocation5 + $0x518] sm:$0xff]
        %v1889 = vld [vmem:[#allocation5 + $0x520] sm:$0xff]
        %v1890 = vld [vmem:[#allocation5 + $0x528] sm:$0xff]
        %v1891 = vld [vmem:[#allocation5 + $0x530] sm:$0xff]
        %v1892 = vld [vmem:[#allocation5 + $0x538] sm:$0xff]
        %v1893 = vld [vmem:[#allocation5 + $0x540] sm:$0xff]
        %v1894 = vld [vmem:[#allocation5 + $0x548] sm:$0xff]
        %v1895 = vld [vmem:[#allocation5 + $0x550] sm:$0xff]
        %v1896 = vld [vmem:[#allocation5 + $0x558] sm:$0xff]
        %v1897 = vld [vmem:[#allocation5 + $0x560] sm:$0xff]
        %v1898 = vld [vmem:[#allocation5 + $0x568] sm:$0xff]
        %v1899 = vld [vmem:[#allocation5 + $0x570] sm:$0xff]
        %v1900 = vld [vmem:[#allocation5 + $0x578] sm:$0xff]
        %v1901 = vld [vmem:[#allocation5 + $0x580] sm:$0xff]
        %v1902 = vld [vmem:[#allocation5 + $0x588] sm:$0xff]
        %v1903 = vld [vmem:[#allocation5 + $0x590] sm:$0xff]
        %v1904 = vld [vmem:[#allocation5 + $0x598] sm:$0xff]
        %v1905 = vld [vmem:[#allocation5 + $0x5a0] sm:$0xff]
        %v1906 = vld [vmem:[#allocation5 + $0x5a8] sm:$0xff]
        %v1907 = vld [vmem:[#allocation5 + $0x5b0] sm:$0xff]
        %v1908 = vld [vmem:[#allocation5 + $0x5b8] sm:$0xff]
        %v1909 = vld [vmem:[#allocation5 + $0x5c0] sm:$0xff]
        %v1910 = vld [vmem:[#allocation5 + $0x5c8] sm:$0xff]
        %v1911 = vld [vmem:[#allocation5 + $0x5d0] sm:$0xff]
        %v1912 = vld [vmem:[#allocation5 + $0x5d8] sm:$0xff]
        %v1913 = vld [vmem:[#allocation5 + $0x5e0] sm:$0xff]
        %v1914 = vld [vmem:[#allocation5 + $0x5e8] sm:$0xff]
        %v1915 = vld [vmem:[#allocation5 + $0x5f0] sm:$0xff]
        %v1916 = vld [vmem:[#allocation5 + $0x5f8] sm:$0xff]
        %v1917 = vld [vmem:[#allocation5 + $0x600] sm:$0xff]
        %v1918 = vld [vmem:[#allocation5 + $0x608] sm:$0xff]
        %v1919 = vld [vmem:[#allocation5 + $0x610] sm:$0xff]
        %v1920 = vld [vmem:[#allocation5 + $0x618] sm:$0xff]
        %v1921 = vld [vmem:[#allocation5 + $0x620] sm:$0xff]
        %v1922 = vld [vmem:[#allocation5 + $0x628] sm:$0xff]
        %v1923 = vld [vmem:[#allocation5 + $0x630] sm:$0xff]
        %v1924 = vld [vmem:[#allocation5 + $0x638] sm:$0xff]
        %v1925 = vld [vmem:[#allocation5 + $0x640] sm:$0xff]
        %v1926 = vld [vmem:[#allocation5 + $0x648] sm:$0xff]
        %v1927 = vld [vmem:[#allocation5 + $0x650] sm:$0xff]
        %v1928 = vld [vmem:[#allocation5 + $0x658] sm:$0xff]
        %v1929 = vld [vmem:[#allocation5 + $0x660] sm:$0xff]
        %v1930 = vld [vmem:[#allocation5 + $0x668] sm:$0xff]
        %v1931 = vld [vmem:[#allocation5 + $0x670] sm:$0xff]
        %v1932 = vld [vmem:[#allocation5 + $0x678] sm:$0xff]
        %v1933 = vld [vmem:[#allocation5 + $0x680] sm:$0xff]
        %v1934 = vld [vmem:[#allocation5 + $0x688] sm:$0xff]
        %v1935 = vld [vmem:[#allocation5 + $0x690] sm:$0xff]
        %v1936 = vld [vmem:[#allocation5 + $0x698] sm:$0xff]
        %v1937 = vld [vmem:[#allocation5 + $0x6a0] sm:$0xff]
        %v1938 = vld [vmem:[#allocation5 + $0x6a8] sm:$0xff]
        %v1939 = vld [vmem:[#allocation5 + $0x6b0] sm:$0xff]
        %v1940 = vld [vmem:[#allocation5 + $0x6b8] sm:$0xff]
        %v1941 = vld [vmem:[#allocation5 + $0x6c0] sm:$0xff]
        %v1942 = vld [vmem:[#allocation5 + $0x6c8] sm:$0xff]
        %v1943 = vld [vmem:[#allocation5 + $0x6d0] sm:$0xff]
        %v1944 = vld [vmem:[#allocation5 + $0x6d8] sm:$0xff]
        %v1945 = vld [vmem:[#allocation5 + $0x6e0] sm:$0xff]
        %v1946 = vld [vmem:[#allocation5 + $0x6e8] sm:$0xff]
        %v1947 = vld [vmem:[#allocation5 + $0x6f0] sm:$0xff]
        %v1948 = vld [vmem:[#allocation5 + $0x6f8] sm:$0xff]
        %v1949 = vld [vmem:[#allocation5 + $0x700] sm:$0xff]
        %v1950 = vld [vmem:[#allocation5 + $0x708] sm:$0xff]
        %v1951 = vld [vmem:[#allocation5 + $0x710] sm:$0xff]
        %v1952 = vld [vmem:[#allocation5 + $0x718] sm:$0xff]
        %v1953 = vld [vmem:[#allocation5 + $0x720] sm:$0xff]
        %v1954 = vld [vmem:[#allocation5 + $0x728] sm:$0xff]
        %v1955 = vld [vmem:[#allocation5 + $0x730] sm:$0xff]
        %v1956 = vld [vmem:[#allocation5 + $0x738] sm:$0xff]
        %v1957 = vld [vmem:[#allocation5 + $0x740] sm:$0xff]
        %v1958 = vld [vmem:[#allocation5 + $0x748] sm:$0xff]
        %v1959 = vld [vmem:[#allocation5 + $0x750] sm:$0xff]
        %v1960 = vld [vmem:[#allocation5 + $0x758] sm:$0xff]
        %v1961 = vld [vmem:[#allocation5 + $0x760] sm:$0xff]
        %v1962 = vld [vmem:[#allocation5 + $0x768] sm:$0xff]
        %v1963 = vld [vmem:[#allocation5 + $0x770] sm:$0xff]
        %v1964 = vld [vmem:[#allocation5 + $0x778] sm:$0xff]
        %v1965 = vld [vmem:[#allocation5 + $0x780] sm:$0xff]
        %v1966 = vld [vmem:[#allocation5 + $0x788] sm:$0xff]
        %v1967 = vld [vmem:[#allocation5 + $0x790] sm:$0xff]
        %v1968 = vld [vmem:[#allocation5 + $0x798] sm:$0xff]
        %v1969 = vld [vmem:[#allocation5 + $0x7a0] sm:$0xff]
        %v1970 = vld [vmem:[#allocation5 + $0x7a8] sm:$0xff]
        %v1971 = vld [vmem:[#allocation5 + $0x7b0] sm:$0xff]
        %v1972 = vld [vmem:[#allocation5 + $0x7b8] sm:$0xff]
        %v1973 = vld [vmem:[#allocation5 + $0x7c0] sm:$0xff]
        %v1974 = vld [vmem:[#allocation5 + $0x7c8] sm:$0xff]
        %v1975 = vld [vmem:[#allocation5 + $0x7d0] sm:$0xff]
        %v1976 = vld [vmem:[#allocation5 + $0x7d8] sm:$0xff]
        %v1977 = vld [vmem:[#allocation5 + $0x7e0] sm:$0xff]
        %v1978 = vld [vmem:[#allocation5 + $0x7e8] sm:$0xff]
        %v1979 = vld [vmem:[#allocation5 + $0x7f0] sm:$0xff]
        %v1980 = vld [vmem:[#allocation5 + $0x7f8] sm:$0xff]
        %v1981 = vld [vmem:[#allocation5 + $0x800] sm:$0xff]
        %v1982 = vld [vmem:[#allocation5 + $0x808] sm:$0xff]
        %v1983 = vld [vmem:[#allocation5 + $0x810] sm:$0xff]
        %v1984 = vld [vmem:[#allocation5 + $0x818] sm:$0xff]
        %v1985 = vld [vmem:[#allocation5 + $0x820] sm:$0xff]
        %v1986 = vld [vmem:[#allocation5 + $0x828] sm:$0xff]
        %v1987 = vld [vmem:[#allocation5 + $0x830] sm:$0xff]
        %v1988 = vld [vmem:[#allocation5 + $0x838] sm:$0xff]
        %v1989 = vld [vmem:[#allocation5 + $0x840] sm:$0xff]
        %v1990 = vld [vmem:[#allocation5 + $0x848] sm:$0xff]
        %v1991 = vld [vmem:[#allocation5 + $0x850] sm:$0xff]
        %v1992 = vld [vmem:[#allocation5 + $0x858] sm:$0xff]
        %v1993 = vld [vmem:[#allocation5 + $0x860] sm:$0xff]
        %v1994 = vld [vmem:[#allocation5 + $0x868] sm:$0xff]
        %v1995 = vld [vmem:[#allocation5 + $0x870] sm:$0xff]
        %v1996 = vld [vmem:[#allocation5 + $0x878] sm:$0xff]
        %v1997 = vld [vmem:[#allocation5 + $0x880] sm:$0xff]
        %v1998 = vld [vmem:[#allocation5 + $0x888] sm:$0xff]
        %v1999 = vld [vmem:[#allocation5 + $0x890] sm:$0xff]
        %v2000 = vld [vmem:[#allocation5 + $0x898] sm:$0xff]
        %v2001 = vld [vmem:[#allocation5 + $0x8a0] sm:$0xff]
        %v2002 = vld [vmem:[#allocation5 + $0x8a8] sm:$0xff]
        %v2003 = vld [vmem:[#allocation5 + $0x8b0] sm:$0xff]
        %v2004 = vld [vmem:[#allocation5 + $0x8b8] sm:$0xff]
        %v2005 = vld [vmem:[#allocation5 + $0x8c0] sm:$0xff]
        %v2006 = vld [vmem:[#allocation5 + $0x8c8] sm:$0xff]
        %v2007 = vld [vmem:[#allocation5 + $0x8d0] sm:$0xff]
        %v2008 = vld [vmem:[#allocation5 + $0x8d8] sm:$0xff]
        %v2009 = vld [vmem:[#allocation5 + $0x8e0] sm:$0xff]
        %v2010 = vld [vmem:[#allocation5 + $0x8e8] sm:$0xff]
        %v2011 = vld [vmem:[#allocation5 + $0x8f0] sm:$0xff]
        %v2012 = vld [vmem:[#allocation5 + $0x8f8] sm:$0xff]
        %v2013 = vld [vmem:[#allocation5 + $0x900] sm:$0xff]
        %v2014 = vld [vmem:[#allocation5 + $0x908] sm:$0xff]
        %v2015 = vld [vmem:[#allocation5 + $0x910] sm:$0xff]
        %v2016 = vld [vmem:[#allocation5 + $0x918] sm:$0xff]
        %v2017 = vld [vmem:[#allocation5 + $0x920] sm:$0xff]
        %v2018 = vld [vmem:[#allocation5 + $0x928] sm:$0xff]
        %v2019 = vld [vmem:[#allocation5 + $0x930] sm:$0xff]
        %v2020 = vld [vmem:[#allocation5 + $0x938] sm:$0xff]
        %v2021 = vld [vmem:[#allocation5 + $0x940] sm:$0xff]
        %v2022 = vld [vmem:[#allocation5 + $0x948] sm:$0xff]
        %v2023 = vld [vmem:[#allocation5 + $0x950] sm:$0xff]
        %v2024 = vld [vmem:[#allocation5 + $0x958] sm:$0xff]
        %v2025 = vld [vmem:[#allocation5 + $0x960] sm:$0xff]
        %v2026 = vld [vmem:[#allocation5 + $0x968] sm:$0xff]
        %v2027 = vld [vmem:[#allocation5 + $0x970] sm:$0xff]
        %v2028 = vld [vmem:[#allocation5 + $0x978] sm:$0xff]
        %v2029 = vld [vmem:[#allocation5 + $0x980] sm:$0xff]
        %v2030 = vld [vmem:[#allocation5 + $0x988] sm:$0xff]
        %v2031 = vld [vmem:[#allocation5 + $0x990] sm:$0xff]
        %v2032 = vld [vmem:[#allocation5 + $0x998] sm:$0xff]
        %v2033 = vld [vmem:[#allocation5 + $0x9a0] sm:$0xff]
        %v2034 = vld [vmem:[#allocation5 + $0x9a8] sm:$0xff]
        %v2035 = vld [vmem:[#allocation5 + $0x9b0] sm:$0xff]
        %v2036 = vld [vmem:[#allocation5 + $0x9b8] sm:$0xff]
        %v2037 = vld [vmem:[#allocation5 + $0x9c0] sm:$0xff]
        %v2038 = vld [vmem:[#allocation5 + $0x9c8] sm:$0xff]
        %v2039 = vld [vmem:[#allocation5 + $0x9d0] sm:$0xff]
        %v2040 = vld [vmem:[#allocation5 + $0x9d8] sm:$0xff]
        %v2041 = vld [vmem:[#allocation5 + $0x9e0] sm:$0xff]
        %v2042 = vld [vmem:[#allocation5 + $0x9e8] sm:$0xff]
        %v2043 = vld [vmem:[#allocation5 + $0x9f0] sm:$0xff]
        %v2044 = vld [vmem:[#allocation5 + $0x9f8] sm:$0xff]
        %v2045 = vld [vmem:[#allocation5 + $0xa00] sm:$0xff]
        %v2046 = vld [vmem:[#allocation5 + $0xa08] sm:$0xff]
        %v2047 = vld [vmem:[#allocation5 + $0xa10] sm:$0xff]
        %v2048 = vld [vmem:[#allocation5 + $0xa18] sm:$0xff]
        %v2049 = vld [vmem:[#allocation5 + $0xa20] sm:$0xff]
        %v2050 = vld [vmem:[#allocation5 + $0xa28] sm:$0xff]
        %v2051 = vld [vmem:[#allocation5 + $0xa30] sm:$0xff]
        %v2052 = vld [vmem:[#allocation5 + $0xa38] sm:$0xff]
        %v2053 = vld [vmem:[#allocation5 + $0xa40] sm:$0xff]
        %v2054 = vld [vmem:[#allocation5 + $0xa48] sm:$0xff]
        %v2055 = vld [vmem:[#allocation5 + $0xa50] sm:$0xff]
        %v2056 = vld [vmem:[#allocation5 + $0xa58] sm:$0xff]
        %v2057 = vld [vmem:[#allocation5 + $0xa60] sm:$0xff]
        %v2058 = vld [vmem:[#allocation5 + $0xa68] sm:$0xff]
        %v2059 = vld [vmem:[#allocation5 + $0xa70] sm:$0xff]
        %v2060 = vld [vmem:[#allocation5 + $0xa78] sm:$0xff]
        %v2061 = vld [vmem:[#allocation5 + $0xa80] sm:$0xff]
        %v2062 = vld [vmem:[#allocation5 + $0xa88] sm:$0xff]
        %v2063 = vld [vmem:[#allocation5 + $0xa90] sm:$0xff]
        %v2064 = vld [vmem:[#allocation5 + $0xa98] sm:$0xff]
        %v2065 = vld [vmem:[#allocation5 + $0xaa0] sm:$0xff]
        %v2066 = vld [vmem:[#allocation5 + $0xaa8] sm:$0xff]
        %v2067 = vld [vmem:[#allocation5 + $0xab0] sm:$0xff]
        %v2068 = vld [vmem:[#allocation5 + $0xab8] sm:$0xff]
        %v2069 = vld [vmem:[#allocation5 + $0xac0] sm:$0xff]
        %v2070 = vld [vmem:[#allocation5 + $0xac8] sm:$0xff]
        %v2071 = vld [vmem:[#allocation5 + $0xad0] sm:$0xff]
        %v2072 = vld [vmem:[#allocation5 + $0xad8] sm:$0xff]
        %v2073 = vld [vmem:[#allocation5 + $0xae0] sm:$0xff]
        %v2074 = vld [vmem:[#allocation5 + $0xae8] sm:$0xff]
        %v2075 = vld [vmem:[#allocation5 + $0xaf0] sm:$0xff]
        %v2076 = vld [vmem:[#allocation5 + $0xaf8] sm:$0xff]
        %v2077 = vld [vmem:[#allocation5 + $0xb00] sm:$0xff]
        %v2078 = vld [vmem:[#allocation5 + $0xb08] sm:$0xff]
        %v2079 = vld [vmem:[#allocation5 + $0xb10] sm:$0xff]
        %v2080 = vld [vmem:[#allocation5 + $0xb18] sm:$0xff]
        %v2081 = vld [vmem:[#allocation5 + $0xb20] sm:$0xff]
        %v2082 = vld [vmem:[#allocation5 + $0xb28] sm:$0xff]
        %v2083 = vld [vmem:[#allocation5 + $0xb30] sm:$0xff]
        %v2084 = vld [vmem:[#allocation5 + $0xb38] sm:$0xff]
        %v2085 = vld [vmem:[#allocation5 + $0xb40] sm:$0xff]
        %v2086 = vld [vmem:[#allocation5 + $0xb48] sm:$0xff]
        %v2087 = vld [vmem:[#allocation5 + $0xb50] sm:$0xff]
        %v2088 = vld [vmem:[#allocation5 + $0xb58] sm:$0xff]
        %v2089 = vld [vmem:[#allocation5 + $0xb60] sm:$0xff]
        %v2090 = vld [vmem:[#allocation5 + $0xb68] sm:$0xff]
        %v2091 = vld [vmem:[#allocation5 + $0xb70] sm:$0xff]
        %v2092 = vld [vmem:[#allocation5 + $0xb78] sm:$0xff]
        %v2093 = vld [vmem:[#allocation5 + $0xb80] sm:$0xff]
        %v2094 = vld [vmem:[#allocation5 + $0xb88] sm:$0xff]
        %v2095 = vld [vmem:[#allocation5 + $0xb90] sm:$0xff]
        %v2096 = vld [vmem:[#allocation5 + $0xb98] sm:$0xff]
        %v2097 = vld [vmem:[#allocation5 + $0xba0] sm:$0xff]
        %v2098 = vld [vmem:[#allocation5 + $0xba8] sm:$0xff]
        %v2099 = vld [vmem:[#allocation5 + $0xbb0] sm:$0xff]
        %v2100 = vld [vmem:[#allocation5 + $0xbb8] sm:$0xff]
        %v2101 = vld [vmem:[#allocation5 + $0xbc0] sm:$0xff]
        %v2102 = vld [vmem:[#allocation5 + $0xbc8] sm:$0xff]
        %v2103 = vld [vmem:[#allocation5 + $0xbd0] sm:$0xff]
        %v2104 = vld [vmem:[#allocation5 + $0xbd8] sm:$0xff]
        %v2105 = vld [vmem:[#allocation5 + $0xbe0] sm:$0xff]
        %v2106 = vld [vmem:[#allocation5 + $0xbe8] sm:$0xff]
        %v2107 = vld [vmem:[#allocation5 + $0xbf0] sm:$0xff]
        %v2108 = vld [vmem:[#allocation5 + $0xbf8] sm:$0xff]
        %2109 = vmatprep.subr.mxu0 %v1726
        %2110 = vmatpush1.msra.mxu0 %v1725
        %2111 = vmatprep.subr.mxu0 %v1730
        %2112 = vmatpush1.msra.mxu0 %v1729
        %2113 = vmatprep.subr.mxu0 %v1734
        %2114 = vmatpush1.msra.mxu0 %v1733
        %2115 = vmatprep.subr.mxu0 %v1738
        %2116 = vmatpush1.msra.mxu0 %v1737
        %2117 = vmatprep.subr.mxu0 %v1742
        %2118 = vmatpush1.msra.mxu0 %v1741
        %2119 = vmatprep.subr.mxu0 %v1746
        %2120 = vmatpush1.msra.mxu0 %v1745
        %2121 = vmatprep.subr.mxu0 %v1750
        %2122 = vmatpush1.msra.mxu0 %v1749
        %2123 = vmatprep.subr.mxu0 %v1754
        %2124 = vmatpush1.msra.mxu0 %v1753
        %2125 = vmatprep.subr.mxu0 %v1758
        %2126 = vmatpush1.msra.mxu0 %v1757
        %2127 = vmatprep.subr.mxu0 %v1762
        %2128 = vmatpush1.msra.mxu0 %v1761
        %2129 = vmatprep.subr.mxu0 %v1766
        %2130 = vmatpush1.msra.mxu0 %v1765
        %2131 = vmatprep.subr.mxu0 %v1770
        %2132 = vmatpush1.msra.mxu0 %v1769
        %2133 = vmatprep.subr.mxu0 %v1774
        %2134 = vmatpush1.msra.mxu0 %v1773
        %2135 = vmatprep.subr.mxu0 %v1778
        %2136 = vmatpush1.msra.mxu0 %v1777
        %2137 = vmatprep.subr.mxu0 %v1782
        %2138 = vmatpush1.msra.mxu0 %v1781
        %2139 = vmatprep.subr.mxu0 %v1786
        %2140 = vmatpush1.msra.mxu0 %v1785
        %2141 = vmatprep.subr.mxu0 %v1790
        %2142 = vmatpush1.msra.mxu0 %v1789
        %2143 = vmatprep.subr.mxu0 %v1794
        %2144 = vmatpush1.msra.mxu0 %v1793
        %2145 = vmatprep.subr.mxu0 %v1798
        %2146 = vmatpush1.msra.mxu0 %v1797
        %2147 = vmatprep.subr.mxu0 %v1802
        %2148 = vmatpush1.msra.mxu0 %v1801
        %2149 = vmatprep.subr.mxu0 %v1806
        %2150 = vmatpush1.msra.mxu0 %v1805
        %2151 = vmatprep.subr.mxu0 %v1810
        %2152 = vmatpush1.msra.mxu0 %v1809
        %2153 = vmatprep.subr.mxu0 %v1814
        %2154 = vmatpush1.msra.mxu0 %v1813
        %2155 = vmatprep.subr.mxu0 %v1818
        %2156 = vmatpush1.msra.mxu0 %v1817
        %2157 = vmatprep.subr.mxu0 %v1822
        %2158 = vmatpush1.msra.mxu0 %v1821
        %2159 = vmatprep.subr.mxu0 %v1826
        %2160 = vmatpush1.msra.mxu0 %v1825
        %2161 = vmatprep.subr.mxu0 %v1830
        %2162 = vmatpush1.msra.mxu0 %v1829
        %2163 = vmatprep.subr.mxu0 %v1834
        %2164 = vmatpush1.msra.mxu0 %v1833
        %2165 = vmatprep.subr.mxu0 %v1838
        %2166 = vmatpush1.msra.mxu0 %v1837
        %2167 = vmatprep.subr.mxu0 %v1842
        %2168 = vmatpush1.msra.mxu0 %v1841
        %2169 = vmatprep.subr.mxu0 %v1846
        %2170 = vmatpush1.msra.mxu0 %v1845
        %2171 = vmatprep.subr.mxu0 %v1850
        %2172 = vmatpush1.msra.mxu0 %v1849
        %2173 = vmatprep.mubr.f32.mxu0 %v1714
        %2174 = vmatmul.mubr.f32.gmra.mrb[0].mxu0 %v1713
        %v2175 = vpop.f32.mrb[0].mxu0
        %v2176 = vadd.f32 0.0, %v2175
        %v2177 = vpop.f32.mrb[0].mxu0
        %v2178 = vadd.f32 0.0, %v2177
        %2179 = vmatprep.mubr.f32.mxu0 %v1717
        %2180 = vmatmul.mubr.f32.gmra.mrb[0].mxu0 %v1716
        %v2181 = vpop.f32.mrb[0].mxu0
        %v2182 = vadd.f32 0.0, %v2181
        %v2183 = vpop.f32.mrb[0].mxu0
        %v2184 = vadd.f32 0.0, %v2183
        %2185 = vdwg.mxu0
        %2186 = vmatprep.subr.mxu0 %v1854
        %2187 = vmatpush1.msra.mxu0 %v1853
        %2188 = vmatprep.subr.mxu0 %v1858
        %2189 = vmatpush1.msra.mxu0 %v1857
        %2190 = vmatprep.subr.mxu0 %v1862
        %2191 = vmatpush1.msra.mxu0 %v1861
        %2192 = vmatprep.subr.mxu0 %v1866
        %2193 = vmatpush1.msra.mxu0 %v1865
        %2194 = vmatprep.subr.mxu0 %v1870
        %2195 = vmatpush1.msra.mxu0 %v1869
        %2196 = vmatprep.subr.mxu0 %v1874
        %2197 = vmatpush1.msra.mxu0 %v1873
        %2198 = vmatprep.subr.mxu0 %v1878
        %2199 = vmatpush1.msra.mxu0 %v1877
        %2200 = vmatprep.subr.mxu0 %v1882
        %2201 = vmatpush1.msra.mxu0 %v1881
        %2202 = vmatprep.subr.mxu0 %v1886
        %2203 = vmatpush1.msra.mxu0 %v1885
        %2204 = vmatprep.subr.mxu0 %v1890
        %2205 = vmatpush1.msra.mxu0 %v1889
        %2206 = vmatprep.subr.mxu0 %v1894
        %2207 = vmatpush1.msra.mxu0 %v1893
        %2208 = vmatprep.subr.mxu0 %v1898
        %2209 = vmatpush1.msra.mxu0 %v1897
        %2210 = vmatprep.subr.mxu0 %v1902
        %2211 = vmatpush1.msra.mxu0 %v1901
        %2212 = vmatprep.subr.mxu0 %v1906
        %2213 = vmatpush1.msra.mxu0 %v1905
        %2214 = vmatprep.subr.mxu0 %v1910
        %2215 = vmatpush1.msra.mxu0 %v1909
        %2216 = vmatprep.subr.mxu0 %v1914
        %2217 = vmatpush1.msra.mxu0 %v1913
        %2218 = vmatprep.subr.mxu0 %v1918
        %2219 = vmatpush1.msra.mxu0 %v1917
        %2220 = vmatprep.subr.mxu0 %v1922
        %2221 = vmatpush1.msra.mxu0 %v1921
        %2222 = vmatprep.subr.mxu0 %v1926
        %2223 = vmatpush1.msra.mxu0 %v1925
        %2224 = vmatprep.subr.mxu0 %v1930
        %2225 = vmatpush1.msra.mxu0 %v1929
        %2226 = vmatprep.subr.mxu0 %v1934
        %2227 = vmatpush1.msra.mxu0 %v1933
        %2228 = vmatprep.subr.mxu0 %v1938
        %2229 = vmatpush1.msra.mxu0 %v1937
        %2230 = vmatprep.subr.mxu0 %v1942
        %2231 = vmatpush1.msra.mxu0 %v1941
        %2232 = vmatprep.subr.mxu0 %v1946
        %2233 = vmatpush1.msra.mxu0 %v1945
        %2234 = vmatprep.subr.mxu0 %v1950
        %2235 = vmatpush1.msra.mxu0 %v1949
        %2236 = vmatprep.subr.mxu0 %v1954
        %2237 = vmatpush1.msra.mxu0 %v1953
        %2238 = vmatprep.subr.mxu0 %v1958
        %2239 = vmatpush1.msra.mxu0 %v1957
        %2240 = vmatprep.subr.mxu0 %v1962
        %2241 = vmatpush1.msra.mxu0 %v1961
        %2242 = vmatprep.subr.mxu0 %v1966
        %2243 = vmatpush1.msra.mxu0 %v1965
        %2244 = vmatprep.subr.mxu0 %v1970
        %2245 = vmatpush1.msra.mxu0 %v1969
        %2246 = vmatprep.subr.mxu0 %v1974
        %2247 = vmatpush1.msra.mxu0 %v1973
        %2248 = vmatprep.subr.mxu0 %v1978
        %2249 = vmatpush1.msra.mxu0 %v1977
        %2250 = vmatprep.mubr.f32.mxu0 %v1719
        %2251 = vmatmul.mubr.f32.gmra.mrb[0].mxu0 %v1715
        %v2252 = vpop.f32.mrb[0].mxu0
        %v2253 = vadd.f32 %v2176, %v2252
        %v2254 = vpop.f32.mrb[0].mxu0
        %v2255 = vadd.f32 %v2178, %v2254
        %2256 = vmatprep.mubr.f32.mxu0 %v1722
        %2257 = vmatmul.mubr.f32.gmra.mrb[0].mxu0 %v1718
        %v2258 = vpop.f32.mrb[0].mxu0
        %v2259 = vadd.f32 %v2182, %v2258
        %v2260 = vpop.f32.mrb[0].mxu0
        %v2261 = vadd.f32 %v2184, %v2260
        %2262 = vdwg.mxu0
        %2263 = vmatprep.subr.mxu0 %v1982
        %2264 = vmatpush1.msra.mxu0 %v1981
        %2265 = vmatprep.subr.mxu0 %v1986
        %2266 = vmatpush1.msra.mxu0 %v1985
        %2267 = vmatprep.subr.mxu0 %v1990
        %2268 = vmatpush1.msra.mxu0 %v1989
        %2269 = vmatprep.subr.mxu0 %v1994
        %2270 = vmatpush1.msra.mxu0 %v1993
        %2271 = vmatprep.subr.mxu0 %v1998
        %2272 = vmatpush1.msra.mxu0 %v1997
        %2273 = vmatprep.subr.mxu0 %v2002
        %2274 = vmatpush1.msra.mxu0 %v2001
        %2275 = vmatprep.subr.mxu0 %v2006
        %2276 = vmatpush1.msra.mxu0 %v2005
        %2277 = vmatprep.subr.mxu0 %v2010
        %2278 = vmatpush1.msra.mxu0 %v2009
        %2279 = vmatprep.subr.mxu0 %v2014
        %2280 = vmatpush1.msra.mxu0 %v2013
        %2281 = vmatprep.subr.mxu0 %v2018
        %2282 = vmatpush1.msra.mxu0 %v2017
        %2283 = vmatprep.subr.mxu0 %v2022
        %2284 = vmatpush1.msra.mxu0 %v2021
        %2285 = vmatprep.subr.mxu0 %v2026
        %2286 = vmatpush1.msra.mxu0 %v2025
        %2287 = vmatprep.subr.mxu0 %v2030
        %2288 = vmatpush1.msra.mxu0 %v2029
        %2289 = vmatprep.subr.mxu0 %v2034
        %2290 = vmatpush1.msra.mxu0 %v2033
        %2291 = vmatprep.subr.mxu0 %v2038
        %2292 = vmatpush1.msra.mxu0 %v2037
        %2293 = vmatprep.subr.mxu0 %v2042
        %2294 = vmatpush1.msra.mxu0 %v2041
        %2295 = vmatprep.subr.mxu0 %v2046
        %2296 = vmatpush1.msra.mxu0 %v2045
        %2297 = vmatprep.subr.mxu0 %v2050
        %2298 = vmatpush1.msra.mxu0 %v2049
        %2299 = vmatprep.subr.mxu0 %v2054
        %2300 = vmatpush1.msra.mxu0 %v2053
        %2301 = vmatprep.subr.mxu0 %v2058
        %2302 = vmatpush1.msra.mxu0 %v2057
        %2303 = vmatprep.subr.mxu0 %v2062
        %2304 = vmatpush1.msra.mxu0 %v2061
        %2305 = vmatprep.subr.mxu0 %v2066
        %2306 = vmatpush1.msra.mxu0 %v2065
        %2307 = vmatprep.subr.mxu0 %v2070
        %2308 = vmatpush1.msra.mxu0 %v2069
        %2309 = vmatprep.subr.mxu0 %v2074
        %2310 = vmatpush1.msra.mxu0 %v2073
        %2311 = vmatprep.subr.mxu0 %v2078
        %2312 = vmatpush1.msra.mxu0 %v2077
        %2313 = vmatprep.subr.mxu0 %v2082
        %2314 = vmatpush1.msra.mxu0 %v2081
        %2315 = vmatprep.subr.mxu0 %v2086
        %2316 = vmatpush1.msra.mxu0 %v2085
        %2317 = vmatprep.subr.mxu0 %v2090
        %2318 = vmatpush1.msra.mxu0 %v2089
        %2319 = vmatprep.subr.mxu0 %v2094
        %2320 = vmatpush1.msra.mxu0 %v2093
        %2321 = vmatprep.subr.mxu0 %v2098
        %2322 = vmatpush1.msra.mxu0 %v2097
        %2323 = vmatprep.subr.mxu0 %v2102
        %2324 = vmatpush1.msra.mxu0 %v2101
        %2325 = vmatprep.subr.mxu0 %v2106
        %2326 = vmatpush1.msra.mxu0 %v2105
        %2327 = vmatprep.mubr.f32.mxu0 %v1721
        %2328 = vmatmul.mubr.f32.gmra.mrb[0].mxu0 %v1720
        %v2329 = vpop.f32.mrb[0].mxu0
        %v2330 = vadd.f32 %v2253, %v2329
        %v2331 = vpop.f32.mrb[0].mxu0
        %v2332 = vadd.f32 %v2255, %v2331
        %2333 = vmatprep.mubr.f32.mxu0 %v1724
        %2334 = vmatmul.mubr.f32.gmra.mrb[0].mxu0 %v1723
        %v2335 = vpop.f32.mrb[0].mxu0
        %v2336 = vadd.f32 %v2259, %v2335
        %v2337 = vpop.f32.mrb[0].mxu0
        %v2338 = vadd.f32 %v2261, %v2337
        %2339 = vdwg.mxu0
        %2340 = vmatprep.subr.mxu0 %v1728
        %2341 = vmatpush1.msra.mxu0 %v1727
        %2342 = vmatprep.subr.mxu0 %v1732
        %2343 = vmatpush1.msra.mxu0 %v1731
        %2344 = vmatprep.subr.mxu0 %v1736
        %2345 = vmatpush1.msra.mxu0 %v1735
        %2346 = vmatprep.subr.mxu0 %v1740
        %2347 = vmatpush1.msra.mxu0 %v1739
        %2348 = vmatprep.subr.mxu0 %v1744
        %2349 = vmatpush1.msra.mxu0 %v1743
        %2350 = vmatprep.subr.mxu0 %v1748
        %2351 = vmatpush1.msra.mxu0 %v1747
        %2352 = vmatprep.subr.mxu0 %v1752
        %2353 = vmatpush1.msra.mxu0 %v1751
        %2354 = vmatprep.subr.mxu0 %v1756
        %2355 = vmatpush1.msra.mxu0 %v1755
        %2356 = vmatprep.subr.mxu0 %v1760
        %2357 = vmatpush1.msra.mxu0 %v1759
        %2358 = vmatprep.subr.mxu0 %v1764
        %2359 = vmatpush1.msra.mxu0 %v1763
        %2360 = vmatprep.subr.mxu0 %v1768
        %2361 = vmatpush1.msra.mxu0 %v1767
        %2362 = vmatprep.subr.mxu0 %v1772
        %2363 = vmatpush1.msra.mxu0 %v1771
        %2364 = vmatprep.subr.mxu0 %v1776
        %2365 = vmatpush1.msra.mxu0 %v1775
        %2366 = vmatprep.subr.mxu0 %v1780
        %2367 = vmatpush1.msra.mxu0 %v1779
        %2368 = vmatprep.subr.mxu0 %v1784
        %2369 = vmatpush1.msra.mxu0 %v1783
        %2370 = vmatprep.subr.mxu0 %v1788
        %2371 = vmatpush1.msra.mxu0 %v1787
        %2372 = vmatprep.subr.mxu0 %v1792
        %2373 = vmatpush1.msra.mxu0 %v1791
        %2374 = vmatprep.subr.mxu0 %v1796
        %2375 = vmatpush1.msra.mxu0 %v1795
        %2376 = vmatprep.subr.mxu0 %v1800
        %2377 = vmatpush1.msra.mxu0 %v1799
        %2378 = vmatprep.subr.mxu0 %v1804
        %2379 = vmatpush1.msra.mxu0 %v1803
        %2380 = vmatprep.subr.mxu0 %v1808
        %2381 = vmatpush1.msra.mxu0 %v1807
        %2382 = vmatprep.subr.mxu0 %v1812
        %2383 = vmatpush1.msra.mxu0 %v1811
        %2384 = vmatprep.subr.mxu0 %v1816
        %2385 = vmatpush1.msra.mxu0 %v1815
        %2386 = vmatprep.subr.mxu0 %v1820
        %2387 = vmatpush1.msra.mxu0 %v1819
        %2388 = vmatprep.subr.mxu0 %v1824
        %2389 = vmatpush1.msra.mxu0 %v1823
        %2390 = vmatprep.subr.mxu0 %v1828
        %2391 = vmatpush1.msra.mxu0 %v1827
        %2392 = vmatprep.subr.mxu0 %v1832
        %2393 = vmatpush1.msra.mxu0 %v1831
        %2394 = vmatprep.subr.mxu0 %v1836
        %2395 = vmatpush1.msra.mxu0 %v1835
        %2396 = vmatprep.subr.mxu0 %v1840
        %2397 = vmatpush1.msra.mxu0 %v1839
        %2398 = vmatprep.subr.mxu0 %v1844
        %2399 = vmatpush1.msra.mxu0 %v1843
        %2400 = vmatprep.subr.mxu0 %v1848
        %2401 = vmatpush1.msra.mxu0 %v1847
        %2402 = vmatprep.subr.mxu0 %v1852
        %2403 = vmatpush1.msra.mxu0 %v1851
        %2404 = vmatprep.mubr.f32.mxu0 %v1714
        %2405 = vmatmul.mubr.f32.gmra.mrb[0].mxu0 %v1713
        %v2406 = vpop.f32.mrb[0].mxu0
        %v2407 = vadd.f32 0.0, %v2406
        %v2408 = vpop.f32.mrb[0].mxu0
        %v2409 = vadd.f32 0.0, %v2408
        %2410 = vmatprep.mubr.f32.mxu0 %v1717
        %2411 = vmatmul.mubr.f32.gmra.mrb[0].mxu0 %v1716
        %v2412 = vpop.f32.mrb[0].mxu0
        %v2413 = vadd.f32 0.0, %v2412
        %v2414 = vpop.f32.mrb[0].mxu0
        %v2415 = vadd.f32 0.0, %v2414
        %2416 = vdwg.mxu0
        %2417 = vmatprep.subr.mxu0 %v1856
        %2418 = vmatpush1.msra.mxu0 %v1855
        %2419 = vmatprep.subr.mxu0 %v1860
        %2420 = vmatpush1.msra.mxu0 %v1859
        %2421 = vmatprep.subr.mxu0 %v1864
        %2422 = vmatpush1.msra.mxu0 %v1863
        %2423 = vmatprep.subr.mxu0 %v1868
        %2424 = vmatpush1.msra.mxu0 %v1867
        %2425 = vmatprep.subr.mxu0 %v1872
        %2426 = vmatpush1.msra.mxu0 %v1871
        %2427 = vmatprep.subr.mxu0 %v1876
        %2428 = vmatpush1.msra.mxu0 %v1875
        %2429 = vmatprep.subr.mxu0 %v1880
        %2430 = vmatpush1.msra.mxu0 %v1879
        %2431 = vmatprep.subr.mxu0 %v1884
        %2432 = vmatpush1.msra.mxu0 %v1883
        %2433 = vmatprep.subr.mxu0 %v1888
        %2434 = vmatpush1.msra.mxu0 %v1887
        %2435 = vmatprep.subr.mxu0 %v1892
        %2436 = vmatpush1.msra.mxu0 %v1891
        %2437 = vmatprep.subr.mxu0 %v1896
        %2438 = vmatpush1.msra.mxu0 %v1895
        %2439 = vmatprep.subr.mxu0 %v1900
        %2440 = vmatpush1.msra.mxu0 %v1899
        %2441 = vmatprep.subr.mxu0 %v1904
        %2442 = vmatpush1.msra.mxu0 %v1903
        %2443 = vmatprep.subr.mxu0 %v1908
        %2444 = vmatpush1.msra.mxu0 %v1907
        %2445 = vmatprep.subr.mxu0 %v1912
        %2446 = vmatpush1.msra.mxu0 %v1911
        %2447 = vmatprep.subr.mxu0 %v1916
        %2448 = vmatpush1.msra.mxu0 %v1915
        %2449 = vmatprep.subr.mxu0 %v1920
        %2450 = vmatpush1.msra.mxu0 %v1919
        %2451 = vmatprep.subr.mxu0 %v1924
        %2452 = vmatpush1.msra.mxu0 %v1923
        %2453 = vmatprep.subr.mxu0 %v1928
        %2454 = vmatpush1.msra.mxu0 %v1927
        %2455 = vmatprep.subr.mxu0 %v1932
        %2456 = vmatpush1.msra.mxu0 %v1931
        %2457 = vmatprep.subr.mxu0 %v1936
        %2458 = vmatpush1.msra.mxu0 %v1935
        %2459 = vmatprep.subr.mxu0 %v1940
        %2460 = vmatpush1.msra.mxu0 %v1939
        %2461 = vmatprep.subr.mxu0 %v1944
        %2462 = vmatpush1.msra.mxu0 %v1943
        %2463 = vmatprep.subr.mxu0 %v1948
        %2464 = vmatpush1.msra.mxu0 %v1947
        %2465 = vmatprep.subr.mxu0 %v1952
        %2466 = vmatpush1.msra.mxu0 %v1951
        %2467 = vmatprep.subr.mxu0 %v1956
        %2468 = vmatpush1.msra.mxu0 %v1955
        %2469 = vmatprep.subr.mxu0 %v1960
        %2470 = vmatpush1.msra.mxu0 %v1959
        %2471 = vmatprep.subr.mxu0 %v1964
        %2472 = vmatpush1.msra.mxu0 %v1963
        %2473 = vmatprep.subr.mxu0 %v1968
        %2474 = vmatpush1.msra.mxu0 %v1967
        %2475 = vmatprep.subr.mxu0 %v1972
        %2476 = vmatpush1.msra.mxu0 %v1971
        %2477 = vmatprep.subr.mxu0 %v1976
        %2478 = vmatpush1.msra.mxu0 %v1975
        %2479 = vmatprep.subr.mxu0 %v1980
        %2480 = vmatpush1.msra.mxu0 %v1979
        %2481 = vmatprep.mubr.f32.mxu0 %v1719
        %2482 = vmatmul.mubr.f32.gmra.mrb[0].mxu0 %v1715
        %v2483 = vpop.f32.mrb[0].mxu0
        %v2484 = vadd.f32 %v2407, %v2483
        %v2485 = vpop.f32.mrb[0].mxu0
        %v2486 = vadd.f32 %v2409, %v2485
        %2487 = vmatprep.mubr.f32.mxu0 %v1722
        %2488 = vmatmul.mubr.f32.gmra.mrb[0].mxu0 %v1718
        %v2489 = vpop.f32.mrb[0].mxu0
        %v2490 = vadd.f32 %v2413, %v2489
        %v2491 = vpop.f32.mrb[0].mxu0
        %v2492 = vadd.f32 %v2415, %v2491
        %2493 = vdwg.mxu0
        %2494 = vmatprep.subr.mxu0 %v1984
        %2495 = vmatpush1.msra.mxu0 %v1983
        %2496 = vmatprep.subr.mxu0 %v1988
        %2497 = vmatpush1.msra.mxu0 %v1987
        %2498 = vmatprep.subr.mxu0 %v1992
        %2499 = vmatpush1.msra.mxu0 %v1991
        %2500 = vmatprep.subr.mxu0 %v1996
        %2501 = vmatpush1.msra.mxu0 %v1995
        %2502 = vmatprep.subr.mxu0 %v2000
        %2503 = vmatpush1.msra.mxu0 %v1999
        %2504 = vmatprep.subr.mxu0 %v2004
        %2505 = vmatpush1.msra.mxu0 %v2003
        %2506 = vmatprep.subr.mxu0 %v2008
        %2507 = vmatpush1.msra.mxu0 %v2007
        %2508 = vmatprep.subr.mxu0 %v2012
        %2509 = vmatpush1.msra.mxu0 %v2011
        %2510 = vmatprep.subr.mxu0 %v2016
        %2511 = vmatpush1.msra.mxu0 %v2015
        %2512 = vmatprep.subr.mxu0 %v2020
        %2513 = vmatpush1.msra.mxu0 %v2019
        %2514 = vmatprep.subr.mxu0 %v2024
        %2515 = vmatpush1.msra.mxu0 %v2023
        %2516 = vmatprep.subr.mxu0 %v2028
        %2517 = vmatpush1.msra.mxu0 %v2027
        %2518 = vmatprep.subr.mxu0 %v2032
        %2519 = vmatpush1.msra.mxu0 %v2031
        %2520 = vmatprep.subr.mxu0 %v2036
        %2521 = vmatpush1.msra.mxu0 %v2035
        %2522 = vmatprep.subr.mxu0 %v2040
        %2523 = vmatpush1.msra.mxu0 %v2039
        %2524 = vmatprep.subr.mxu0 %v2044
        %2525 = vmatpush1.msra.mxu0 %v2043
        %2526 = vmatprep.subr.mxu0 %v2048
        %2527 = vmatpush1.msra.mxu0 %v2047
        %2528 = vmatprep.subr.mxu0 %v2052
        %2529 = vmatpush1.msra.mxu0 %v2051
        %2530 = vmatprep.subr.mxu0 %v2056
        %2531 = vmatpush1.msra.mxu0 %v2055
        %2532 = vmatprep.subr.mxu0 %v2060
        %2533 = vmatpush1.msra.mxu0 %v2059
        %2534 = vmatprep.subr.mxu0 %v2064
        %2535 = vmatpush1.msra.mxu0 %v2063
        %2536 = vmatprep.subr.mxu0 %v2068
        %2537 = vmatpush1.msra.mxu0 %v2067
        %2538 = vmatprep.subr.mxu0 %v2072
        %2539 = vmatpush1.msra.mxu0 %v2071
        %2540 = vmatprep.subr.mxu0 %v2076
        %2541 = vmatpush1.msra.mxu0 %v2075
        %2542 = vmatprep.subr.mxu0 %v2080
        %2543 = vmatpush1.msra.mxu0 %v2079
        %2544 = vmatprep.subr.mxu0 %v2084
        %2545 = vmatpush1.msra.mxu0 %v2083
        %2546 = vmatprep.subr.mxu0 %v2088
        %2547 = vmatpush1.msra.mxu0 %v2087
        %2548 = vmatprep.subr.mxu0 %v2092
        %2549 = vmatpush1.msra.mxu0 %v2091
        %2550 = vmatprep.subr.mxu0 %v2096
        %2551 = vmatpush1.msra.mxu0 %v2095
        %2552 = vmatprep.subr.mxu0 %v2100
        %2553 = vmatpush1.msra.mxu0 %v2099
        %2554 = vmatprep.subr.mxu0 %v2104
        %2555 = vmatpush1.msra.mxu0 %v2103
        %2556 = vmatprep.subr.mxu0 %v2108
        %2557 = vmatpush1.msra.mxu0 %v2107
        %2558 = vmatprep.mubr.f32.mxu0 %v1721
        %2559 = vmatmul.mubr.f32.gmra.mrb[0].mxu0 %v1720
        %v2560 = vpop.f32.mrb[0].mxu0
        %v2561 = vadd.f32 %v2484, %v2560
        %v2562 = vpop.f32.mrb[0].mxu0
        %v2563 = vadd.f32 %v2486, %v2562
        %2564 = vmatprep.mubr.f32.mxu0 %v1724
        %2565 = vmatmul.mubr.f32.gmra.mrb[0].mxu0 %v1723
        %v2566 = vpop.f32.mrb[0].mxu0
        %v2567 = vadd.f32 %v2490, %v2566
        %v2568 = vpop.f32.mrb[0].mxu0
        %v2569 = vadd.f32 %v2492, %v2568
        %2570 = vdwg.mxu0
        %2571 = vst [vmem:[#allocation2] sm:$0xff] 0.0
        %2572 = vst [vmem:[#allocation2 + $0x8] sm:$0xf] 0.0
        %v2573 = vld [vmem:[#allocation2] sm:$0xff]
        %v2574 = vld [vmem:[#allocation2 + $0x8] sm:$0x1]
        %v2575 = vadd.f32 %v2573, %v2330
        %v2576 = vadd.f32 %v2574, %v2336
        %2577 = vst [vmem:[#allocation2] sm:$0xff] %v2575
        %2578 = vst [vmem:[#allocation2 + $0x8] sm:$0x1] %v2576
        %v2579 = vld [vmem:[#allocation2 + $0x1] sm:$0xff]
        %v2580 = vld [vmem:[#allocation2 + $0x9] sm:$0x1]
        %v2581 = vadd.f32 %v2579, %v2332
        %v2582 = vadd.f32 %v2580, %v2338
        %2583 = vst [vmem:[#allocation2 + $0x1] sm:$0xff] %v2581
        %2584 = vst [vmem:[#allocation2 + $0x9] sm:$0x1] %v2582
        %v2585 = vld [vmem:[#allocation2 + $0x2] sm:$0xff]
        %v2586 = vld [vmem:[#allocation2 + $0xa] sm:$0x1]
        %v2587 = vadd.f32 %v2585, %v2561
        %v2588 = vadd.f32 %v2586, %v2567
        %2589 = vst [vmem:[#allocation2 + $0x2] sm:$0xff] %v2587
        %2590 = vst [vmem:[#allocation2 + $0xa] sm:$0x1] %v2588
        %v2591 = vld [vmem:[#allocation2 + $0x3] sm:$0xff]
        %v2592 = vld [vmem:[#allocation2 + $0xb] sm:$0x1]
        %v2593 = vadd.f32 %v2591, %v2563
        %v2594 = vadd.f32 %v2592, %v2569
        %2595 = vst [vmem:[#allocation2 + $0x3] sm:$0xff] %v2593
        %2596 = vst [vmem:[#allocation2 + $0xb] sm:$0x1] %v2594
        %v2597 = vld [vmem:[#allocation2] sm:$0xff]
        %v2598 = vld [vmem:[#allocation2 + $0x8] sm:$0xf]
        %v2599 = vld [vmem:[#allocation8] sm:$0xff]
        %v2600 = vld [vmem:[#allocation8 + $0x8] sm:$0xf]
        %v2601 = vmul.f32 %v2597, %v2599
        %v2602 = vmul.f32 %v2598, %v2600
        %2603 = vst [vmem:[%s281] sm:$0xff] %v2601
        %2604 = vst [vmem:[%s281 + $0x8] sm:$0xf] %v2602
        %p2605 = scmp.lt.s32.totalorder %s19, 1
        %s2606 = scalar_select %p2605, %s19, 1
        %s2607 = smul.addr %s2606, 2
        %s2608 = smul.addr %s2607, 8
        %s2609 = scalar_lea.vmem %s5, %s2608
        // Predicated region
        $region57: #{tpu_custom_call.1} parent=39 // pred_check
          %p2610 = pneg %p147
        $region58: #{tpu_custom_call.1} parent=39 // pred_check_branch
          %2612 = sbr.rel (%p2610) target = $region60
        $region59: #{tpu_custom_call.1} parent=39 // pred_region
          _
        $region60: #{tpu_custom_call.1} parent=39 // pred_fallthru
          _
      $region40: #{tpu_custom_call.1} parent=5 // pred_fallthru
        _
      %p2613 = scmp.le.s32.totalorder 2, %s14
      // Predicated region
      $region61: #{tpu_custom_call.1} parent=5 // pred_check
        %p2614 = pneg %p2613
      $region62: #{tpu_custom_call.1} parent=5 // pred_check_branch
        %2616 = sbr.rel (%p2614) target = $region64
      $region63: #{tpu_custom_call.1} parent=5 // pred_region
        %s2617 = ssub.s32 %s14, 2
        // Predicated region
        $region65: #{tpu_custom_call.1} parent=63 // pred_check
          %p2618 = pneg %p153
        $region66: #{tpu_custom_call.1} parent=63 // pred_check_branch
          %2620 = sbr.rel (%p2618) target = $region68
        $region67: #{tpu_custom_call.1} parent=63 // pred_region
          %p2621 = scmp.lt.s32.totalorder %s20, 1
          %s2622 = scalar_select %p2621, %s20, 1
          %s2623 = smul.addr %s2622, 2
          %s2624 = smul.addr %s2623, 8
          %s2625 = scalar_lea.vmem %s5, %s2624
        $region68: #{tpu_custom_call.1} parent=63 // pred_fallthru
          _
      $region64: #{tpu_custom_call.1} parent=5 // pred_fallthru
        _
    $region6: #{tpu_custom_call.1} parent=1 // loop_footer
      %s18 = sadd.s32 1, %s14
    $region7: #{tpu_custom_call.1} parent=1 // loop_footer_branch
      %13 = sbr.rel target = $region3
    $region8: #{tpu_custom_call.1} parent=1 // loop_exit
      _
    %2626 = vsyncpa [#allocation4], 1
    %s2627 = scalar_lea.sflag [#allocation4], 1
    %2628 = vsyncpa %s2627, 1
    %2629 = vsyncpa [#allocation6], 1
    %2630 = vsyncpa [#allocation9], 1

</llo_original>
